<compile_context>
chip_gen: v5e
topology: v5e:2x2
jax: 0.10.0
libtpu: 0.0.40
codegen_flags: <defaults>
</compile_context>

<pallas_src>
import math
import functools

import jax
import jax.numpy as jnp
from jax.experimental import pallas as pl
from jax.experimental.pallas import tpu as pltpu


# MXU input precision.  bf16 halves HBM/VMEM weight traffic and doubles MXU
# throughput on v6e/v7x while accumulating in f32.  Set to jnp.float32 for
# exact-f32 parity with the PyTorch reference.
_MXU_DTYPE = jnp.bfloat16


@functools.lru_cache(maxsize=None)
def _vmem_budget():
    """(vmem_limit_bytes, max_row_tile) gated per TPU generation."""
    cap = None
    try:
        cap = pltpu.get_tpu_info().vmem_capacity_bytes
    except Exception:
        cap = None
    if cap is not None and cap >= 96 * 1024 * 1024:
        # v5e / v6e: 128 MiB physical VMEM -> big double-buffered row tiles.
        return 100 * 1024 * 1024, 1024
    # v7x (64 MiB physical) or unknown chip: stay conservative.
    return 48 * 1024 * 1024, 512


# ----------------------------------------------------------------------------
# Small helpers
# ----------------------------------------------------------------------------

def _ln(x, g, b, eps=1e-5):
    """LayerNorm over the last dim (torch eps=1e-5). x: (M, C) f32."""
    mean = jnp.mean(x, axis=-1, keepdims=True)
    var = jnp.mean(jnp.square(x - mean), axis=-1, keepdims=True)
    return (x - mean) * jax.lax.rsqrt(var + eps) * g + b


def _row_tile(M, cap):
    """Fixed row tile (cap is a multiple of 8); ragged last block via cdiv grid."""
    return M if M <= cap else cap


def _call_rows(kernel, args, out_cols, *, cost=None):
    """Row-tiled pallas_call.

    args: list of (array, row_tiled: bool).  Row-tiled arrays are 2-D (M, *)
    and share the same M; non-tiled arrays (weights/biases/gamma/beta) stay
    VMEM-resident (constant index_map) across the M grid so only the row tiles
    stream from HBM.
    """
    M = args[0][0].shape[0]
    vmem_bytes, cap = _vmem_budget()
    tm = _row_tile(M, cap)
    grid = (pl.cdiv(M, tm),)

    in_specs = []
    for a, tiled in args:
        if tiled:
            in_specs.append(pl.BlockSpec((tm, a.shape[1]), lambda i: (i, 0)))
        else:
            nd = a.ndim
            in_specs.append(pl.BlockSpec(a.shape, (lambda i, _n=nd: (0,) * _n)))

    return pl.pallas_call(
        kernel,
        out_shape=jax.ShapeDtypeStruct((M, out_cols), jnp.float32),
        grid=grid,
        in_specs=in_specs,
        out_specs=pl.BlockSpec((tm, out_cols), lambda i: (i, 0)),
        compiler_params=pltpu.CompilerParams(
            dimension_semantics=("parallel",),
            vmem_limit_bytes=vmem_bytes),
        cost_estimate=cost,
    )(*[a for a, _ in args])


# ----------------------------------------------------------------------------
# Fused row-wise kernels
# ----------------------------------------------------------------------------

def _linear_ln_kernel(x_ref, w_ref, b_ref, g_ref, be_ref, o_ref):
    """o = LayerNorm(x @ w + b)  (input_proj + norm1)."""
    acc = jnp.dot(x_ref[...].astype(w_ref.dtype), w_ref[...],
                  preferred_element_type=jnp.float32) + b_ref[...]
    o_ref[...] = _ln(acc, g_ref[...], be_ref[...]).astype(o_ref.dtype)


def _ln_linear_kernel(x_ref, g_ref, be_ref, w_ref, b_ref, o_ref):
    """o = LayerNorm(x) @ w + b  (LN1+QKV, norm2+output_proj)."""
    y = _ln(x_ref[...].astype(jnp.float32), g_ref[...], be_ref[...])
    acc = jnp.dot(y.astype(w_ref.dtype), w_ref[...],
                  preferred_element_type=jnp.float32)
    o_ref[...] = (acc + b_ref[...]).astype(o_ref.dtype)


def _linear_res_kernel(x_ref, w_ref, b_ref, res_ref, o_ref):
    """o = res + x @ w + b  (attention out-proj fused with residual add)."""
    acc = jnp.dot(x_ref[...].astype(w_ref.dtype), w_ref[...],
                  preferred_element_type=jnp.float32) + b_ref[...]
    o_ref[...] = (res_ref[...] + acc).astype(o_ref.dtype)


def _ln_mlp_res_kernel(x_ref, g_ref, be_ref, w1_ref, b1_ref, w2_ref, b2_ref, o_ref):
    """o = x + fc2(gelu(fc1(LayerNorm(x))))  (whole MLP branch in one kernel)."""
    # TODO(synk): for C >= ~1536, chunk the hidden dim with an 'arbitrary' grid
    # axis + f32 accumulator so only a slice of w1/w2 is resident (v7x VMEM).
    x = x_ref[...].astype(jnp.float32)
    y = _ln(x, g_ref[...], be_ref[...])
    h = jnp.dot(y.astype(w1_ref.dtype), w1_ref[...],
                preferred_element_type=jnp.float32) + b1_ref[...]
    h = jax.nn.gelu(h, approximate=True)
    o = jnp.dot(h.astype(w2_ref.dtype), w2_ref[...],
                preferred_element_type=jnp.float32) + b2_ref[...]
    o_ref[...] = (x + o).astype(o_ref.dtype)


def linear_ln(x, w, b, g, be):
    M, K = x.shape
    N = w.shape[1]
    cost = pl.CostEstimate(flops=2 * M * K * N, transcendentals=0,
                           bytes_accessed=4 * (M * K + M * N) + 2 * K * N)
    return _call_rows(
        _linear_ln_kernel,
        [(x, True), (w, False), (b.reshape(1, N), False),
         (g.reshape(1, N), False), (be.reshape(1, N), False)],
        N, cost=cost)


def ln_linear(x, g, be, w, b):
    M, C = x.shape
    N = w.shape[1]
    cost = pl.CostEstimate(flops=2 * M * C * N, transcendentals=0,
                           bytes_accessed=4 * (M * C + M * N) + 2 * C * N)
    return _call_rows(
        _ln_linear_kernel,
        [(x, True), (g.reshape(1, C), False), (be.reshape(1, C), False),
         (w, False), (b.reshape(1, N), False)],
        N, cost=cost)


def linear_residual(x, w, b, res):
    M, K = x.shape
    N = w.shape[1]
    cost = pl.CostEstimate(flops=2 * M * K * N, transcendentals=0,
                           bytes_accessed=4 * (M * K + 2 * M * N) + 2 * K * N)
    return _call_rows(
        _linear_res_kernel,
        [(x, True), (w, False), (b.reshape(1, N), False), (res, True)],
        N, cost=cost)


def mlp_residual(x, g, be, w1, b1, w2, b2):
    M, C = x.shape
    H = w1.shape[1]
    cost = pl.CostEstimate(flops=4 * M * C * H, transcendentals=M * H,
                           bytes_accessed=4 * (2 * M * C) + 2 * (2 * C * H))
    return _call_rows(
        _ln_mlp_res_kernel,
        [(x, True), (g.reshape(1, C), False), (be.reshape(1, C), False),
         (w1, False), (b1.reshape(1, H), False),
         (w2, False), (b2.reshape(1, C), False)],
        C, cost=cost)


# ----------------------------------------------------------------------------
# Attention kernel: token-major in / token-major out, per-head in-kernel slicing,
# RoPE + scale fused, only one (L, L) score matrix live per head.
# ----------------------------------------------------------------------------

def _attn_rope_kernel(qkv_ref, cos_ref, sin_ref, o_ref, *,
                      num_heads, head_dim, scale, half):
    qkv = qkv_ref[0].astype(jnp.float32)        # (L, 3C), resident token-major tile
    cos = cos_ref[...]                          # (L, dh)
    sin = sin_ref[...]
    C = num_heads * head_dim

    def rope(x):
        # rotate-half: [x1, x2] -> [x1*c - x2*s, x2*c + x1*s]
        x1 = x[:, :half]
        x2 = x[:, half:]
        rot = jnp.concatenate([-x2, x1], axis=-1)
        return x * cos + rot * sin

    outs = []
    # Static per-head lane slices of the resident tile; no XLA-side (B,H,L,dh)
    # relayouts, and each head's scores are consumed before the next head.
    for h in range(num_heads):
        off = h * head_dim
        q = rope(qkv[:, off:off + head_dim]) * scale      # fold 1/sqrt(dh) into q
        k = rope(qkv[:, C + off:C + off + head_dim])
        v = qkv[:, 2 * C + off:2 * C + off + head_dim]
        s = jax.lax.dot_general(                           # q @ k^T on the MXU
            q.astype(_MXU_DTYPE), k.astype(_MXU_DTYPE),
            (((1,), (1,)), ((), ())),
            preferred_element_type=jnp.float32)            # (L, L)
        m = jnp.max(s, axis=-1, keepdims=True)
        p = jnp.exp(s - m)
        p = p * pl.reciprocal(jnp.sum(p, axis=-1, keepdims=True), approx=True)
        outs.append(jnp.dot(p.astype(_MXU_DTYPE), v.astype(_MXU_DTYPE),
                            preferred_element_type=jnp.float32))
    o_ref[0] = jnp.concatenate(outs, axis=-1).astype(o_ref.dtype)


def attention(qkv, cos, sin, num_heads):
    """qkv: (B, L, 3C) token-major -> attention output (B*L, C) token-major."""
    B, L, C3 = qkv.shape
    C = C3 // 3
    dh = C // num_heads
    vmem_bytes, _ = _vmem_budget()
    kern = functools.partial(_attn_rope_kernel, num_heads=num_heads, head_dim=dh,
                             scale=1.0 / math.sqrt(dh), half=dh // 2)
    cost = pl.CostEstimate(flops=4 * B * num_heads * L * L * dh,
                           transcendentals=B * num_heads * L * L,
                           bytes_accessed=4 * B * L * (C3 + C))
    out = pl.pallas_call(
        kern,
        out_shape=jax.ShapeDtypeStruct((B, L, C), jnp.float32),
        grid=(B,),
        in_specs=[
            pl.BlockSpec((1, L, C3), lambda b: (b, 0, 0)),
            pl.BlockSpec((L, dh), lambda b: (0, 0)),
            pl.BlockSpec((L, dh), lambda b: (0, 0)),
        ],
        out_specs=pl.BlockSpec((1, L, C), lambda b: (b, 0, 0)),
        compiler_params=pltpu.CompilerParams(
            dimension_semantics=("parallel",),
            vmem_limit_bytes=vmem_bytes),
        cost_estimate=cost,
    )(qkv, cos, sin)
    return out.reshape(B * L, C)      # free view: output is already token-major


# ----------------------------------------------------------------------------
# Final 3x3 conv (NCHW, padding=1) — no im2col, weights/bias in SMEM,
# shifted taps hoisted out of the output-channel loop, single block store.
# ----------------------------------------------------------------------------

def _conv3x3_kernel(x_ref, w_ref, b_ref, o_ref, *, H, W, Cin, Cout):
    x = x_ref[0]                                   # (Cin, H+2, W+2) f32
    offs = [(kh, kw) for kh in range(3) for kw in range(3)]
    # Hoist the 9 shifted views per input channel (co-independent) so each view
    # is materialized once and reused across output channels.
    taps = [[x[ci, kh:kh + H, kw:kw + W] for (kh, kw) in offs] for ci in range(Cin)]
    outs = []
    for co in range(Cout):
        acc = jnp.full((H, W), b_ref[co], dtype=jnp.float32)
        for ci in range(Cin):
            base = (co * Cin + ci) * 9
            for t in range(9):
                acc = acc + taps[ci][t] * w_ref[base + t]
        outs.append(acc)
    # One stacked store instead of Cout masked partial stores.
    o_ref[0] = jnp.stack(outs).astype(o_ref.dtype)


def conv3x3_same(x_nchw, w, b):
    """3x3 / stride 1 / padding 1 conv matching torch.nn.Conv2d (NCHW)."""
    B, Cin, H, W = x_nchw.shape
    Cout = w.shape[0]
    vmem_bytes, _ = _vmem_budget()
    xp = jnp.pad(x_nchw, ((0, 0), (0, 0), (1, 1), (1, 1)))
    kern = functools.partial(_conv3x3_kernel, H=H, W=W, Cin=Cin, Cout=Cout)
    return pl.pallas_call(
        kern,
        out_shape=jax.ShapeDtypeStruct((B, Cout, H, W), jnp.float32),
        grid=(B,),
        in_specs=[
            pl.BlockSpec((1, Cin, H + 2, W + 2), lambda i: (i, 0, 0, 0)),
            pl.BlockSpec(memory_space=pltpu.MemorySpace.SMEM),
            pl.BlockSpec(memory_space=pltpu.MemorySpace.SMEM),
        ],
        out_specs=pl.BlockSpec((1, Cout, H, W), lambda i: (i, 0, 0, 0)),
        compiler_params=pltpu.CompilerParams(
            dimension_semantics=("parallel",),
            vmem_limit_bytes=vmem_bytes),
    )(xp, w.reshape(-1).astype(jnp.float32), b.astype(jnp.float32))


# ----------------------------------------------------------------------------
# RoPE tables (rotate-half, 2-D axial) and model wiring
# ----------------------------------------------------------------------------

def precompute_rope_2d(dim, height, width, theta=10000.0):
    """cos/sin tables of shape (H*W, dim) for rotate-half 2-D axial RoPE."""
    n = dim // 4
    idx = jnp.arange(n, dtype=jnp.float32) * (4.0 / dim)
    freqs = 1.0 / (theta ** idx)                                  # (n,)
    th = jnp.arange(height, dtype=jnp.float32)
    tw = jnp.arange(width, dtype=jnp.float32)
    fh = jnp.broadcast_to(jnp.outer(th, freqs)[:, None, :], (height, width, n))
    fw = jnp.broadcast_to(jnp.outer(tw, freqs)[None, :, :], (height, width, n))
    f = jnp.concatenate([fh, fw], axis=-1).reshape(height * width, dim // 2)
    cos = jnp.concatenate([jnp.cos(f), jnp.cos(f)], axis=-1)      # (L, dim)
    sin = jnp.concatenate([jnp.sin(f), jnp.sin(f)], axis=-1)
    return cos, sin


def block_forward(x2, B, L, p, cos, sin, num_heads):
    """Pre-norm ViT block; x2 is the flattened (B*L, C) activation."""
    C = x2.shape[1]
    # LN1 + QKV projection (one kernel)
    qkv = ln_linear(x2, p["ln1_g"], p["ln1_b"], p["qkv_w"], p["qkv_b"])
    # RoPE + softmax attention, token-major in/out, heads sliced in-kernel
    attn = attention(qkv.reshape(B, L, 3 * C), cos, sin, num_heads)
    # out-proj + residual (one kernel)
    x2 = linear_residual(attn, p["proj_w"], p["proj_b"], x2)
    # LN2 + fc1 + GELU + fc2 + residual (one kernel)
    x2 = mlp_residual(x2, p["ln2_g"], p["ln2_b"], p["fc1_w"], p["fc1_b"],
                      p["fc2_w"], p["fc2_b"])
    return x2


def vit_pixel_decoder_forward(x_siglip, params, cfg):
    """x_siglip: (B, L, input_dim) -> reconstruction (B, 3, g*p, g*p) (NCHW)."""
    B, L, D = x_siglip.shape
    C = cfg["hidden_size"]
    g = cfg["grid_size"]
    pz = cfg["patch_size"]
    nh = cfg["num_heads"]
    assert L == g * g

    cos, sin = precompute_rope_2d(C // nh, g, g)

    # input_proj + norm1 (fused).  siglip_feature_dim_down is None -> no extra proj.
    x2 = linear_ln(x_siglip.reshape(B * L, D),
                   params["input_proj_w"], params["input_proj_b"],
                   params["norm1_g"], params["norm1_b"])          # (B*L, C)

    for blk in params["blocks"]:
        x2 = block_forward(x2, B, L, blk, cos, sin, nh)

    # norm2 + output_proj (1x1 conv == per-token linear), fused.
    y = ln_linear(x2, params["norm2_g"], params["norm2_b"],
                  params["out_w"], params["out_b"])               # (B*L, p*p*3)

    # Rearrange 'b (p1 p2 c) h w -> b c (h p1) (w p2)'
    y = y.reshape(B, g, g, pz, pz, 3)
    y = jnp.transpose(y, (0, 5, 1, 3, 2, 4)).reshape(B, 3, g * pz, g * pz)

    # conv_out: Conv2d(3, 3, 3, padding=1)
    return conv3x3_same(y, params["conv_w"], params["conv_b"])


# ----------------------------------------------------------------------------
# Deterministic parameter initialization (matmul weights pre-cast to bf16 once)
# ----------------------------------------------------------------------------

def init_params(key, cfg):
    C = cfg["hidden_size"]
    Din = cfg["input_dim"]
    p = cfg["patch_size"]
    depth = cfg["depth"]
    keys = iter(jax.random.split(key, 16 + 12 * depth))

    def nrm(shape, scale=0.02, dtype=jnp.float32):
        w = scale * jax.random.normal(next(keys), shape, dtype=jnp.float32)
        return w.astype(dtype)

    params = {
        "input_proj_w": nrm((Din, C), dtype=_MXU_DTYPE),
        "input_proj_b": nrm((C,), 0.01),
        "norm1_g": jnp.ones((C,), jnp.float32),
        "norm1_b": jnp.zeros((C,), jnp.float32),
        "norm2_g": jnp.ones((C,), jnp.float32),
        "norm2_b": jnp.zeros((C,), jnp.float32),
        "out_w": nrm((C, p * p * 3), dtype=_MXU_DTYPE),
        "out_b": nrm((p * p * 3,), 0.01),
        "conv_w": nrm((3, 3, 3, 3), 0.1),
        "conv_b": nrm((3,), 0.01),
        "blocks": [],
    }
    for _ in range(depth):
        params["blocks"].append({
            "ln1_g": jnp.ones((C,), jnp.float32),
            "ln1_b": jnp.zeros((C,), jnp.float32),
            "qkv_w": nrm((C, 3 * C), dtype=_MXU_DTYPE),
            "qkv_b": nrm((3 * C,), 0.01),
            "proj_w": nrm((C, C), dtype=_MXU_DTYPE),
            "proj_b": nrm((C,), 0.01),
            "ln2_g": jnp.ones((C,), jnp.float32),
            "ln2_b": jnp.zeros((C,), jnp.float32),
            "fc1_w": nrm((C, 4 * C), dtype=_MXU_DTYPE),
            "fc1_b": nrm((4 * C,), 0.01),
            "fc2_w": nrm((4 * C, C), dtype=_MXU_DTYPE),
            "fc2_b": nrm((C,), 0.01),
        })
    return params


# ----------------------------------------------------------------------------
# main
# ----------------------------------------------------------------------------

if __name__ == "__main__":
    cfg = dict(
        hidden_size=32,
        depth=2,
        num_heads=4,
        patch_size=2,
        grid_size=4,      # L = 16 tokens
        input_dim=48,
        upsample=False,
    )

    key = jax.random.PRNGKey(0)
    k_param, k_input = jax.random.split(key)
    params = init_params(k_param, cfg)

    B = 2
    L = cfg["grid_size"] ** 2
    x_siglip = jax.random.normal(k_input, (B, L, cfg["input_dim"]), dtype=jnp.float32)

    fwd = jax.jit(lambda xs, ps: vit_pixel_decoder_forward(xs, ps, cfg))
    rec = fwd(x_siglip, params)
    rec = jax.block_until_ready(rec)

    expected_hw = cfg["grid_size"] * cfg["patch_size"]
    assert rec.shape == (B, 3, expected_hw, expected_hw), rec.shape
    assert bool(jnp.all(jnp.isfinite(rec)))
    print("KERNEL_OK")
</pallas_src>

<mosaic_0001>
module attributes {stable_mosaic.version = 11 : i64} {
  func.func @_linear_ln_kernel(%arg0: i32, %arg1: memref<32x48xf32, #tpu.memory_space<vmem>>, %arg2: memref<48x32xbf16, #tpu.memory_space<vmem>>, %arg3: memref<1x32xf32, #tpu.memory_space<vmem>>, %arg4: memref<1x32xf32, #tpu.memory_space<vmem>>, %arg5: memref<1x32xf32, #tpu.memory_space<vmem>>, %arg6: memref<32x32xf32, #tpu.memory_space<vmem>>) attributes {dimension_semantics = [#tpu.dimension_semantics<parallel>], iteration_bounds = array<i64: 1>, scalar_prefetch = 0 : i64, scratch_operands = 0 : i64, tpu.core_type = #tpu.core_type<tc>, window_params = [{transform_indices = @transform_0, window_bounds = array<i64: 32, 48>}, {pipeline_mode = #tpu.pipeline_mode<synchronous>, transform_indices = @transform_1, window_bounds = array<i64: 48, 32>}, {pipeline_mode = #tpu.pipeline_mode<synchronous>, transform_indices = @transform_2, window_bounds = array<i64: 1, 32>}, {pipeline_mode = #tpu.pipeline_mode<synchronous>, transform_indices = @transform_3, window_bounds = array<i64: 1, 32>}, {pipeline_mode = #tpu.pipeline_mode<synchronous>, transform_indices = @transform_4, window_bounds = array<i64: 1, 32>}, {transform_indices = @transform_5, window_bounds = array<i64: 32, 32>}]} {
    %c0 = arith.constant 0 : index
    %c0_0 = arith.constant 0 : index
    %0 = vector.load %arg1[%c0, %c0_0] : memref<32x48xf32, #tpu.memory_space<vmem>>, vector<32x48xf32>
    %1 = arith.truncf %0 : vector<32x48xf32> to vector<32x48xbf16>
    %c0_1 = arith.constant 0 : index
    %c0_2 = arith.constant 0 : index
    %2 = vector.load %arg2[%c0_1, %c0_2] : memref<48x32xbf16, #tpu.memory_space<vmem>>, vector<48x32xbf16>
    %cst = arith.constant dense<0.000000e+00> : vector<32x32xf32>
    %3 = tpu.matmul %1, %2, %cst {dimension_numbers = #tpu.dot_dimension_numbers<[1], [0], [0], [1], [0, 0, 1, 1], [], []>} : vector<32x48xbf16>, vector<48x32xbf16>, vector<32x32xf32> -> vector<32x32xf32>
    %c0_3 = arith.constant 0 : index
    %c0_4 = arith.constant 0 : index
    %4 = vector.load %arg3[%c0_3, %c0_4] : memref<1x32xf32, #tpu.memory_space<vmem>>, vector<1x32xf32>
    %5 = vector.broadcast %4 : vector<1x32xf32> to vector<32x32xf32>
    %6 = arith.addf %3, %5 : vector<32x32xf32>
    %c0_5 = arith.constant 0 : index
    %c0_6 = arith.constant 0 : index
    %7 = vector.load %arg4[%c0_5, %c0_6] : memref<1x32xf32, #tpu.memory_space<vmem>>, vector<1x32xf32>
    %c0_7 = arith.constant 0 : index
    %c0_8 = arith.constant 0 : index
    %8 = vector.load %arg5[%c0_7, %c0_8] : memref<1x32xf32, #tpu.memory_space<vmem>>, vector<1x32xf32>
    %cst_9 = arith.constant dense<0.000000e+00> : vector<32xf32>
    %9 = vector.multi_reduction <add>, %6, %cst_9 [1] : vector<32x32xf32> to vector<32xf32>
    %10 = vector.shape_cast %9 : vector<32xf32> to vector<32x1xf32>
    %cst_10 = arith.constant 3.200000e+01 : f32
    %11 = vector.broadcast %cst_10 : f32 to vector<32x1xf32>
    %12 = arith.divf %10, %11 : vector<32x1xf32>
    %13 = vector.broadcast %12 : vector<32x1xf32> to vector<32x32xf32>
    %14 = arith.subf %6, %13 : vector<32x32xf32>
    %15 = arith.mulf %14, %14 : vector<32x32xf32>
    %cst_11 = arith.constant dense<0.000000e+00> : vector<32xf32>
    %16 = vector.multi_reduction <add>, %15, %cst_11 [1] : vector<32x32xf32> to vector<32xf32>
    %17 = vector.shape_cast %16 : vector<32xf32> to vector<32x1xf32>
    %cst_12 = arith.constant 3.200000e+01 : f32
    %18 = vector.broadcast %cst_12 : f32 to vector<32x1xf32>
    %19 = arith.divf %17, %18 : vector<32x1xf32>
    %20 = vector.broadcast %12 : vector<32x1xf32> to vector<32x32xf32>
    %21 = arith.subf %6, %20 : vector<32x32xf32>
    %cst_13 = arith.constant 9.99999974E-6 : f32
    %22 = vector.broadcast %cst_13 : f32 to vector<32x1xf32>
    %23 = arith.addf %19, %22 : vector<32x1xf32>
    %24 = math.rsqrt %23 : vector<32x1xf32>
    %25 = vector.broadcast %24 : vector<32x1xf32> to vector<32x32xf32>
    %26 = arith.mulf %21, %25 : vector<32x32xf32>
    %27 = vector.broadcast %7 : vector<1x32xf32> to vector<32x32xf32>
    %28 = arith.mulf %26, %27 : vector<32x32xf32>
    %29 = vector.broadcast %8 : vector<1x32xf32> to vector<32x32xf32>
    %30 = arith.addf %28, %29 : vector<32x32xf32>
    %c0_14 = arith.constant 0 : index
    %c0_15 = arith.constant 0 : index
    %31 = vector.load %arg6[%c0_14, %c0_15] : memref<32x32xf32, #tpu.memory_space<vmem>>, vector<32x32xf32>
    tpu.vector_store %arg6[%c0_14, %c0_15], %30 {strides = array<i32>} : memref<32x32xf32, #tpu.memory_space<vmem>>, vector<32x32xf32>,
    return
  }
  func.func @transform_0(%arg0: i32) -> (i32, i32) {
    %c0_i32 = arith.constant 0 : i32
    %c0_i32_0 = arith.constant 0 : i32
    return %arg0, %c0_i32 : i32, i32
  }
  func.func @transform_1(%arg0: i32) -> (i32, i32) {
    %c0_i32 = arith.constant 0 : i32
    %c0_i32_0 = arith.constant 0 : i32
    %c0_i32_1 = arith.constant 0 : i32
    return %c0_i32, %c0_i32_0 : i32, i32
  }
  func.func @transform_2(%arg0: i32) -> (i32, i32) {
    %c0_i32 = arith.constant 0 : i32
    %c0_i32_0 = arith.constant 0 : i32
    %c0_i32_1 = arith.constant 0 : i32
    return %c0_i32, %c0_i32_0 : i32, i32
  }
  func.func @transform_3(%arg0: i32) -> (i32, i32) {
    %c0_i32 = arith.constant 0 : i32
    %c0_i32_0 = arith.constant 0 : i32
    %c0_i32_1 = arith.constant 0 : i32
    return %c0_i32, %c0_i32_0 : i32, i32
  }
  func.func @transform_4(%arg0: i32) -> (i32, i32) {
    %c0_i32 = arith.constant 0 : i32
    %c0_i32_0 = arith.constant 0 : i32
    %c0_i32_1 = arith.constant 0 : i32
    return %c0_i32, %c0_i32_0 : i32, i32
  }
  func.func @transform_5(%arg0: i32) -> (i32, i32) {
    %c0_i32 = arith.constant 0 : i32
    %c0_i32_0 = arith.constant 0 : i32
    return %arg0, %c0_i32 : i32, i32
  }
}

module attributes {stable_mosaic.version = 11 : i64} {
  func.func @_ln_linear_kernel(%arg0: i32, %arg1: memref<32x32xf32, #tpu.memory_space<vmem>>, %arg2: memref<1x32xf32, #tpu.memory_space<vmem>>, %arg3: memref<1x32xf32, #tpu.memory_space<vmem>>, %arg4: memref<32x96xbf16, #tpu.memory_space<vmem>>, %arg5: memref<1x96xf32, #tpu.memory_space<vmem>>, %arg6: memref<32x96xf32, #tpu.memory_space<vmem>>) attributes {dimension_semantics = [#tpu.dimension_semantics<parallel>], iteration_bounds = array<i64: 1>, scalar_prefetch = 0 : i64, scratch_operands = 0 : i64, tpu.core_type = #tpu.core_type<tc>, window_params = [{transform_indices = @transform_0, window_bounds = array<i64: 32, 32>}, {pipeline_mode = #tpu.pipeline_mode<synchronous>, transform_indices = @transform_1, window_bounds = array<i64: 1, 32>}, {pipeline_mode = #tpu.pipeline_mode<synchronous>, transform_indices = @transform_2, window_bounds = array<i64: 1, 32>}, {pipeline_mode = #tpu.pipeline_mode<synchronous>, transform_indices = @transform_3, window_bounds = array<i64: 32, 96>}, {pipeline_mode = #tpu.pipeline_mode<synchronous>, transform_indices = @transform_4, window_bounds = array<i64: 1, 96>}, {transform_indices = @transform_5, window_bounds = array<i64: 32, 96>}]} {
    %c0 = arith.constant 0 : index
    %c0_0 = arith.constant 0 : index
    %0 = vector.load %arg1[%c0, %c0_0] : memref<32x32xf32, #tpu.memory_space<vmem>>, vector<32x32xf32>
    %c0_1 = arith.constant 0 : index
    %c0_2 = arith.constant 0 : index
    %1 = vector.load %arg2[%c0_1, %c0_2] : memref<1x32xf32, #tpu.memory_space<vmem>>, vector<1x32xf32>
    %c0_3 = arith.constant 0 : index
    %c0_4 = arith.constant 0 : index
    %2 = vector.load %arg3[%c0_3, %c0_4] : memref<1x32xf32, #tpu.memory_space<vmem>>, vector<1x32xf32>
    %cst = arith.constant dense<0.000000e+00> : vector<32xf32>
    %3 = vector.multi_reduction <add>, %0, %cst [1] : vector<32x32xf32> to vector<32xf32>
    %4 = vector.shape_cast %3 : vector<32xf32> to vector<32x1xf32>
    %cst_5 = arith.constant 3.200000e+01 : f32
    %5 = vector.broadcast %cst_5 : f32 to vector<32x1xf32>
    %6 = arith.divf %4, %5 : vector<32x1xf32>
    %7 = vector.broadcast %6 : vector<32x1xf32> to vector<32x32xf32>
    %8 = arith.subf %0, %7 : vector<32x32xf32>
    %9 = arith.mulf %8, %8 : vector<32x32xf32>
    %cst_6 = arith.constant dense<0.000000e+00> : vector<32xf32>
    %10 = vector.multi_reduction <add>, %9, %cst_6 [1] : vector<32x32xf32> to vector<32xf32>
    %11 = vector.shape_cast %10 : vector<32xf32> to vector<32x1xf32>
    %cst_7 = arith.constant 3.200000e+01 : f32
    %12 = vector.broadcast %cst_7 : f32 to vector<32x1xf32>
    %13 = arith.divf %11, %12 : vector<32x1xf32>
    %14 = vector.broadcast %6 : vector<32x1xf32> to vector<32x32xf32>
    %15 = arith.subf %0, %14 : vector<32x32xf32>
    %cst_8 = arith.constant 9.99999974E-6 : f32
    %16 = vector.broadcast %cst_8 : f32 to vector<32x1xf32>
    %17 = arith.addf %13, %16 : vector<32x1xf32>
    %18 = math.rsqrt %17 : vector<32x1xf32>
    %19 = vector.broadcast %18 : vector<32x1xf32> to vector<32x32xf32>
    %20 = arith.mulf %15, %19 : vector<32x32xf32>
    %21 = vector.broadcast %1 : vector<1x32xf32> to vector<32x32xf32>
    %22 = arith.mulf %20, %21 : vector<32x32xf32>
    %23 = vector.broadcast %2 : vector<1x32xf32> to vector<32x32xf32>
    %24 = arith.addf %22, %23 : vector<32x32xf32>
    %25 = arith.truncf %24 : vector<32x32xf32> to vector<32x32xbf16>
    %c0_9 = arith.constant 0 : index
    %c0_10 = arith.constant 0 : index
    %26 = vector.load %arg4[%c0_9, %c0_10] : memref<32x96xbf16, #tpu.memory_space<vmem>>, vector<32x96xbf16>
    %cst_11 = arith.constant dense<0.000000e+00> : vector<32x96xf32>
    %27 = tpu.matmul %25, %26, %cst_11 {dimension_numbers = #tpu.dot_dimension_numbers<[1], [0], [0], [1], [0, 0, 1, 1], [], []>} : vector<32x32xbf16>, vector<32x96xbf16>, vector<32x96xf32> -> vector<32x96xf32>
    %c0_12 = arith.constant 0 : index
    %c0_13 = arith.constant 0 : index
    %28 = vector.load %arg5[%c0_12, %c0_13] : memref<1x96xf32, #tpu.memory_space<vmem>>, vector<1x96xf32>
    %29 = vector.broadcast %28 : vector<1x96xf32> to vector<32x96xf32>
    %30 = arith.addf %27, %29 : vector<32x96xf32>
    %c0_14 = arith.constant 0 : index
    %c0_15 = arith.constant 0 : index
    %31 = vector.load %arg6[%c0_14, %c0_15] : memref<32x96xf32, #tpu.memory_space<vmem>>, vector<32x96xf32>
    tpu.vector_store %arg6[%c0_14, %c0_15], %30 {strides = array<i32>} : memref<32x96xf32, #tpu.memory_space<vmem>>, vector<32x96xf32>,
    return
  }
  func.func @transform_0(%arg0: i32) -> (i32, i32) {
    %c0_i32 = arith.constant 0 : i32
    %c0_i32_0 = arith.constant 0 : i32
    return %arg0, %c0_i32 : i32, i32
  }
  func.func @transform_1(%arg0: i32) -> (i32, i32) {
    %c0_i32 = arith.constant 0 : i32
    %c0_i32_0 = arith.constant 0 : i32
    %c0_i32_1 = arith.constant 0 : i32
    return %c0_i32, %c0_i32_0 : i32, i32
  }
  func.func @transform_2(%arg0: i32) -> (i32, i32) {
    %c0_i32 = arith.constant 0 : i32
    %c0_i32_0 = arith.constant 0 : i32
    %c0_i32_1 = arith.constant 0 : i32
    return %c0_i32, %c0_i32_0 : i32, i32
  }
  func.func @transform_3(%arg0: i32) -> (i32, i32) {
    %c0_i32 = arith.constant 0 : i32
    %c0_i32_0 = arith.constant 0 : i32
    %c0_i32_1 = arith.constant 0 : i32
    return %c0_i32, %c0_i32_0 : i32, i32
  }
  func.func @transform_4(%arg0: i32) -> (i32, i32) {
    %c0_i32 = arith.constant 0 : i32
    %c0_i32_0 = arith.constant 0 : i32
    %c0_i32_1 = arith.constant 0 : i32
    return %c0_i32, %c0_i32_0 : i32, i32
  }
  func.func @transform_5(%arg0: i32) -> (i32, i32) {
    %c0_i32 = arith.constant 0 : i32
    %c0_i32_0 = arith.constant 0 : i32
    return %arg0, %c0_i32 : i32, i32
  }
}

module attributes {stable_mosaic.version = 11 : i64} {
  func.func @_attn_rope_kernel(%arg0: i32, %arg1: memref<1x16x96xf32, #tpu.memory_space<vmem>>, %arg2: memref<16x8xf32, #tpu.memory_space<vmem>>, %arg3: memref<16x8xf32, #tpu.memory_space<vmem>>, %arg4: memref<1x16x32xf32, #tpu.memory_space<vmem>>) attributes {dimension_semantics = [#tpu.dimension_semantics<parallel>], iteration_bounds = array<i64: 2>, scalar_prefetch = 0 : i64, scratch_operands = 0 : i64, tpu.core_type = #tpu.core_type<tc>, window_params = [{transform_indices = @transform_0, window_bounds = array<i64: 1, 16, 96>}, {pipeline_mode = #tpu.pipeline_mode<synchronous>, transform_indices = @transform_1, window_bounds = array<i64: 16, 8>}, {pipeline_mode = #tpu.pipeline_mode<synchronous>, transform_indices = @transform_2, window_bounds = array<i64: 16, 8>}, {transform_indices = @transform_3, window_bounds = array<i64: 1, 16, 32>}]} {
    %c0 = arith.constant 0 : index
    %c0_0 = arith.constant 0 : index
    %c0_1 = arith.constant 0 : index
    %0 = vector.load %arg1[%c0, %c0_0, %c0_1] : memref<1x16x96xf32, #tpu.memory_space<vmem>>, vector<1x16x96xf32>
    %1 = vector.shape_cast %0 : vector<1x16x96xf32> to vector<16x96xf32>
    %c0_2 = arith.constant 0 : index
    %c0_3 = arith.constant 0 : index
    %2 = vector.load %arg2[%c0_2, %c0_3] : memref<16x8xf32, #tpu.memory_space<vmem>>, vector<16x8xf32>
    %c0_4 = arith.constant 0 : index
    %c0_5 = arith.constant 0 : index
    %3 = vector.load %arg3[%c0_4, %c0_5] : memref<16x8xf32, #tpu.memory_space<vmem>>, vector<16x8xf32>
    %4 = vector.extract_strided_slice %1 {offsets = [0, 0], sizes = [16, 8], strides = [1, 1]} : vector<16x96xf32> to vector<16x8xf32>
    %5 = vector.extract_strided_slice %4 {offsets = [0, 0], sizes = [16, 4], strides = [1, 1]} : vector<16x8xf32> to vector<16x4xf32>
    %6 = vector.extract_strided_slice %4 {offsets = [0, 4], sizes = [16, 4], strides = [1, 1]} : vector<16x8xf32> to vector<16x4xf32>
    %cst = arith.constant 0.000000e+00 : f32
    %7 = vector.broadcast %cst : f32 to vector<16x4xf32>
    %8 = arith.subf %7, %6 : vector<16x4xf32>
    %9 = tpu.concatenate %8, %5 in 1 : vector<16x4xf32>, vector<16x4xf32> -> vector<16x8xf32>
    %10 = arith.mulf %4, %2 : vector<16x8xf32>
    %11 = arith.mulf %9, %3 : vector<16x8xf32>
    %12 = arith.addf %10, %11 : vector<16x8xf32>
    %cst_6 = arith.constant 0.353553385 : f32
    %13 = vector.broadcast %cst_6 : f32 to vector<16x8xf32>
    %14 = arith.mulf %12, %13 : vector<16x8xf32>
    %15 = vector.extract_strided_slice %1 {offsets = [0, 32], sizes = [16, 8], strides = [1, 1]} : vector<16x96xf32> to vector<16x8xf32>
    %16 = vector.extract_strided_slice %15 {offsets = [0, 0], sizes = [16, 4], strides = [1, 1]} : vector<16x8xf32> to vector<16x4xf32>
    %17 = vector.extract_strided_slice %15 {offsets = [0, 4], sizes = [16, 4], strides = [1, 1]} : vector<16x8xf32> to vector<16x4xf32>
    %cst_7 = arith.constant 0.000000e+00 : f32
    %18 = vector.broadcast %cst_7 : f32 to vector<16x4xf32>
    %19 = arith.subf %18, %17 : vector<16x4xf32>
    %20 = tpu.concatenate %19, %16 in 1 : vector<16x4xf32>, vector<16x4xf32> -> vector<16x8xf32>
    %21 = arith.mulf %15, %2 : vector<16x8xf32>
    %22 = arith.mulf %20, %3 : vector<16x8xf32>
    %23 = arith.addf %21, %22 : vector<16x8xf32>
    %24 = vector.extract_strided_slice %1 {offsets = [0, 64], sizes = [16, 8], strides = [1, 1]} : vector<16x96xf32> to vector<16x8xf32>
    %25 = arith.truncf %14 : vector<16x8xf32> to vector<16x8xbf16>
    %26 = arith.truncf %23 : vector<16x8xf32> to vector<16x8xbf16>
    %cst_8 = arith.constant dense<0.000000e+00> : vector<16x16xf32>
    %27 = tpu.matmul %25, %26, %cst_8 {dimension_numbers = #tpu.dot_dimension_numbers<[1], [1], [0], [0], [0, 0, 1, 0], [], []>} : vector<16x8xbf16>, vector<16x8xbf16>, vector<16x16xf32> -> vector<16x16xf32>
    %cst_9 = arith.constant dense<0xFF800000> : vector<16xf32>
    %28 = vector.multi_reduction <maximumf>, %27, %cst_9 [1] : vector<16x16xf32> to vector<16xf32>
    %29 = vector.shape_cast %28 : vector<16xf32> to vector<16x1xf32>
    %30 = vector.broadcast %29 : vector<16x1xf32> to vector<16x16xf32>
    %31 = arith.subf %27, %30 : vector<16x16xf32>
    %32 = math.exp %31 : vector<16x16xf32>
    %cst_10 = arith.constant dense<0.000000e+00> : vector<16xf32>
    %33 = vector.multi_reduction <add>, %32, %cst_10 [1] : vector<16x16xf32> to vector<16xf32>
    %34 = vector.shape_cast %33 : vector<16xf32> to vector<16x1xf32>
    %35 = tpu.reciprocal %34 {approx = true} : vector<16x1xf32> -> vector<16x1xf32>
    %36 = vector.broadcast %35 : vector<16x1xf32> to vector<16x16xf32>
    %37 = arith.mulf %32, %36 : vector<16x16xf32>
    %38 = arith.truncf %37 : vector<16x16xf32> to vector<16x16xbf16>
    %39 = arith.truncf %24 : vector<16x8xf32> to vector<16x8xbf16>
    %cst_11 = arith.constant dense<0.000000e+00> : vector<16x8xf32>
    %40 = tpu.matmul %38, %39, %cst_11 {dimension_numbers = #tpu.dot_dimension_numbers<[1], [0], [0], [1], [0, 0, 1, 1], [], []>} : vector<16x16xbf16>, vector<16x8xbf16>, vector<16x8xf32> -> vector<16x8xf32>
    %41 = vector.extract_strided_slice %1 {offsets = [0, 8], sizes = [16, 8], strides = [1, 1]} : vector<16x96xf32> to vector<16x8xf32>
    %42 = vector.extract_strided_slice %41 {offsets = [0, 0], sizes = [16, 4], strides = [1, 1]} : vector<16x8xf32> to vector<16x4xf32>
    %43 = vector.extract_strided_slice %41 {offsets = [0, 4], sizes = [16, 4], strides = [1, 1]} : vector<16x8xf32> to vector<16x4xf32>
    %cst_12 = arith.constant 0.000000e+00 : f32
    %44 = vector.broadcast %cst_12 : f32 to vector<16x4xf32>
    %45 = arith.subf %44, %43 : vector<16x4xf32>
    %46 = tpu.concatenate %45, %42 in 1 : vector<16x4xf32>, vector<16x4xf32> -> vector<16x8xf32>
    %47 = arith.mulf %41, %2 : vector<16x8xf32>
    %48 = arith.mulf %46, %3 : vector<16x8xf32>
    %49 = arith.addf %47, %48 : vector<16x8xf32>
    %cst_13 = arith.constant 0.353553385 : f32
    %50 = vector.broadcast %cst_13 : f32 to vector<16x8xf32>
    %51 = arith.mulf %49, %50 : vector<16x8xf32>
    %52 = vector.extract_strided_slice %1 {offsets = [0, 40], sizes = [16, 8], strides = [1, 1]} : vector<16x96xf32> to vector<16x8xf32>
    %53 = vector.extract_strided_slice %52 {offsets = [0, 0], sizes = [16, 4], strides = [1, 1]} : vector<16x8xf32> to vector<16x4xf32>
    %54 = vector.extract_strided_slice %52 {offsets = [0, 4], sizes = [16, 4], strides = [1, 1]} : vector<16x8xf32> to vector<16x4xf32>
    %cst_14 = arith.constant 0.000000e+00 : f32
    %55 = vector.broadcast %cst_14 : f32 to vector<16x4xf32>
    %56 = arith.subf %55, %54 : vector<16x4xf32>
    %57 = tpu.concatenate %56, %53 in 1 : vector<16x4xf32>, vector<16x4xf32> -> vector<16x8xf32>
    %58 = arith.mulf %52, %2 : vector<16x8xf32>
    %59 = arith.mulf %57, %3 : vector<16x8xf32>
    %60 = arith.addf %58, %59 : vector<16x8xf32>
    %61 = vector.extract_strided_slice %1 {offsets = [0, 72], sizes = [16, 8], strides = [1, 1]} : vector<16x96xf32> to vector<16x8xf32>
    %62 = arith.truncf %51 : vector<16x8xf32> to vector<16x8xbf16>
    %63 = arith.truncf %60 : vector<16x8xf32> to vector<16x8xbf16>
    %cst_15 = arith.constant dense<0.000000e+00> : vector<16x16xf32>
    %64 = tpu.matmul %62, %63, %cst_15 {dimension_numbers = #tpu.dot_dimension_numbers<[1], [1], [0], [0], [0, 0, 1, 0], [], []>} : vector<16x8xbf16>, vector<16x8xbf16>, vector<16x16xf32> -> vector<16x16xf32>
    %cst_16 = arith.constant dense<0xFF800000> : vector<16xf32>
    %65 = vector.multi_reduction <maximumf>, %64, %cst_16 [1] : vector<16x16xf32> to vector<16xf32>
    %66 = vector.shape_cast %65 : vector<16xf32> to vector<16x1xf32>
    %67 = vector.broadcast %66 : vector<16x1xf32> to vector<16x16xf32>
    %68 = arith.subf %64, %67 : vector<16x16xf32>
    %69 = math.exp %68 : vector<16x16xf32>
    %cst_17 = arith.constant dense<0.000000e+00> : vector<16xf32>
    %70 = vector.multi_reduction <add>, %69, %cst_17 [1] : vector<16x16xf32> to vector<16xf32>
    %71 = vector.shape_cast %70 : vector<16xf32> to vector<16x1xf32>
    %72 = tpu.reciprocal %71 {approx = true} : vector<16x1xf32> -> vector<16x1xf32>
    %73 = vector.broadcast %72 : vector<16x1xf32> to vector<16x16xf32>
    %74 = arith.mulf %69, %73 : vector<16x16xf32>
    %75 = arith.truncf %74 : vector<16x16xf32> to vector<16x16xbf16>
    %76 = arith.truncf %61 : vector<16x8xf32> to vector<16x8xbf16>
    %cst_18 = arith.constant dense<0.000000e+00> : vector<16x8xf32>
    %77 = tpu.matmul %75, %76, %cst_18 {dimension_numbers = #tpu.dot_dimension_numbers<[1], [0], [0], [1], [0, 0, 1, 1], [], []>} : vector<16x16xbf16>, vector<16x8xbf16>, vector<16x8xf32> -> vector<16x8xf32>
    %78 = vector.extract_strided_slice %1 {offsets = [0, 16], sizes = [16, 8], strides = [1, 1]} : vector<16x96xf32> to vector<16x8xf32>
    %79 = vector.extract_strided_slice %78 {offsets = [0, 0], sizes = [16, 4], strides = [1, 1]} : vector<16x8xf32> to vector<16x4xf32>
    %80 = vector.extract_strided_slice %78 {offsets = [0, 4], sizes = [16, 4], strides = [1, 1]} : vector<16x8xf32> to vector<16x4xf32>
    %cst_19 = arith.constant 0.000000e+00 : f32
    %81 = vector.broadcast %cst_19 : f32 to vector<16x4xf32>
    %82 = arith.subf %81, %80 : vector<16x4xf32>
    %83 = tpu.concatenate %82, %79 in 1 : vector<16x4xf32>, vector<16x4xf32> -> vector<16x8xf32>
    %84 = arith.mulf %78, %2 : vector<16x8xf32>
    %85 = arith.mulf %83, %3 : vector<16x8xf32>
    %86 = arith.addf %84, %85 : vector<16x8xf32>
    %cst_20 = arith.constant 0.353553385 : f32
    %87 = vector.broadcast %cst_20 : f32 to vector<16x8xf32>
    %88 = arith.mulf %86, %87 : vector<16x8xf32>
    %89 = vector.extract_strided_slice %1 {offsets = [0, 48], sizes = [16, 8], strides = [1, 1]} : vector<16x96xf32> to vector<16x8xf32>
    %90 = vector.extract_strided_slice %89 {offsets = [0, 0], sizes = [16, 4], strides = [1, 1]} : vector<16x8xf32> to vector<16x4xf32>
    %91 = vector.extract_strided_slice %89 {offsets = [0, 4], sizes = [16, 4], strides = [1, 1]} : vector<16x8xf32> to vector<16x4xf32>
    %cst_21 = arith.constant 0.000000e+00 : f32
    %92 = vector.broadcast %cst_21 : f32 to vector<16x4xf32>
    %93 = arith.subf %92, %91 : vector<16x4xf32>
    %94 = tpu.concatenate %93, %90 in 1 : vector<16x4xf32>, vector<16x4xf32> -> vector<16x8xf32>
    %95 = arith.mulf %89, %2 : vector<16x8xf32>
    %96 = arith.mulf %94, %3 : vector<16x8xf32>
    %97 = arith.addf %95, %96 : vector<16x8xf32>
    %98 = vector.extract_strided_slice %1 {offsets = [0, 80], sizes = [16, 8], strides = [1, 1]} : vector<16x96xf32> to vector<16x8xf32>
    %99 = arith.truncf %88 : vector<16x8xf32> to vector<16x8xbf16>
    %100 = arith.truncf %97 : vector<16x8xf32> to vector<16x8xbf16>
    %cst_22 = arith.constant dense<0.000000e+00> : vector<16x16xf32>
    %101 = tpu.matmul %99, %100, %cst_22 {dimension_numbers = #tpu.dot_dimension_numbers<[1], [1], [0], [0], [0, 0, 1, 0], [], []>} : vector<16x8xbf16>, vector<16x8xbf16>, vector<16x16xf32> -> vector<16x16xf32>
    %cst_23 = arith.constant dense<0xFF800000> : vector<16xf32>
    %102 = vector.multi_reduction <maximumf>, %101, %cst_23 [1] : vector<16x16xf32> to vector<16xf32>
    %103 = vector.shape_cast %102 : vector<16xf32> to vector<16x1xf32>
    %104 = vector.broadcast %103 : vector<16x1xf32> to vector<16x16xf32>
    %105 = arith.subf %101, %104 : vector<16x16xf32>
    %106 = math.exp %105 : vector<16x16xf32>
    %cst_24 = arith.constant dense<0.000000e+00> : vector<16xf32>
    %107 = vector.multi_reduction <add>, %106, %cst_24 [1] : vector<16x16xf32> to vector<16xf32>
    %108 = vector.shape_cast %107 : vector<16xf32> to vector<16x1xf32>
    %109 = tpu.reciprocal %108 {approx = true} : vector<16x1xf32> -> vector<16x1xf32>
    %110 = vector.broadcast %109 : vector<16x1xf32> to vector<16x16xf32>
    %111 = arith.mulf %106, %110 : vector<16x16xf32>
    %112 = arith.truncf %111 : vector<16x16xf32> to vector<16x16xbf16>
    %113 = arith.truncf %98 : vector<16x8xf32> to vector<16x8xbf16>
    %cst_25 = arith.constant dense<0.000000e+00> : vector<16x8xf32>
    %114 = tpu.matmul %112, %113, %cst_25 {dimension_numbers = #tpu.dot_dimension_numbers<[1], [0], [0], [1], [0, 0, 1, 1], [], []>} : vector<16x16xbf16>, vector<16x8xbf16>, vector<16x8xf32> -> vector<16x8xf32>
    %115 = vector.extract_strided_slice %1 {offsets = [0, 24], sizes = [16, 8], strides = [1, 1]} : vector<16x96xf32> to vector<16x8xf32>
    %116 = vector.extract_strided_slice %115 {offsets = [0, 0], sizes = [16, 4], strides = [1, 1]} : vector<16x8xf32> to vector<16x4xf32>
    %117 = vector.extract_strided_slice %115 {offsets = [0, 4], sizes = [16, 4], strides = [1, 1]} : vector<16x8xf32> to vector<16x4xf32>
    %cst_26 = arith.constant 0.000000e+00 : f32
    %118 = vector.broadcast %cst_26 : f32 to vector<16x4xf32>
    %119 = arith.subf %118, %117 : vector<16x4xf32>
    %120 = tpu.concatenate %119, %116 in 1 : vector<16x4xf32>, vector<16x4xf32> -> vector<16x8xf32>
    %121 = arith.mulf %115, %2 : vector<16x8xf32>
    %122 = arith.mulf %120, %3 : vector<16x8xf32>
    %123 = arith.addf %121, %122 : vector<16x8xf32>
    %cst_27 = arith.constant 0.353553385 : f32
    %124 = vector.broadcast %cst_27 : f32 to vector<16x8xf32>
    %125 = arith.mulf %123, %124 : vector<16x8xf32>
    %126 = vector.extract_strided_slice %1 {offsets = [0, 56], sizes = [16, 8], strides = [1, 1]} : vector<16x96xf32> to vector<16x8xf32>
    %127 = vector.extract_strided_slice %126 {offsets = [0, 0], sizes = [16, 4], strides = [1, 1]} : vector<16x8xf32> to vector<16x4xf32>
    %128 = vector.extract_strided_slice %126 {offsets = [0, 4], sizes = [16, 4], strides = [1, 1]} : vector<16x8xf32> to vector<16x4xf32>
    %cst_28 = arith.constant 0.000000e+00 : f32
    %129 = vector.broadcast %cst_28 : f32 to vector<16x4xf32>
    %130 = arith.subf %129, %128 : vector<16x4xf32>
    %131 = tpu.concatenate %130, %127 in 1 : vector<16x4xf32>, vector<16x4xf32> -> vector<16x8xf32>
    %132 = arith.mulf %126, %2 : vector<16x8xf32>
    %133 = arith.mulf %131, %3 : vector<16x8xf32>
    %134 = arith.addf %132, %133 : vector<16x8xf32>
    %135 = vector.extract_strided_slice %1 {offsets = [0, 88], sizes = [16, 8], strides = [1, 1]} : vector<16x96xf32> to vector<16x8xf32>
    %136 = arith.truncf %125 : vector<16x8xf32> to vector<16x8xbf16>
    %137 = arith.truncf %134 : vector<16x8xf32> to vector<16x8xbf16>
    %cst_29 = arith.constant dense<0.000000e+00> : vector<16x16xf32>
    %138 = tpu.matmul %136, %137, %cst_29 {dimension_numbers = #tpu.dot_dimension_numbers<[1], [1], [0], [0], [0, 0, 1, 0], [], []>} : vector<16x8xbf16>, vector<16x8xbf16>, vector<16x16xf32> -> vector<16x16xf32>
    %cst_30 = arith.constant dense<0xFF800000> : vector<16xf32>
    %139 = vector.multi_reduction <maximumf>, %138, %cst_30 [1] : vector<16x16xf32> to vector<16xf32>
    %140 = vector.shape_cast %139 : vector<16xf32> to vector<16x1xf32>
    %141 = vector.broadcast %140 : vector<16x1xf32> to vector<16x16xf32>
    %142 = arith.subf %138, %141 : vector<16x16xf32>
    %143 = math.exp %142 : vector<16x16xf32>
    %cst_31 = arith.constant dense<0.000000e+00> : vector<16xf32>
    %144 = vector.multi_reduction <add>, %143, %cst_31 [1] : vector<16x16xf32> to vector<16xf32>
    %145 = vector.shape_cast %144 : vector<16xf32> to vector<16x1xf32>
    %146 = tpu.reciprocal %145 {approx = true} : vector<16x1xf32> -> vector<16x1xf32>
    %147 = vector.broadcast %146 : vector<16x1xf32> to vector<16x16xf32>
    %148 = arith.mulf %143, %147 : vector<16x16xf32>
    %149 = arith.truncf %148 : vector<16x16xf32> to vector<16x16xbf16>
    %150 = arith.truncf %135 : vector<16x8xf32> to vector<16x8xbf16>
    %cst_32 = arith.constant dense<0.000000e+00> : vector<16x8xf32>
    %151 = tpu.matmul %149, %150, %cst_32 {dimension_numbers = #tpu.dot_dimension_numbers<[1], [0], [0], [1], [0, 0, 1, 1], [], []>} : vector<16x16xbf16>, vector<16x8xbf16>, vector<16x8xf32> -> vector<16x8xf32>
    %152 = tpu.concatenate %40, %77, %114, %151 in 1 : vector<16x8xf32>, vector<16x8xf32>, vector<16x8xf32>, vector<16x8xf32> -> vector<16x32xf32>
    %c0_33 = arith.constant 0 : index
    %c0_34 = arith.constant 0 : index
    %c0_35 = arith.constant 0 : index
    %153 = vector.load %arg4[%c0_33, %c0_34, %c0_35] : memref<1x16x32xf32, #tpu.memory_space<vmem>>, vector<1x16x32xf32>
    %154 = vector.shape_cast %153 : vector<1x16x32xf32> to vector<16x32xf32>
    %155 = vector.shape_cast %152 : vector<16x32xf32> to vector<1x16x32xf32>
    tpu.vector_store %arg4[%c0_33, %c0_34, %c0_35], %155 {strides = array<i32>} : memref<1x16x32xf32, #tpu.memory_space<vmem>>, vector<1x16x32xf32>,
    return
  }
  func.func @transform_0(%arg0: i32) -> (i32, i32, i32) {
    %c0_i32 = arith.constant 0 : i32
    %c0_i32_0 = arith.constant 0 : i32
    %c0_i32_1 = arith.constant 0 : i32
    return %arg0, %c0_i32, %c0_i32_0 : i32, i32, i32
  }
  func.func @transform_1(%arg0: i32) -> (i32, i32) {
    %c0_i32 = arith.constant 0 : i32
    %c0_i32_0 = arith.constant 0 : i32
    %c0_i32_1 = arith.constant 0 : i32
    return %c0_i32, %c0_i32_0 : i32, i32
  }
  func.func @transform_2(%arg0: i32) -> (i32, i32) {
    %c0_i32 = arith.constant 0 : i32
    %c0_i32_0 = arith.constant 0 : i32
    %c0_i32_1 = arith.constant 0 : i32
    return %c0_i32, %c0_i32_0 : i32, i32
  }
  func.func @transform_3(%arg0: i32) -> (i32, i32, i32) {
    %c0_i32 = arith.constant 0 : i32
    %c0_i32_0 = arith.constant 0 : i32
    %c0_i32_1 = arith.constant 0 : i32
    return %arg0, %c0_i32, %c0_i32_0 : i32, i32, i32
  }
}

module attributes {stable_mosaic.version = 11 : i64} {
  func.func @_linear_res_kernel(%arg0: i32, %arg1: memref<32x32xf32, #tpu.memory_space<vmem>>, %arg2: memref<32x32xbf16, #tpu.memory_space<vmem>>, %arg3: memref<1x32xf32, #tpu.memory_space<vmem>>, %arg4: memref<32x32xf32, #tpu.memory_space<vmem>>, %arg5: memref<32x32xf32, #tpu.memory_space<vmem>>) attributes {dimension_semantics = [#tpu.dimension_semantics<parallel>], iteration_bounds = array<i64: 1>, scalar_prefetch = 0 : i64, scratch_operands = 0 : i64, tpu.core_type = #tpu.core_type<tc>, window_params = [{transform_indices = @transform_0, window_bounds = array<i64: 32, 32>}, {pipeline_mode = #tpu.pipeline_mode<synchronous>, transform_indices = @transform_1, window_bounds = array<i64: 32, 32>}, {pipeline_mode = #tpu.pipeline_mode<synchronous>, transform_indices = @transform_2, window_bounds = array<i64: 1, 32>}, {transform_indices = @transform_3, window_bounds = array<i64: 32, 32>}, {transform_indices = @transform_4, window_bounds = array<i64: 32, 32>}]} {
    %c0 = arith.constant 0 : index
    %c0_0 = arith.constant 0 : index
    %0 = vector.load %arg1[%c0, %c0_0] : memref<32x32xf32, #tpu.memory_space<vmem>>, vector<32x32xf32>
    %1 = arith.truncf %0 : vector<32x32xf32> to vector<32x32xbf16>
    %c0_1 = arith.constant 0 : index
    %c0_2 = arith.constant 0 : index
    %2 = vector.load %arg2[%c0_1, %c0_2] : memref<32x32xbf16, #tpu.memory_space<vmem>>, vector<32x32xbf16>
    %cst = arith.constant dense<0.000000e+00> : vector<32x32xf32>
    %3 = tpu.matmul %1, %2, %cst {dimension_numbers = #tpu.dot_dimension_numbers<[1], [0], [0], [1], [0, 0, 1, 1], [], []>} : vector<32x32xbf16>, vector<32x32xbf16>, vector<32x32xf32> -> vector<32x32xf32>
    %c0_3 = arith.constant 0 : index
    %c0_4 = arith.constant 0 : index
    %4 = vector.load %arg3[%c0_3, %c0_4] : memref<1x32xf32, #tpu.memory_space<vmem>>, vector<1x32xf32>
    %5 = vector.broadcast %4 : vector<1x32xf32> to vector<32x32xf32>
    %6 = arith.addf %3, %5 : vector<32x32xf32>
    %c0_5 = arith.constant 0 : index
    %c0_6 = arith.constant 0 : index
    %7 = vector.load %arg4[%c0_5, %c0_6] : memref<32x32xf32, #tpu.memory_space<vmem>>, vector<32x32xf32>
    %8 = arith.addf %7, %6 : vector<32x32xf32>
    %c0_7 = arith.constant 0 : index
    %c0_8 = arith.constant 0 : index
    %9 = vector.load %arg5[%c0_7, %c0_8] : memref<32x32xf32, #tpu.memory_space<vmem>>, vector<32x32xf32>
    tpu.vector_store %arg5[%c0_7, %c0_8], %8 {strides = array<i32>} : memref<32x32xf32, #tpu.memory_space<vmem>>, vector<32x32xf32>,
    return
  }
  func.func @transform_0(%arg0: i32) -> (i32, i32) {
    %c0_i32 = arith.constant 0 : i32
    %c0_i32_0 = arith.constant 0 : i32
    return %arg0, %c0_i32 : i32, i32
  }
  func.func @transform_1(%arg0: i32) -> (i32, i32) {
    %c0_i32 = arith.constant 0 : i32
    %c0_i32_0 = arith.constant 0 : i32
    %c0_i32_1 = arith.constant 0 : i32
    return %c0_i32, %c0_i32_0 : i32, i32
  }
  func.func @transform_2(%arg0: i32) -> (i32, i32) {
    %c0_i32 = arith.constant 0 : i32
    %c0_i32_0 = arith.constant 0 : i32
    %c0_i32_1 = arith.constant 0 : i32
    return %c0_i32, %c0_i32_0 : i32, i32
  }
  func.func @transform_3(%arg0: i32) -> (i32, i32) {
    %c0_i32 = arith.constant 0 : i32
    %c0_i32_0 = arith.constant 0 : i32
    return %arg0, %c0_i32 : i32, i32
  }
  func.func @transform_4(%arg0: i32) -> (i32, i32) {
    %c0_i32 = arith.constant 0 : i32
    %c0_i32_0 = arith.constant 0 : i32
    return %arg0, %c0_i32 : i32, i32
  }
}

module attributes {stable_mosaic.version = 11 : i64} {
  func.func @_ln_mlp_res_kernel(%arg0: i32, %arg1: memref<32x32xf32, #tpu.memory_space<vmem>>, %arg2: memref<1x32xf32, #tpu.memory_space<vmem>>, %arg3: memref<1x32xf32, #tpu.memory_space<vmem>>, %arg4: memref<32x128xbf16, #tpu.memory_space<vmem>>, %arg5: memref<1x128xf32, #tpu.memory_space<vmem>>, %arg6: memref<128x32xbf16, #tpu.memory_space<vmem>>, %arg7: memref<1x32xf32, #tpu.memory_space<vmem>>, %arg8: memref<32x32xf32, #tpu.memory_space<vmem>>) attributes {dimension_semantics = [#tpu.dimension_semantics<parallel>], iteration_bounds = array<i64: 1>, scalar_prefetch = 0 : i64, scratch_operands = 0 : i64, tpu.core_type = #tpu.core_type<tc>, window_params = [{transform_indices = @transform_0, window_bounds = array<i64: 32, 32>}, {pipeline_mode = #tpu.pipeline_mode<synchronous>, transform_indices = @transform_1, window_bounds = array<i64: 1, 32>}, {pipeline_mode = #tpu.pipeline_mode<synchronous>, transform_indices = @transform_2, window_bounds = array<i64: 1, 32>}, {pipeline_mode = #tpu.pipeline_mode<synchronous>, transform_indices = @transform_3, window_bounds = array<i64: 32, 128>}, {pipeline_mode = #tpu.pipeline_mode<synchronous>, transform_indices = @transform_4, window_bounds = array<i64: 1, 128>}, {pipeline_mode = #tpu.pipeline_mode<synchronous>, transform_indices = @transform_5, window_bounds = array<i64: 128, 32>}, {pipeline_mode = #tpu.pipeline_mode<synchronous>, transform_indices = @transform_6, window_bounds = array<i64: 1, 32>}, {transform_indices = @transform_7, window_bounds = array<i64: 32, 32>}]} {
    %c0 = arith.constant 0 : index
    %c0_0 = arith.constant 0 : index
    %0 = vector.load %arg1[%c0, %c0_0] : memref<32x32xf32, #tpu.memory_space<vmem>>, vector<32x32xf32>
    %c0_1 = arith.constant 0 : index
    %c0_2 = arith.constant 0 : index
    %1 = vector.load %arg2[%c0_1, %c0_2] : memref<1x32xf32, #tpu.memory_space<vmem>>, vector<1x32xf32>
    %c0_3 = arith.constant 0 : index
    %c0_4 = arith.constant 0 : index
    %2 = vector.load %arg3[%c0_3, %c0_4] : memref<1x32xf32, #tpu.memory_space<vmem>>, vector<1x32xf32>
    %cst = arith.constant dense<0.000000e+00> : vector<32xf32>
    %3 = vector.multi_reduction <add>, %0, %cst [1] : vector<32x32xf32> to vector<32xf32>
    %4 = vector.shape_cast %3 : vector<32xf32> to vector<32x1xf32>
    %cst_5 = arith.constant 3.200000e+01 : f32
    %5 = vector.broadcast %cst_5 : f32 to vector<32x1xf32>
    %6 = arith.divf %4, %5 : vector<32x1xf32>
    %7 = vector.broadcast %6 : vector<32x1xf32> to vector<32x32xf32>
    %8 = arith.subf %0, %7 : vector<32x32xf32>
    %9 = arith.mulf %8, %8 : vector<32x32xf32>
    %cst_6 = arith.constant dense<0.000000e+00> : vector<32xf32>
    %10 = vector.multi_reduction <add>, %9, %cst_6 [1] : vector<32x32xf32> to vector<32xf32>
    %11 = vector.shape_cast %10 : vector<32xf32> to vector<32x1xf32>
    %cst_7 = arith.constant 3.200000e+01 : f32
    %12 = vector.broadcast %cst_7 : f32 to vector<32x1xf32>
    %13 = arith.divf %11, %12 : vector<32x1xf32>
    %14 = vector.broadcast %6 : vector<32x1xf32> to vector<32x32xf32>
    %15 = arith.subf %0, %14 : vector<32x32xf32>
    %cst_8 = arith.constant 9.99999974E-6 : f32
    %16 = vector.broadcast %cst_8 : f32 to vector<32x1xf32>
    %17 = arith.addf %13, %16 : vector<32x1xf32>
    %18 = math.rsqrt %17 : vector<32x1xf32>
    %19 = vector.broadcast %18 : vector<32x1xf32> to vector<32x32xf32>
    %20 = arith.mulf %15, %19 : vector<32x32xf32>
    %21 = vector.broadcast %1 : vector<1x32xf32> to vector<32x32xf32>
    %22 = arith.mulf %20, %21 : vector<32x32xf32>
    %23 = vector.broadcast %2 : vector<1x32xf32> to vector<32x32xf32>
    %24 = arith.addf %22, %23 : vector<32x32xf32>
    %25 = arith.truncf %24 : vector<32x32xf32> to vector<32x32xbf16>
    %c0_9 = arith.constant 0 : index
    %c0_10 = arith.constant 0 : index
    %26 = vector.load %arg4[%c0_9, %c0_10] : memref<32x128xbf16, #tpu.memory_space<vmem>>, vector<32x128xbf16>
    %cst_11 = arith.constant dense<0.000000e+00> : vector<32x128xf32>
    %27 = tpu.matmul %25, %26, %cst_11 {dimension_numbers = #tpu.dot_dimension_numbers<[1], [0], [0], [1], [0, 0, 1, 1], [], []>} : vector<32x32xbf16>, vector<32x128xbf16>, vector<32x128xf32> -> vector<32x128xf32>
    %c0_12 = arith.constant 0 : index
    %c0_13 = arith.constant 0 : index
    %28 = vector.load %arg5[%c0_12, %c0_13] : memref<1x128xf32, #tpu.memory_space<vmem>>, vector<1x128xf32>
    %29 = vector.broadcast %28 : vector<1x128xf32> to vector<32x128xf32>
    %30 = arith.addf %27, %29 : vector<32x128xf32>
    %31 = arith.mulf %30, %30 : vector<32x128xf32>
    %32 = arith.mulf %30, %31 : vector<32x128xf32>
    %cst_14 = arith.constant 4.471500e-02 : f32
    %33 = vector.broadcast %cst_14 : f32 to vector<32x128xf32>
    %34 = arith.mulf %33, %32 : vector<32x128xf32>
    %35 = arith.addf %30, %34 : vector<32x128xf32>
    %cst_15 = arith.constant 0.797884583 : f32
    %36 = vector.broadcast %cst_15 : f32 to vector<32x128xf32>
    %37 = arith.mulf %36, %35 : vector<32x128xf32>
    %38 = math.tanh %37 : vector<32x128xf32>
    %cst_16 = arith.constant 1.000000e+00 : f32
    %39 = vector.broadcast %cst_16 : f32 to vector<32x128xf32>
    %40 = arith.addf %39, %38 : vector<32x128xf32>
    %cst_17 = arith.constant 5.000000e-01 : f32
    %41 = vector.broadcast %cst_17 : f32 to vector<32x128xf32>
    %42 = arith.mulf %41, %40 : vector<32x128xf32>
    %43 = arith.mulf %30, %42 : vector<32x128xf32>
    %44 = arith.truncf %43 : vector<32x128xf32> to vector<32x128xbf16>
    %c0_18 = arith.constant 0 : index
    %c0_19 = arith.constant 0 : index
    %45 = vector.load %arg6[%c0_18, %c0_19] : memref<128x32xbf16, #tpu.memory_space<vmem>>, vector<128x32xbf16>
    %cst_20 = arith.constant dense<0.000000e+00> : vector<32x32xf32>
    %46 = tpu.matmul %44, %45, %cst_20 {dimension_numbers = #tpu.dot_dimension_numbers<[1], [0], [0], [1], [0, 0, 1, 1], [], []>} : vector<32x128xbf16>, vector<128x32xbf16>, vector<32x32xf32> -> vector<32x32xf32>
    %c0_21 = arith.constant 0 : index
    %c0_22 = arith.constant 0 : index
    %47 = vector.load %arg7[%c0_21, %c0_22] : memref<1x32xf32, #tpu.memory_space<vmem>>, vector<1x32xf32>
    %48 = vector.broadcast %47 : vector<1x32xf32> to vector<32x32xf32>
    %49 = arith.addf %46, %48 : vector<32x32xf32>
    %50 = arith.addf %0, %49 : vector<32x32xf32>
    %c0_23 = arith.constant 0 : index
    %c0_24 = arith.constant 0 : index
    %51 = vector.load %arg8[%c0_23, %c0_24] : memref<32x32xf32, #tpu.memory_space<vmem>>, vector<32x32xf32>
    tpu.vector_store %arg8[%c0_23, %c0_24], %50 {strides = array<i32>} : memref<32x32xf32, #tpu.memory_space<vmem>>, vector<32x32xf32>,
    return
  }
  func.func @transform_0(%arg0: i32) -> (i32, i32) {
    %c0_i32 = arith.constant 0 : i32
    %c0_i32_0 = arith.constant 0 : i32
    return %arg0, %c0_i32 : i32, i32
  }
  func.func @transform_1(%arg0: i32) -> (i32, i32) {
    %c0_i32 = arith.constant 0 : i32
    %c0_i32_0 = arith.constant 0 : i32
    %c0_i32_1 = arith.constant 0 : i32
    return %c0_i32, %c0_i32_0 : i32, i32
  }
  func.func @transform_2(%arg0: i32) -> (i32, i32) {
    %c0_i32 = arith.constant 0 : i32
    %c0_i32_0 = arith.constant 0 : i32
    %c0_i32_1 = arith.constant 0 : i32
    return %c0_i32, %c0_i32_0 : i32, i32
  }
  func.func @transform_3(%arg0: i32) -> (i32, i32) {
    %c0_i32 = arith.constant 0 : i32
    %c0_i32_0 = arith.constant 0 : i32
    %c0_i32_1 = arith.constant 0 : i32
    return %c0_i32, %c0_i32_0 : i32, i32
  }
  func.func @transform_4(%arg0: i32) -> (i32, i32) {
    %c0_i32 = arith.constant 0 : i32
    %c0_i32_0 = arith.constant 0 : i32
    %c0_i32_1 = arith.constant 0 : i32
    return %c0_i32, %c0_i32_0 : i32, i32
  }
  func.func @transform_5(%arg0: i32) -> (i32, i32) {
    %c0_i32 = arith.constant 0 : i32
    %c0_i32_0 = arith.constant 0 : i32
    %c0_i32_1 = arith.constant 0 : i32
    return %c0_i32, %c0_i32_0 : i32, i32
  }
  func.func @transform_6(%arg0: i32) -> (i32, i32) {
    %c0_i32 = arith.constant 0 : i32
    %c0_i32_0 = arith.constant 0 : i32
    %c0_i32_1 = arith.constant 0 : i32
    return %c0_i32, %c0_i32_0 : i32, i32
  }
  func.func @transform_7(%arg0: i32) -> (i32, i32) {
    %c0_i32 = arith.constant 0 : i32
    %c0_i32_0 = arith.constant 0 : i32
    return %arg0, %c0_i32 : i32, i32
  }
}

module attributes {stable_mosaic.version = 11 : i64} {
  func.func @_ln_linear_kernel(%arg0: i32, %arg1: memref<32x32xf32, #tpu.memory_space<vmem>>, %arg2: memref<1x32xf32, #tpu.memory_space<vmem>>, %arg3: memref<1x32xf32, #tpu.memory_space<vmem>>, %arg4: memref<32x12xbf16, #tpu.memory_space<vmem>>, %arg5: memref<1x12xf32, #tpu.memory_space<vmem>>, %arg6: memref<32x12xf32, #tpu.memory_space<vmem>>) attributes {dimension_semantics = [#tpu.dimension_semantics<parallel>], iteration_bounds = array<i64: 1>, scalar_prefetch = 0 : i64, scratch_operands = 0 : i64, tpu.core_type = #tpu.core_type<tc>, window_params = [{transform_indices = @transform_0, window_bounds = array<i64: 32, 32>}, {pipeline_mode = #tpu.pipeline_mode<synchronous>, transform_indices = @transform_1, window_bounds = array<i64: 1, 32>}, {pipeline_mode = #tpu.pipeline_mode<synchronous>, transform_indices = @transform_2, window_bounds = array<i64: 1, 32>}, {pipeline_mode = #tpu.pipeline_mode<synchronous>, transform_indices = @transform_3, window_bounds = array<i64: 32, 12>}, {pipeline_mode = #tpu.pipeline_mode<synchronous>, transform_indices = @transform_4, window_bounds = array<i64: 1, 12>}, {transform_indices = @transform_5, window_bounds = array<i64: 32, 12>}]} {
    %c0 = arith.constant 0 : index
    %c0_0 = arith.constant 0 : index
    %0 = vector.load %arg1[%c0, %c0_0] : memref<32x32xf32, #tpu.memory_space<vmem>>, vector<32x32xf32>
    %c0_1 = arith.constant 0 : index
    %c0_2 = arith.constant 0 : index
    %1 = vector.load %arg2[%c0_1, %c0_2] : memref<1x32xf32, #tpu.memory_space<vmem>>, vector<1x32xf32>
    %c0_3 = arith.constant 0 : index
    %c0_4 = arith.constant 0 : index
    %2 = vector.load %arg3[%c0_3, %c0_4] : memref<1x32xf32, #tpu.memory_space<vmem>>, vector<1x32xf32>
    %cst = arith.constant dense<0.000000e+00> : vector<32xf32>
    %3 = vector.multi_reduction <add>, %0, %cst [1] : vector<32x32xf32> to vector<32xf32>
    %4 = vector.shape_cast %3 : vector<32xf32> to vector<32x1xf32>
    %cst_5 = arith.constant 3.200000e+01 : f32
    %5 = vector.broadcast %cst_5 : f32 to vector<32x1xf32>
    %6 = arith.divf %4, %5 : vector<32x1xf32>
    %7 = vector.broadcast %6 : vector<32x1xf32> to vector<32x32xf32>
    %8 = arith.subf %0, %7 : vector<32x32xf32>
    %9 = arith.mulf %8, %8 : vector<32x32xf32>
    %cst_6 = arith.constant dense<0.000000e+00> : vector<32xf32>
    %10 = vector.multi_reduction <add>, %9, %cst_6 [1] : vector<32x32xf32> to vector<32xf32>
    %11 = vector.shape_cast %10 : vector<32xf32> to vector<32x1xf32>
    %cst_7 = arith.constant 3.200000e+01 : f32
    %12 = vector.broadcast %cst_7 : f32 to vector<32x1xf32>
    %13 = arith.divf %11, %12 : vector<32x1xf32>
    %14 = vector.broadcast %6 : vector<32x1xf32> to vector<32x32xf32>
    %15 = arith.subf %0, %14 : vector<32x32xf32>
    %cst_8 = arith.constant 9.99999974E-6 : f32
    %16 = vector.broadcast %cst_8 : f32 to vector<32x1xf32>
    %17 = arith.addf %13, %16 : vector<32x1xf32>
    %18 = math.rsqrt %17 : vector<32x1xf32>
    %19 = vector.broadcast %18 : vector<32x1xf32> to vector<32x32xf32>
    %20 = arith.mulf %15, %19 : vector<32x32xf32>
    %21 = vector.broadcast %1 : vector<1x32xf32> to vector<32x32xf32>
    %22 = arith.mulf %20, %21 : vector<32x32xf32>
    %23 = vector.broadcast %2 : vector<1x32xf32> to vector<32x32xf32>
    %24 = arith.addf %22, %23 : vector<32x32xf32>
    %25 = arith.truncf %24 : vector<32x32xf32> to vector<32x32xbf16>
    %c0_9 = arith.constant 0 : index
    %c0_10 = arith.constant 0 : index
    %26 = vector.load %arg4[%c0_9, %c0_10] : memref<32x12xbf16, #tpu.memory_space<vmem>>, vector<32x12xbf16>
    %cst_11 = arith.constant dense<0.000000e+00> : vector<32x12xf32>
    %27 = tpu.matmul %25, %26, %cst_11 {dimension_numbers = #tpu.dot_dimension_numbers<[1], [0], [0], [1], [0, 0, 1, 1], [], []>} : vector<32x32xbf16>, vector<32x12xbf16>, vector<32x12xf32> -> vector<32x12xf32>
    %c0_12 = arith.constant 0 : index
    %c0_13 = arith.constant 0 : index
    %28 = vector.load %arg5[%c0_12, %c0_13] : memref<1x12xf32, #tpu.memory_space<vmem>>, vector<1x12xf32>
    %29 = vector.broadcast %28 : vector<1x12xf32> to vector<32x12xf32>
    %30 = arith.addf %27, %29 : vector<32x12xf32>
    %c0_14 = arith.constant 0 : index
    %c0_15 = arith.constant 0 : index
    %31 = vector.load %arg6[%c0_14, %c0_15] : memref<32x12xf32, #tpu.memory_space<vmem>>, vector<32x12xf32>
    tpu.vector_store %arg6[%c0_14, %c0_15], %30 {strides = array<i32>} : memref<32x12xf32, #tpu.memory_space<vmem>>, vector<32x12xf32>,
    return
  }
  func.func @transform_0(%arg0: i32) -> (i32, i32) {
    %c0_i32 = arith.constant 0 : i32
    %c0_i32_0 = arith.constant 0 : i32
    return %arg0, %c0_i32 : i32, i32
  }
  func.func @transform_1(%arg0: i32) -> (i32, i32) {
    %c0_i32 = arith.constant 0 : i32
    %c0_i32_0 = arith.constant 0 : i32
    %c0_i32_1 = arith.constant 0 : i32
    return %c0_i32, %c0_i32_0 : i32, i32
  }
  func.func @transform_2(%arg0: i32) -> (i32, i32) {
    %c0_i32 = arith.constant 0 : i32
    %c0_i32_0 = arith.constant 0 : i32
    %c0_i32_1 = arith.constant 0 : i32
    return %c0_i32, %c0_i32_0 : i32, i32
  }
  func.func @transform_3(%arg0: i32) -> (i32, i32) {
    %c0_i32 = arith.constant 0 : i32
    %c0_i32_0 = arith.constant 0 : i32
    %c0_i32_1 = arith.constant 0 : i32
    return %c0_i32, %c0_i32_0 : i32, i32
  }
  func.func @transform_4(%arg0: i32) -> (i32, i32) {
    %c0_i32 = arith.constant 0 : i32
    %c0_i32_0 = arith.constant 0 : i32
    %c0_i32_1 = arith.constant 0 : i32
    return %c0_i32, %c0_i32_0 : i32, i32
  }
  func.func @transform_5(%arg0: i32) -> (i32, i32) {
    %c0_i32 = arith.constant 0 : i32
    %c0_i32_0 = arith.constant 0 : i32
    return %arg0, %c0_i32 : i32, i32
  }
}

module attributes {stable_mosaic.version = 11 : i64} {
  func.func @_conv3x3_kernel(%arg0: i32, %arg1: memref<1x3x10x10xf32, #tpu.memory_space<vmem>>, %arg2: memref<81xf32, #tpu.memory_space<smem>>, %arg3: memref<3xf32, #tpu.memory_space<smem>>, %arg4: memref<1x3x8x8xf32, #tpu.memory_space<vmem>>) attributes {dimension_semantics = [#tpu.dimension_semantics<parallel>], iteration_bounds = array<i64: 2>, scalar_prefetch = 0 : i64, scratch_operands = 0 : i64, tpu.core_type = #tpu.core_type<tc>, window_params = [{transform_indices = @transform_0, window_bounds = array<i64: 1, 3, 10, 10>}, {transform_indices = @transform_1, window_bounds = array<i64: 81>}, {transform_indices = @transform_2, window_bounds = array<i64: 3>}, {transform_indices = @transform_3, window_bounds = array<i64: 1, 3, 8, 8>}]} {
    %c0 = arith.constant 0 : index
    %c0_0 = arith.constant 0 : index
    %c0_1 = arith.constant 0 : index
    %c0_2 = arith.constant 0 : index
    %0 = vector.load %arg1[%c0, %c0_0, %c0_1, %c0_2] : memref<1x3x10x10xf32, #tpu.memory_space<vmem>>, vector<1x3x10x10xf32>
    %1 = vector.shape_cast %0 : vector<1x3x10x10xf32> to vector<3x10x10xf32>
    %2 = vector.extract_strided_slice %1 {offsets = [0, 0, 0], sizes = [1, 8, 8], strides = [1, 1, 1]} : vector<3x10x10xf32> to vector<1x8x8xf32>
    %3 = vector.shape_cast %2 : vector<1x8x8xf32> to vector<8x8xf32>
    %4 = vector.extract_strided_slice %1 {offsets = [0, 0, 1], sizes = [1, 8, 8], strides = [1, 1, 1]} : vector<3x10x10xf32> to vector<1x8x8xf32>
    %5 = vector.shape_cast %4 : vector<1x8x8xf32> to vector<8x8xf32>
    %6 = vector.extract_strided_slice %1 {offsets = [0, 0, 2], sizes = [1, 8, 8], strides = [1, 1, 1]} : vector<3x10x10xf32> to vector<1x8x8xf32>
    %7 = vector.shape_cast %6 : vector<1x8x8xf32> to vector<8x8xf32>
    %8 = vector.extract_strided_slice %1 {offsets = [0, 1, 0], sizes = [1, 8, 8], strides = [1, 1, 1]} : vector<3x10x10xf32> to vector<1x8x8xf32>
    %9 = vector.shape_cast %8 : vector<1x8x8xf32> to vector<8x8xf32>
    %10 = vector.extract_strided_slice %1 {offsets = [0, 1, 1], sizes = [1, 8, 8], strides = [1, 1, 1]} : vector<3x10x10xf32> to vector<1x8x8xf32>
    %11 = vector.shape_cast %10 : vector<1x8x8xf32> to vector<8x8xf32>
    %12 = vector.extract_strided_slice %1 {offsets = [0, 1, 2], sizes = [1, 8, 8], strides = [1, 1, 1]} : vector<3x10x10xf32> to vector<1x8x8xf32>
    %13 = vector.shape_cast %12 : vector<1x8x8xf32> to vector<8x8xf32>
    %14 = vector.extract_strided_slice %1 {offsets = [0, 2, 0], sizes = [1, 8, 8], strides = [1, 1, 1]} : vector<3x10x10xf32> to vector<1x8x8xf32>
    %15 = vector.shape_cast %14 : vector<1x8x8xf32> to vector<8x8xf32>
    %16 = vector.extract_strided_slice %1 {offsets = [0, 2, 1], sizes = [1, 8, 8], strides = [1, 1, 1]} : vector<3x10x10xf32> to vector<1x8x8xf32>
    %17 = vector.shape_cast %16 : vector<1x8x8xf32> to vector<8x8xf32>
    %18 = vector.extract_strided_slice %1 {offsets = [0, 2, 2], sizes = [1, 8, 8], strides = [1, 1, 1]} : vector<3x10x10xf32> to vector<1x8x8xf32>
    %19 = vector.shape_cast %18 : vector<1x8x8xf32> to vector<8x8xf32>
    %20 = vector.extract_strided_slice %1 {offsets = [1, 0, 0], sizes = [1, 8, 8], strides = [1, 1, 1]} : vector<3x10x10xf32> to vector<1x8x8xf32>
    %21 = vector.shape_cast %20 : vector<1x8x8xf32> to vector<8x8xf32>
    %22 = vector.extract_strided_slice %1 {offsets = [1, 0, 1], sizes = [1, 8, 8], strides = [1, 1, 1]} : vector<3x10x10xf32> to vector<1x8x8xf32>
    %23 = vector.shape_cast %22 : vector<1x8x8xf32> to vector<8x8xf32>
    %24 = vector.extract_strided_slice %1 {offsets = [1, 0, 2], sizes = [1, 8, 8], strides = [1, 1, 1]} : vector<3x10x10xf32> to vector<1x8x8xf32>
    %25 = vector.shape_cast %24 : vector<1x8x8xf32> to vector<8x8xf32>
    %26 = vector.extract_strided_slice %1 {offsets = [1, 1, 0], sizes = [1, 8, 8], strides = [1, 1, 1]} : vector<3x10x10xf32> to vector<1x8x8xf32>
    %27 = vector.shape_cast %26 : vector<1x8x8xf32> to vector<8x8xf32>
    %28 = vector.extract_strided_slice %1 {offsets = [1, 1, 1], sizes = [1, 8, 8], strides = [1, 1, 1]} : vector<3x10x10xf32> to vector<1x8x8xf32>
    %29 = vector.shape_cast %28 : vector<1x8x8xf32> to vector<8x8xf32>
    %30 = vector.extract_strided_slice %1 {offsets = [1, 1, 2], sizes = [1, 8, 8], strides = [1, 1, 1]} : vector<3x10x10xf32> to vector<1x8x8xf32>
    %31 = vector.shape_cast %30 : vector<1x8x8xf32> to vector<8x8xf32>
    %32 = vector.extract_strided_slice %1 {offsets = [1, 2, 0], sizes = [1, 8, 8], strides = [1, 1, 1]} : vector<3x10x10xf32> to vector<1x8x8xf32>
    %33 = vector.shape_cast %32 : vector<1x8x8xf32> to vector<8x8xf32>
    %34 = vector.extract_strided_slice %1 {offsets = [1, 2, 1], sizes = [1, 8, 8], strides = [1, 1, 1]} : vector<3x10x10xf32> to vector<1x8x8xf32>
    %35 = vector.shape_cast %34 : vector<1x8x8xf32> to vector<8x8xf32>
    %36 = vector.extract_strided_slice %1 {offsets = [1, 2, 2], sizes = [1, 8, 8], strides = [1, 1, 1]} : vector<3x10x10xf32> to vector<1x8x8xf32>
    %37 = vector.shape_cast %36 : vector<1x8x8xf32> to vector<8x8xf32>
    %38 = vector.extract_strided_slice %1 {offsets = [2, 0, 0], sizes = [1, 8, 8], strides = [1, 1, 1]} : vector<3x10x10xf32> to vector<1x8x8xf32>
    %39 = vector.shape_cast %38 : vector<1x8x8xf32> to vector<8x8xf32>
    %40 = vector.extract_strided_slice %1 {offsets = [2, 0, 1], sizes = [1, 8, 8], strides = [1, 1, 1]} : vector<3x10x10xf32> to vector<1x8x8xf32>
    %41 = vector.shape_cast %40 : vector<1x8x8xf32> to vector<8x8xf32>
    %42 = vector.extract_strided_slice %1 {offsets = [2, 0, 2], sizes = [1, 8, 8], strides = [1, 1, 1]} : vector<3x10x10xf32> to vector<1x8x8xf32>
    %43 = vector.shape_cast %42 : vector<1x8x8xf32> to vector<8x8xf32>
    %44 = vector.extract_strided_slice %1 {offsets = [2, 1, 0], sizes = [1, 8, 8], strides = [1, 1, 1]} : vector<3x10x10xf32> to vector<1x8x8xf32>
    %45 = vector.shape_cast %44 : vector<1x8x8xf32> to vector<8x8xf32>
    %46 = vector.extract_strided_slice %1 {offsets = [2, 1, 1], sizes = [1, 8, 8], strides = [1, 1, 1]} : vector<3x10x10xf32> to vector<1x8x8xf32>
    %47 = vector.shape_cast %46 : vector<1x8x8xf32> to vector<8x8xf32>
    %48 = vector.extract_strided_slice %1 {offsets = [2, 1, 2], sizes = [1, 8, 8], strides = [1, 1, 1]} : vector<3x10x10xf32> to vector<1x8x8xf32>
    %49 = vector.shape_cast %48 : vector<1x8x8xf32> to vector<8x8xf32>
    %50 = vector.extract_strided_slice %1 {offsets = [2, 2, 0], sizes = [1, 8, 8], strides = [1, 1, 1]} : vector<3x10x10xf32> to vector<1x8x8xf32>
    %51 = vector.shape_cast %50 : vector<1x8x8xf32> to vector<8x8xf32>
    %52 = vector.extract_strided_slice %1 {offsets = [2, 2, 1], sizes = [1, 8, 8], strides = [1, 1, 1]} : vector<3x10x10xf32> to vector<1x8x8xf32>
    %53 = vector.shape_cast %52 : vector<1x8x8xf32> to vector<8x8xf32>
    %54 = vector.extract_strided_slice %1 {offsets = [2, 2, 2], sizes = [1, 8, 8], strides = [1, 1, 1]} : vector<3x10x10xf32> to vector<1x8x8xf32>
    %55 = vector.shape_cast %54 : vector<1x8x8xf32> to vector<8x8xf32>
    %c0_3 = arith.constant 0 : index
    %56 = memref.load %arg3[%c0_3] : memref<3xf32, #tpu.memory_space<smem>>
    %57 = vector.broadcast %56 : f32 to vector<8x8xf32>
    %c0_4 = arith.constant 0 : index
    %58 = memref.load %arg2[%c0_4] : memref<81xf32, #tpu.memory_space<smem>>
    %59 = vector.broadcast %58 : f32 to vector<8x8xf32>
    %60 = arith.mulf %3, %59 : vector<8x8xf32>
    %61 = arith.addf %57, %60 : vector<8x8xf32>
    %c1 = arith.constant 1 : index
    %62 = memref.load %arg2[%c1] : memref<81xf32, #tpu.memory_space<smem>>
    %63 = vector.broadcast %62 : f32 to vector<8x8xf32>
    %64 = arith.mulf %5, %63 : vector<8x8xf32>
    %65 = arith.addf %61, %64 : vector<8x8xf32>
    %c2 = arith.constant 2 : index
    %66 = memref.load %arg2[%c2] : memref<81xf32, #tpu.memory_space<smem>>
    %67 = vector.broadcast %66 : f32 to vector<8x8xf32>
    %68 = arith.mulf %7, %67 : vector<8x8xf32>
    %69 = arith.addf %65, %68 : vector<8x8xf32>
    %c3 = arith.constant 3 : index
    %70 = memref.load %arg2[%c3] : memref<81xf32, #tpu.memory_space<smem>>
    %71 = vector.broadcast %70 : f32 to vector<8x8xf32>
    %72 = arith.mulf %9, %71 : vector<8x8xf32>
    %73 = arith.addf %69, %72 : vector<8x8xf32>
    %c4 = arith.constant 4 : index
    %74 = memref.load %arg2[%c4] : memref<81xf32, #tpu.memory_space<smem>>
    %75 = vector.broadcast %74 : f32 to vector<8x8xf32>
    %76 = arith.mulf %11, %75 : vector<8x8xf32>
    %77 = arith.addf %73, %76 : vector<8x8xf32>
    %c5 = arith.constant 5 : index
    %78 = memref.load %arg2[%c5] : memref<81xf32, #tpu.memory_space<smem>>
    %79 = vector.broadcast %78 : f32 to vector<8x8xf32>
    %80 = arith.mulf %13, %79 : vector<8x8xf32>
    %81 = arith.addf %77, %80 : vector<8x8xf32>
    %c6 = arith.constant 6 : index
    %82 = memref.load %arg2[%c6] : memref<81xf32, #tpu.memory_space<smem>>
    %83 = vector.broadcast %82 : f32 to vector<8x8xf32>
    %84 = arith.mulf %15, %83 : vector<8x8xf32>
    %85 = arith.addf %81, %84 : vector<8x8xf32>
    %c7 = arith.constant 7 : index
    %86 = memref.load %arg2[%c7] : memref<81xf32, #tpu.memory_space<smem>>
    %87 = vector.broadcast %86 : f32 to vector<8x8xf32>
    %88 = arith.mulf %17, %87 : vector<8x8xf32>
    %89 = arith.addf %85, %88 : vector<8x8xf32>
    %c8 = arith.constant 8 : index
    %90 = memref.load %arg2[%c8] : memref<81xf32, #tpu.memory_space<smem>>
    %91 = vector.broadcast %90 : f32 to vector<8x8xf32>
    %92 = arith.mulf %19, %91 : vector<8x8xf32>
    %93 = arith.addf %89, %92 : vector<8x8xf32>
    %c9 = arith.constant 9 : index
    %94 = memref.load %arg2[%c9] : memref<81xf32, #tpu.memory_space<smem>>
    %95 = vector.broadcast %94 : f32 to vector<8x8xf32>
    %96 = arith.mulf %21, %95 : vector<8x8xf32>
    %97 = arith.addf %93, %96 : vector<8x8xf32>
    %c10 = arith.constant 10 : index
    %98 = memref.load %arg2[%c10] : memref<81xf32, #tpu.memory_space<smem>>
    %99 = vector.broadcast %98 : f32 to vector<8x8xf32>
    %100 = arith.mulf %23, %99 : vector<8x8xf32>
    %101 = arith.addf %97, %100 : vector<8x8xf32>
    %c11 = arith.constant 11 : index
    %102 = memref.load %arg2[%c11] : memref<81xf32, #tpu.memory_space<smem>>
    %103 = vector.broadcast %102 : f32 to vector<8x8xf32>
    %104 = arith.mulf %25, %103 : vector<8x8xf32>
    %105 = arith.addf %101, %104 : vector<8x8xf32>
    %c12 = arith.constant 12 : index
    %106 = memref.load %arg2[%c12] : memref<81xf32, #tpu.memory_space<smem>>
    %107 = vector.broadcast %106 : f32 to vector<8x8xf32>
    %108 = arith.mulf %27, %107 : vector<8x8xf32>
    %109 = arith.addf %105, %108 : vector<8x8xf32>
    %c13 = arith.constant 13 : index
    %110 = memref.load %arg2[%c13] : memref<81xf32, #tpu.memory_space<smem>>
    %111 = vector.broadcast %110 : f32 to vector<8x8xf32>
    %112 = arith.mulf %29, %111 : vector<8x8xf32>
    %113 = arith.addf %109, %112 : vector<8x8xf32>
    %c14 = arith.constant 14 : index
    %114 = memref.load %arg2[%c14] : memref<81xf32, #tpu.memory_space<smem>>
    %115 = vector.broadcast %114 : f32 to vector<8x8xf32>
    %116 = arith.mulf %31, %115 : vector<8x8xf32>
    %117 = arith.addf %113, %116 : vector<8x8xf32>
    %c15 = arith.constant 15 : index
    %118 = memref.load %arg2[%c15] : memref<81xf32, #tpu.memory_space<smem>>
    %119 = vector.broadcast %118 : f32 to vector<8x8xf32>
    %120 = arith.mulf %33, %119 : vector<8x8xf32>
    %121 = arith.addf %117, %120 : vector<8x8xf32>
    %c16 = arith.constant 16 : index
    %122 = memref.load %arg2[%c16] : memref<81xf32, #tpu.memory_space<smem>>
    %123 = vector.broadcast %122 : f32 to vector<8x8xf32>
    %124 = arith.mulf %35, %123 : vector<8x8xf32>
    %125 = arith.addf %121, %124 : vector<8x8xf32>
    %c17 = arith.constant 17 : index
    %126 = memref.load %arg2[%c17] : memref<81xf32, #tpu.memory_space<smem>>
    %127 = vector.broadcast %126 : f32 to vector<8x8xf32>
    %128 = arith.mulf %37, %127 : vector<8x8xf32>
    %129 = arith.addf %125, %128 : vector<8x8xf32>
    %c18 = arith.constant 18 : index
    %130 = memref.load %arg2[%c18] : memref<81xf32, #tpu.memory_space<smem>>
    %131 = vector.broadcast %130 : f32 to vector<8x8xf32>
    %132 = arith.mulf %39, %131 : vector<8x8xf32>
    %133 = arith.addf %129, %132 : vector<8x8xf32>
    %c19 = arith.constant 19 : index
    %134 = memref.load %arg2[%c19] : memref<81xf32, #tpu.memory_space<smem>>
    %135 = vector.broadcast %134 : f32 to vector<8x8xf32>
    %136 = arith.mulf %41, %135 : vector<8x8xf32>
    %137 = arith.addf %133, %136 : vector<8x8xf32>
    %c20 = arith.constant 20 : index
    %138 = memref.load %arg2[%c20] : memref<81xf32, #tpu.memory_space<smem>>
    %139 = vector.broadcast %138 : f32 to vector<8x8xf32>
    %140 = arith.mulf %43, %139 : vector<8x8xf32>
    %141 = arith.addf %137, %140 : vector<8x8xf32>
    %c21 = arith.constant 21 : index
    %142 = memref.load %arg2[%c21] : memref<81xf32, #tpu.memory_space<smem>>
    %143 = vector.broadcast %142 : f32 to vector<8x8xf32>
    %144 = arith.mulf %45, %143 : vector<8x8xf32>
    %145 = arith.addf %141, %144 : vector<8x8xf32>
    %c22 = arith.constant 22 : index
    %146 = memref.load %arg2[%c22] : memref<81xf32, #tpu.memory_space<smem>>
    %147 = vector.broadcast %146 : f32 to vector<8x8xf32>
    %148 = arith.mulf %47, %147 : vector<8x8xf32>
    %149 = arith.addf %145, %148 : vector<8x8xf32>
    %c23 = arith.constant 23 : index
    %150 = memref.load %arg2[%c23] : memref<81xf32, #tpu.memory_space<smem>>
    %151 = vector.broadcast %150 : f32 to vector<8x8xf32>
    %152 = arith.mulf %49, %151 : vector<8x8xf32>
    %153 = arith.addf %149, %152 : vector<8x8xf32>
    %c24 = arith.constant 24 : index
    %154 = memref.load %arg2[%c24] : memref<81xf32, #tpu.memory_space<smem>>
    %155 = vector.broadcast %154 : f32 to vector<8x8xf32>
    %156 = arith.mulf %51, %155 : vector<8x8xf32>
    %157 = arith.addf %153, %156 : vector<8x8xf32>
    %c25 = arith.constant 25 : index
    %158 = memref.load %arg2[%c25] : memref<81xf32, #tpu.memory_space<smem>>
    %159 = vector.broadcast %158 : f32 to vector<8x8xf32>
    %160 = arith.mulf %53, %159 : vector<8x8xf32>
    %161 = arith.addf %157, %160 : vector<8x8xf32>
    %c26 = arith.constant 26 : index
    %162 = memref.load %arg2[%c26] : memref<81xf32, #tpu.memory_space<smem>>
    %163 = vector.broadcast %162 : f32 to vector<8x8xf32>
    %164 = arith.mulf %55, %163 : vector<8x8xf32>
    %165 = arith.addf %161, %164 : vector<8x8xf32>
    %c1_5 = arith.constant 1 : index
    %166 = memref.load %arg3[%c1_5] : memref<3xf32, #tpu.memory_space<smem>>
    %167 = vector.broadcast %166 : f32 to vector<8x8xf32>
    %c27 = arith.constant 27 : index
    %168 = memref.load %arg2[%c27] : memref<81xf32, #tpu.memory_space<smem>>
    %169 = vector.broadcast %168 : f32 to vector<8x8xf32>
    %170 = arith.mulf %3, %169 : vector<8x8xf32>
    %171 = arith.addf %167, %170 : vector<8x8xf32>
    %c28 = arith.constant 28 : index
    %172 = memref.load %arg2[%c28] : memref<81xf32, #tpu.memory_space<smem>>
    %173 = vector.broadcast %172 : f32 to vector<8x8xf32>
    %174 = arith.mulf %5, %173 : vector<8x8xf32>
    %175 = arith.addf %171, %174 : vector<8x8xf32>
    %c29 = arith.constant 29 : index
    %176 = memref.load %arg2[%c29] : memref<81xf32, #tpu.memory_space<smem>>
    %177 = vector.broadcast %176 : f32 to vector<8x8xf32>
    %178 = arith.mulf %7, %177 : vector<8x8xf32>
    %179 = arith.addf %175, %178 : vector<8x8xf32>
    %c30 = arith.constant 30 : index
    %180 = memref.load %arg2[%c30] : memref<81xf32, #tpu.memory_space<smem>>
    %181 = vector.broadcast %180 : f32 to vector<8x8xf32>
    %182 = arith.mulf %9, %181 : vector<8x8xf32>
    %183 = arith.addf %179, %182 : vector<8x8xf32>
    %c31 = arith.constant 31 : index
    %184 = memref.load %arg2[%c31] : memref<81xf32, #tpu.memory_space<smem>>
    %185 = vector.broadcast %184 : f32 to vector<8x8xf32>
    %186 = arith.mulf %11, %185 : vector<8x8xf32>
    %187 = arith.addf %183, %186 : vector<8x8xf32>
    %c32 = arith.constant 32 : index
    %188 = memref.load %arg2[%c32] : memref<81xf32, #tpu.memory_space<smem>>
    %189 = vector.broadcast %188 : f32 to vector<8x8xf32>
    %190 = arith.mulf %13, %189 : vector<8x8xf32>
    %191 = arith.addf %187, %190 : vector<8x8xf32>
    %c33 = arith.constant 33 : index
    %192 = memref.load %arg2[%c33] : memref<81xf32, #tpu.memory_space<smem>>
    %193 = vector.broadcast %192 : f32 to vector<8x8xf32>
    %194 = arith.mulf %15, %193 : vector<8x8xf32>
    %195 = arith.addf %191, %194 : vector<8x8xf32>
    %c34 = arith.constant 34 : index
    %196 = memref.load %arg2[%c34] : memref<81xf32, #tpu.memory_space<smem>>
    %197 = vector.broadcast %196 : f32 to vector<8x8xf32>
    %198 = arith.mulf %17, %197 : vector<8x8xf32>
    %199 = arith.addf %195, %198 : vector<8x8xf32>
    %c35 = arith.constant 35 : index
    %200 = memref.load %arg2[%c35] : memref<81xf32, #tpu.memory_space<smem>>
    %201 = vector.broadcast %200 : f32 to vector<8x8xf32>
    %202 = arith.mulf %19, %201 : vector<8x8xf32>
    %203 = arith.addf %199, %202 : vector<8x8xf32>
    %c36 = arith.constant 36 : index
    %204 = memref.load %arg2[%c36] : memref<81xf32, #tpu.memory_space<smem>>
    %205 = vector.broadcast %204 : f32 to vector<8x8xf32>
    %206 = arith.mulf %21, %205 : vector<8x8xf32>
    %207 = arith.addf %203, %206 : vector<8x8xf32>
    %c37 = arith.constant 37 : index
    %208 = memref.load %arg2[%c37] : memref<81xf32, #tpu.memory_space<smem>>
    %209 = vector.broadcast %208 : f32 to vector<8x8xf32>
    %210 = arith.mulf %23, %209 : vector<8x8xf32>
    %211 = arith.addf %207, %210 : vector<8x8xf32>
    %c38 = arith.constant 38 : index
    %212 = memref.load %arg2[%c38] : memref<81xf32, #tpu.memory_space<smem>>
    %213 = vector.broadcast %212 : f32 to vector<8x8xf32>
    %214 = arith.mulf %25, %213 : vector<8x8xf32>
    %215 = arith.addf %211, %214 : vector<8x8xf32>
    %c39 = arith.constant 39 : index
    %216 = memref.load %arg2[%c39] : memref<81xf32, #tpu.memory_space<smem>>
    %217 = vector.broadcast %216 : f32 to vector<8x8xf32>
    %218 = arith.mulf %27, %217 : vector<8x8xf32>
    %219 = arith.addf %215, %218 : vector<8x8xf32>
    %c40 = arith.constant 40 : index
    %220 = memref.load %arg2[%c40] : memref<81xf32, #tpu.memory_space<smem>>
    %221 = vector.broadcast %220 : f32 to vector<8x8xf32>
    %222 = arith.mulf %29, %221 : vector<8x8xf32>
    %223 = arith.addf %219, %222 : vector<8x8xf32>
    %c41 = arith.constant 41 : index
    %224 = memref.load %arg2[%c41] : memref<81xf32, #tpu.memory_space<smem>>
    %225 = vector.broadcast %224 : f32 to vector<8x8xf32>
    %226 = arith.mulf %31, %225 : vector<8x8xf32>
    %227 = arith.addf %223, %226 : vector<8x8xf32>
    %c42 = arith.constant 42 : index
    %228 = memref.load %arg2[%c42] : memref<81xf32, #tpu.memory_space<smem>>
    %229 = vector.broadcast %228 : f32 to vector<8x8xf32>
    %230 = arith.mulf %33, %229 : vector<8x8xf32>
    %231 = arith.addf %227, %230 : vector<8x8xf32>
    %c43 = arith.constant 43 : index
    %232 = memref.load %arg2[%c43] : memref<81xf32, #tpu.memory_space<smem>>
    %233 = vector.broadcast %232 : f32 to vector<8x8xf32>
    %234 = arith.mulf %35, %233 : vector<8x8xf32>
    %235 = arith.addf %231, %234 : vector<8x8xf32>
    %c44 = arith.constant 44 : index
    %236 = memref.load %arg2[%c44] : memref<81xf32, #tpu.memory_space<smem>>
    %237 = vector.broadcast %236 : f32 to vector<8x8xf32>
    %238 = arith.mulf %37, %237 : vector<8x8xf32>
    %239 = arith.addf %235, %238 : vector<8x8xf32>
    %c45 = arith.constant 45 : index
    %240 = memref.load %arg2[%c45] : memref<81xf32, #tpu.memory_space<smem>>
    %241 = vector.broadcast %240 : f32 to vector<8x8xf32>
    %242 = arith.mulf %39, %241 : vector<8x8xf32>
    %243 = arith.addf %239, %242 : vector<8x8xf32>
    %c46 = arith.constant 46 : index
    %244 = memref.load %arg2[%c46] : memref<81xf32, #tpu.memory_space<smem>>
    %245 = vector.broadcast %244 : f32 to vector<8x8xf32>
    %246 = arith.mulf %41, %245 : vector<8x8xf32>
    %247 = arith.addf %243, %246 : vector<8x8xf32>
    %c47 = arith.constant 47 : index
    %248 = memref.load %arg2[%c47] : memref<81xf32, #tpu.memory_space<smem>>
    %249 = vector.broadcast %248 : f32 to vector<8x8xf32>
    %250 = arith.mulf %43, %249 : vector<8x8xf32>
    %251 = arith.addf %247, %250 : vector<8x8xf32>
    %c48 = arith.constant 48 : index
    %252 = memref.load %arg2[%c48] : memref<81xf32, #tpu.memory_space<smem>>
    %253 = vector.broadcast %252 : f32 to vector<8x8xf32>
    %254 = arith.mulf %45, %253 : vector<8x8xf32>
    %255 = arith.addf %251, %254 : vector<8x8xf32>
    %c49 = arith.constant 49 : index
    %256 = memref.load %arg2[%c49] : memref<81xf32, #tpu.memory_space<smem>>
    %257 = vector.broadcast %256 : f32 to vector<8x8xf32>
    %258 = arith.mulf %47, %257 : vector<8x8xf32>
    %259 = arith.addf %255, %258 : vector<8x8xf32>
    %c50 = arith.constant 50 : index
    %260 = memref.load %arg2[%c50] : memref<81xf32, #tpu.memory_space<smem>>
    %261 = vector.broadcast %260 : f32 to vector<8x8xf32>
    %262 = arith.mulf %49, %261 : vector<8x8xf32>
    %263 = arith.addf %259, %262 : vector<8x8xf32>
    %c51 = arith.constant 51 : index
    %264 = memref.load %arg2[%c51] : memref<81xf32, #tpu.memory_space<smem>>
    %265 = vector.broadcast %264 : f32 to vector<8x8xf32>
    %266 = arith.mulf %51, %265 : vector<8x8xf32>
    %267 = arith.addf %263, %266 : vector<8x8xf32>
    %c52 = arith.constant 52 : index
    %268 = memref.load %arg2[%c52] : memref<81xf32, #tpu.memory_space<smem>>
    %269 = vector.broadcast %268 : f32 to vector<8x8xf32>
    %270 = arith.mulf %53, %269 : vector<8x8xf32>
    %271 = arith.addf %267, %270 : vector<8x8xf32>
    %c53 = arith.constant 53 : index
    %272 = memref.load %arg2[%c53] : memref<81xf32, #tpu.memory_space<smem>>
    %273 = vector.broadcast %272 : f32 to vector<8x8xf32>
    %274 = arith.mulf %55, %273 : vector<8x8xf32>
    %275 = arith.addf %271, %274 : vector<8x8xf32>
    %c2_6 = arith.constant 2 : index
    %276 = memref.load %arg3[%c2_6] : memref<3xf32, #tpu.memory_space<smem>>
    %277 = vector.broadcast %276 : f32 to vector<8x8xf32>
    %c54 = arith.constant 54 : index
    %278 = memref.load %arg2[%c54] : memref<81xf32, #tpu.memory_space<smem>>
    %279 = vector.broadcast %278 : f32 to vector<8x8xf32>
    %280 = arith.mulf %3, %279 : vector<8x8xf32>
    %281 = arith.addf %277, %280 : vector<8x8xf32>
    %c55 = arith.constant 55 : index
    %282 = memref.load %arg2[%c55] : memref<81xf32, #tpu.memory_space<smem>>
    %283 = vector.broadcast %282 : f32 to vector<8x8xf32>
    %284 = arith.mulf %5, %283 : vector<8x8xf32>
    %285 = arith.addf %281, %284 : vector<8x8xf32>
    %c56 = arith.constant 56 : index
    %286 = memref.load %arg2[%c56] : memref<81xf32, #tpu.memory_space<smem>>
    %287 = vector.broadcast %286 : f32 to vector<8x8xf32>
    %288 = arith.mulf %7, %287 : vector<8x8xf32>
    %289 = arith.addf %285, %288 : vector<8x8xf32>
    %c57 = arith.constant 57 : index
    %290 = memref.load %arg2[%c57] : memref<81xf32, #tpu.memory_space<smem>>
    %291 = vector.broadcast %290 : f32 to vector<8x8xf32>
    %292 = arith.mulf %9, %291 : vector<8x8xf32>
    %293 = arith.addf %289, %292 : vector<8x8xf32>
    %c58 = arith.constant 58 : index
    %294 = memref.load %arg2[%c58] : memref<81xf32, #tpu.memory_space<smem>>
    %295 = vector.broadcast %294 : f32 to vector<8x8xf32>
    %296 = arith.mulf %11, %295 : vector<8x8xf32>
    %297 = arith.addf %293, %296 : vector<8x8xf32>
    %c59 = arith.constant 59 : index
    %298 = memref.load %arg2[%c59] : memref<81xf32, #tpu.memory_space<smem>>
    %299 = vector.broadcast %298 : f32 to vector<8x8xf32>
    %300 = arith.mulf %13, %299 : vector<8x8xf32>
    %301 = arith.addf %297, %300 : vector<8x8xf32>
    %c60 = arith.constant 60 : index
    %302 = memref.load %arg2[%c60] : memref<81xf32, #tpu.memory_space<smem>>
    %303 = vector.broadcast %302 : f32 to vector<8x8xf32>
    %304 = arith.mulf %15, %303 : vector<8x8xf32>
    %305 = arith.addf %301, %304 : vector<8x8xf32>
    %c61 = arith.constant 61 : index
    %306 = memref.load %arg2[%c61] : memref<81xf32, #tpu.memory_space<smem>>
    %307 = vector.broadcast %306 : f32 to vector<8x8xf32>
    %308 = arith.mulf %17, %307 : vector<8x8xf32>
    %309 = arith.addf %305, %308 : vector<8x8xf32>
    %c62 = arith.constant 62 : index
    %310 = memref.load %arg2[%c62] : memref<81xf32, #tpu.memory_space<smem>>
    %311 = vector.broadcast %310 : f32 to vector<8x8xf32>
    %312 = arith.mulf %19, %311 : vector<8x8xf32>
    %313 = arith.addf %309, %312 : vector<8x8xf32>
    %c63 = arith.constant 63 : index
    %314 = memref.load %arg2[%c63] : memref<81xf32, #tpu.memory_space<smem>>
    %315 = vector.broadcast %314 : f32 to vector<8x8xf32>
    %316 = arith.mulf %21, %315 : vector<8x8xf32>
    %317 = arith.addf %313, %316 : vector<8x8xf32>
    %c64 = arith.constant 64 : index
    %318 = memref.load %arg2[%c64] : memref<81xf32, #tpu.memory_space<smem>>
    %319 = vector.broadcast %318 : f32 to vector<8x8xf32>
    %320 = arith.mulf %23, %319 : vector<8x8xf32>
    %321 = arith.addf %317, %320 : vector<8x8xf32>
    %c65 = arith.constant 65 : index
    %322 = memref.load %arg2[%c65] : memref<81xf32, #tpu.memory_space<smem>>
    %323 = vector.broadcast %322 : f32 to vector<8x8xf32>
    %324 = arith.mulf %25, %323 : vector<8x8xf32>
    %325 = arith.addf %321, %324 : vector<8x8xf32>
    %c66 = arith.constant 66 : index
    %326 = memref.load %arg2[%c66] : memref<81xf32, #tpu.memory_space<smem>>
    %327 = vector.broadcast %326 : f32 to vector<8x8xf32>
    %328 = arith.mulf %27, %327 : vector<8x8xf32>
    %329 = arith.addf %325, %328 : vector<8x8xf32>
    %c67 = arith.constant 67 : index
    %330 = memref.load %arg2[%c67] : memref<81xf32, #tpu.memory_space<smem>>
    %331 = vector.broadcast %330 : f32 to vector<8x8xf32>
    %332 = arith.mulf %29, %331 : vector<8x8xf32>
    %333 = arith.addf %329, %332 : vector<8x8xf32>
    %c68 = arith.constant 68 : index
    %334 = memref.load %arg2[%c68] : memref<81xf32, #tpu.memory_space<smem>>
    %335 = vector.broadcast %334 : f32 to vector<8x8xf32>
    %336 = arith.mulf %31, %335 : vector<8x8xf32>
    %337 = arith.addf %333, %336 : vector<8x8xf32>
    %c69 = arith.constant 69 : index
    %338 = memref.load %arg2[%c69] : memref<81xf32, #tpu.memory_space<smem>>
    %339 = vector.broadcast %338 : f32 to vector<8x8xf32>
    %340 = arith.mulf %33, %339 : vector<8x8xf32>
    %341 = arith.addf %337, %340 : vector<8x8xf32>
    %c70 = arith.constant 70 : index
    %342 = memref.load %arg2[%c70] : memref<81xf32, #tpu.memory_space<smem>>
    %343 = vector.broadcast %342 : f32 to vector<8x8xf32>
    %344 = arith.mulf %35, %343 : vector<8x8xf32>
    %345 = arith.addf %341, %344 : vector<8x8xf32>
    %c71 = arith.constant 71 : index
    %346 = memref.load %arg2[%c71] : memref<81xf32, #tpu.memory_space<smem>>
    %347 = vector.broadcast %346 : f32 to vector<8x8xf32>
    %348 = arith.mulf %37, %347 : vector<8x8xf32>
    %349 = arith.addf %345, %348 : vector<8x8xf32>
    %c72 = arith.constant 72 : index
    %350 = memref.load %arg2[%c72] : memref<81xf32, #tpu.memory_space<smem>>
    %351 = vector.broadcast %350 : f32 to vector<8x8xf32>
    %352 = arith.mulf %39, %351 : vector<8x8xf32>
    %353 = arith.addf %349, %352 : vector<8x8xf32>
    %c73 = arith.constant 73 : index
    %354 = memref.load %arg2[%c73] : memref<81xf32, #tpu.memory_space<smem>>
    %355 = vector.broadcast %354 : f32 to vector<8x8xf32>
    %356 = arith.mulf %41, %355 : vector<8x8xf32>
    %357 = arith.addf %353, %356 : vector<8x8xf32>
    %c74 = arith.constant 74 : index
    %358 = memref.load %arg2[%c74] : memref<81xf32, #tpu.memory_space<smem>>
    %359 = vector.broadcast %358 : f32 to vector<8x8xf32>
    %360 = arith.mulf %43, %359 : vector<8x8xf32>
    %361 = arith.addf %357, %360 : vector<8x8xf32>
    %c75 = arith.constant 75 : index
    %362 = memref.load %arg2[%c75] : memref<81xf32, #tpu.memory_space<smem>>
    %363 = vector.broadcast %362 : f32 to vector<8x8xf32>
    %364 = arith.mulf %45, %363 : vector<8x8xf32>
    %365 = arith.addf %361, %364 : vector<8x8xf32>
    %c76 = arith.constant 76 : index
    %366 = memref.load %arg2[%c76] : memref<81xf32, #tpu.memory_space<smem>>
    %367 = vector.broadcast %366 : f32 to vector<8x8xf32>
    %368 = arith.mulf %47, %367 : vector<8x8xf32>
    %369 = arith.addf %365, %368 : vector<8x8xf32>
    %c77 = arith.constant 77 : index
    %370 = memref.load %arg2[%c77] : memref<81xf32, #tpu.memory_space<smem>>
    %371 = vector.broadcast %370 : f32 to vector<8x8xf32>
    %372 = arith.mulf %49, %371 : vector<8x8xf32>
    %373 = arith.addf %369, %372 : vector<8x8xf32>
    %c78 = arith.constant 78 : index
    %374 = memref.load %arg2[%c78] : memref<81xf32, #tpu.memory_space<smem>>
    %375 = vector.broadcast %374 : f32 to vector<8x8xf32>
    %376 = arith.mulf %51, %375 : vector<8x8xf32>
    %377 = arith.addf %373, %376 : vector<8x8xf32>
    %c79 = arith.constant 79 : index
    %378 = memref.load %arg2[%c79] : memref<81xf32, #tpu.memory_space<smem>>
    %379 = vector.broadcast %378 : f32 to vector<8x8xf32>
    %380 = arith.mulf %53, %379 : vector<8x8xf32>
    %381 = arith.addf %377, %380 : vector<8x8xf32>
    %c80 = arith.constant 80 : index
    %382 = memref.load %arg2[%c80] : memref<81xf32, #tpu.memory_space<smem>>
    %383 = vector.broadcast %382 : f32 to vector<8x8xf32>
    %384 = arith.mulf %55, %383 : vector<8x8xf32>
    %385 = arith.addf %381, %384 : vector<8x8xf32>
    %386 = vector.shape_cast %165 : vector<8x8xf32> to vector<1x8x8xf32>
    %387 = vector.shape_cast %275 : vector<8x8xf32> to vector<1x8x8xf32>
    %388 = vector.shape_cast %385 : vector<8x8xf32> to vector<1x8x8xf32>
    %389 = tpu.concatenate %386, %387, %388 in 0 : vector<1x8x8xf32>, vector<1x8x8xf32>, vector<1x8x8xf32> -> vector<3x8x8xf32>
    %c0_7 = arith.constant 0 : index
    %c0_8 = arith.constant 0 : index
    %c0_9 = arith.constant 0 : index
    %c0_10 = arith.constant 0 : index
    %390 = vector.load %arg4[%c0_7, %c0_8, %c0_9, %c0_10] : memref<1x3x8x8xf32, #tpu.memory_space<vmem>>, vector<1x3x8x8xf32>
    %391 = vector.shape_cast %390 : vector<1x3x8x8xf32> to vector<3x8x8xf32>
    %392 = vector.shape_cast %389 : vector<3x8x8xf32> to vector<1x3x8x8xf32>
    tpu.vector_store %arg4[%c0_7, %c0_8, %c0_9, %c0_10], %392 {strides = array<i32>} : memref<1x3x8x8xf32, #tpu.memory_space<vmem>>, vector<1x3x8x8xf32>,
    return
  }
  func.func @transform_0(%arg0: i32) -> (i32, i32, i32, i32) {
    %c0_i32 = arith.constant 0 : i32
    %c0_i32_0 = arith.constant 0 : i32
    %c0_i32_1 = arith.constant 0 : i32
    %c0_i32_2 = arith.constant 0 : i32
    return %arg0, %c0_i32, %c0_i32_0, %c0_i32_1 : i32, i32, i32, i32
  }
  func.func @transform_1(%arg0: i32) -> i32 {
    %c0_i32 = arith.constant 0 : i32
    %c0_i32_0 = arith.constant 0 : i32
    return %c0_i32 : i32
  }
  func.func @transform_2(%arg0: i32) -> i32 {
    %c0_i32 = arith.constant 0 : i32
    %c0_i32_0 = arith.constant 0 : i32
    return %c0_i32 : i32
  }
  func.func @transform_3(%arg0: i32) -> (i32, i32, i32, i32) {
    %c0_i32 = arith.constant 0 : i32
    %c0_i32_0 = arith.constant 0 : i32
    %c0_i32_1 = arith.constant 0 : i32
    %c0_i32_2 = arith.constant 0 : i32
    return %arg0, %c0_i32, %c0_i32_0, %c0_i32_1 : i32, i32, i32, i32
  }
}

</mosaic_0001>

<llo_original>
// kernel: _lambda_.11
$region0: #{_lambda_.11}
  #allocation0 [shape = 'u32[]', space=smem, size = 0x4, offset = 0x4, fixed_abs, tag = 'smem constant byte address 0x4 - core index']
  #allocation1 [shape = 'u32[72,128]{1,0:T(1,128)}', space=vmem, size = 0x9000, scoped, tag = 'internal scratch']
  %s0 = inlined_call_operand.vmem [shape: f32[32,48], index: 0, kind: input, shape index: {}]
  %s1 = inlined_call_operand.vmem [shape: bf16[48,32], index: 1, kind: input, shape index: {}]
  %s2 = inlined_call_operand.vmem [shape: f32[1,32], index: 2, kind: input, shape index: {}]
  %s3 = inlined_call_operand.vmem [shape: f32[1,32], index: 3, kind: input, shape index: {}]
  %s4 = inlined_call_operand.vmem [shape: f32[1,32], index: 4, kind: input, shape index: {}]
  %s5 = inlined_call_operand.vmem [shape: f32[32,32], index: 5, kind: output, shape index: {}]
  %s6 = sld [smem:[#allocation0]]
  $region30: #{_lambda_.11} parent=0
    _
  %s8 = ssub.s32 1, %s6
  %s9 = scalar_select 0, %s8, %s6
  // Predicated region
  $region2: #{_lambda_.11} parent=0 // pred_check
    _
  $region3: #{_lambda_.11} parent=0 // pred_check_branch
    %11 = sbr.rel (0) target = $region5
  $region4: #{_lambda_.11} parent=0 // pred_region
    _
  $region5: #{_lambda_.11} parent=0 // pred_fallthru
    _
  // Predicated region
  $region6: #{_lambda_.11} parent=0 // pred_check
    _
  $region7: #{_lambda_.11} parent=0 // pred_check_branch
    %13 = sbr.rel (0) target = $region9
  $region8: #{_lambda_.11} parent=0 // pred_region
    _
  $region9: #{_lambda_.11} parent=0 // pred_fallthru
    _
  // Predicated region
  $region10: #{_lambda_.11} parent=0 // pred_check
    _
  $region11: #{_lambda_.11} parent=0 // pred_check_branch
    %15 = sbr.rel (0) target = $region13
  $region12: #{_lambda_.11} parent=0 // pred_region
    _
  $region13: #{_lambda_.11} parent=0 // pred_fallthru
    _
  // Predicated region
  $region14: #{_lambda_.11} parent=0 // pred_check
    _
  $region15: #{_lambda_.11} parent=0 // pred_check_branch
    %17 = sbr.rel (0) target = $region17
  $region16: #{_lambda_.11} parent=0 // pred_region
    _
  $region17: #{_lambda_.11} parent=0 // pred_fallthru
    _
  // Predicated region
  $region18: #{_lambda_.11} parent=0 // pred_check
    _
  $region19: #{_lambda_.11} parent=0 // pred_check_branch
    %19 = sbr.rel (0) target = $region21
  $region20: #{_lambda_.11} parent=0 // pred_region
    _
  $region21: #{_lambda_.11} parent=0 // pred_fallthru
    _
  %v21 = vld [vmem:[%s0] sm:$0xff]
  %v22 = vld [vmem:[%s0 + $0x8] sm:$0xff]
  %v23 = vld [vmem:[%s0 + $0x10] sm:$0xff]
  %v24 = vld [vmem:[%s0 + $0x18] sm:$0xff]
  %v25 = vpack.c.bf16 %v22, %v21
  %v26 = vpack.c.bf16 %v24, %v23
  %v27 = vld [vmem:[%s1] sm:$0xf]
  %v28 = vld [vmem:[%s1 + $0x4] sm:$0xf]
  %v29 = vld [vmem:[%s1 + $0x8] sm:$0xf]
  %v30 = vld [vmem:[%s1 + $0xc] sm:$0xf]
  %v31 = vld [vmem:[%s1 + $0x10] sm:$0xf]
  %v32 = vld [vmem:[%s1 + $0x14] sm:$0xf]
  %v33 = vld [vmem:[%s2] sm:$0x1]
  %v35 = vperm.slane %v33, 0
  %v43 = vunpack.c.l.b16 %v27
  %v44 = vunpack.c.l.b16 %v28
  %v45 = vunpack.c.l.b16 %v29
  %v46 = vunpack.c.l.b16 %v30
  %v47 = vunpack.c.l.b16 %v31
  %v48 = vunpack.c.l.b16 %v32
  %v49 = vpack.c.b16 %v44, %v43
  %v50 = vpack.c.b16 %v46, %v45
  %v51 = vpack.c.b16 %v48, %v47
  %vm55 = vcmask 392192
  %v57 = vsel %vm55, %v25, 0
  %v60 = vsel %vm55, %v26, 0
  %62 = vmatpush.bf16.msra.mxu0 0
  %63 = vmatpush.bf16.msra.mxu0 0
  %64 = vmatpush.bf16.msra.mxu0 0
  %65 = vmatpush.bf16.msra.mxu0 0
  %66 = vmatpush.bf16.msra.mxu0 0
  %67 = vmatpush.bf16.msra.mxu0 %v51
  %68 = vmatpush.bf16.msra.mxu0 %v50
  %69 = vmatpush.bf16.msra.mxu0 %v49
  %70 = vmatmul.bf16.gmra.mxu0 %v57
  %v71 = vpop.f32.mrf.mxu0
  %v72 = vadd.f32 %v35, %v71
  %v73 = vpop.f32.mrf.mxu0
  %v74 = vadd.f32 %v35, %v73
  %75 = vmatmul.bf16.gmra.mxu0 %v60
  %v76 = vpop.f32.mrf.mxu0
  %v77 = vadd.f32 %v35, %v76
  %v78 = vpop.f32.mrf.mxu0
  %v79 = vadd.f32 %v35, %v78
  %80 = vdwg.mxu0
  %v81 = vld [vmem:[%s3] sm:$0x1]
  %v82 = vld [vmem:[%s4] sm:$0x1]
  %vm83 = vcmask 261120
  %v84 = vsel %vm83, %v72, 0.0
  %85 = vadd.xlane.f32.xlu0 %v84
  %v86 = vpop.xlane.xlu0 %85
  %v87 = vsel %vm83, %v74, 0.0
  %88 = vadd.xlane.f32.xlu0 %v87
  %v89 = vpop.xlane.xlu0 %88
  %v90 = vsel %vm83, %v77, 0.0
  %91 = vadd.xlane.f32.xlu0 %v90
  %v92 = vpop.xlane.xlu0 %91
  %v93 = vsel %vm83, %v79, 0.0
  %94 = vadd.xlane.f32.xlu0 %v93
  %v95 = vpop.xlane.xlu0 %94
  %v96 = vrcp.pop 32.0
  %v97 = vmul.f32 32.0, %v96
  %v98 = vsub.f32 1.0, %v97
  %v99 = vmul.f32 %v96, %v98
  %v100 = vadd.f32 %v96, %v99
  %vm101 = vweird.f32 %v96
  %v102 = vsel %vm101, %v96, %v100
  %v103 = vmul.f32 %v86, %v102
  %v104 = vmul.f32 %v89, %v102
  %v105 = vmul.f32 %v92, %v102
  %v106 = vmul.f32 %v95, %v102
  %v107 = vsub.f32 %v72, %v103
  %v108 = vsub.f32 %v74, %v104
  %v109 = vsub.f32 %v77, %v105
  %v110 = vsub.f32 %v79, %v106
  %v111 = vmul.f32 %v107, %v107
  %v112 = vmul.f32 %v108, %v108
  %v113 = vmul.f32 %v109, %v109
  %v114 = vmul.f32 %v110, %v110
  %v115 = vsel %vm83, %v111, 0.0
  %116 = vadd.xlane.f32.xlu0 %v115
  %v117 = vpop.xlane.xlu0 %116
  %v118 = vsel %vm83, %v112, 0.0
  %119 = vadd.xlane.f32.xlu0 %v118
  %v120 = vpop.xlane.xlu0 %119
  %v121 = vsel %vm83, %v113, 0.0
  %122 = vadd.xlane.f32.xlu0 %v121
  %v123 = vpop.xlane.xlu0 %122
  %v124 = vsel %vm83, %v114, 0.0
  %125 = vadd.xlane.f32.xlu0 %v124
  %v126 = vpop.xlane.xlu0 %125
  %v127 = vmul.f32 %v117, %v102
  %v128 = vmul.f32 %v120, %v102
  %v129 = vmul.f32 %v123, %v102
  %v130 = vmul.f32 %v126, %v102
  %v131 = vadd.f32 %v127, 1e-05
  %v132 = vadd.f32 %v128, 1e-05
  %v133 = vadd.f32 %v129, 1e-05
  %v134 = vadd.f32 %v130, 1e-05
  %v135 = vrsqrt.pop %v131
  %v136 = vmul.f32 %v135, %v131
  %v137 = vmul.f32 %v136, %v135
  %v138 = vmul.f32 0.5, %v137
  %v139 = vsub.f32 1.5, %v138
  %v140 = vmul.f32 %v135, %v139
  %vm141 = vweird.f32 %v131
  %vm142 = vweird.f32 %v135
  %vm143 = vmor %vm141, %vm142
  %v144 = vsel %vm143, %v135, %v140
  %v145 = vrsqrt.pop %v132
  %v146 = vmul.f32 %v145, %v132
  %v147 = vmul.f32 %v146, %v145
  %v148 = vmul.f32 0.5, %v147
  %v149 = vsub.f32 1.5, %v148
  %v150 = vmul.f32 %v145, %v149
  %vm151 = vweird.f32 %v132
  %vm152 = vweird.f32 %v145
  %vm153 = vmor %vm151, %vm152
  %v154 = vsel %vm153, %v145, %v150
  %v155 = vrsqrt.pop %v133
  %v156 = vmul.f32 %v155, %v133
  %v157 = vmul.f32 %v156, %v155
  %v158 = vmul.f32 0.5, %v157
  %v159 = vsub.f32 1.5, %v158
  %v160 = vmul.f32 %v155, %v159
  %vm161 = vweird.f32 %v133
  %vm162 = vweird.f32 %v155
  %vm163 = vmor %vm161, %vm162
  %v164 = vsel %vm163, %v155, %v160
  %v165 = vrsqrt.pop %v134
  %v166 = vmul.f32 %v165, %v134
  %v167 = vmul.f32 %v166, %v165
  %v168 = vmul.f32 0.5, %v167
  %v169 = vsub.f32 1.5, %v168
  %v170 = vmul.f32 %v165, %v169
  %vm171 = vweird.f32 %v134
  %vm172 = vweird.f32 %v165
  %vm173 = vmor %vm171, %vm172
  %v174 = vsel %vm173, %v165, %v170
  %v175 = vmul.f32 %v107, %v144
  %v176 = vmul.f32 %v108, %v154
  %v177 = vmul.f32 %v109, %v164
  %v178 = vmul.f32 %v110, %v174
  %v180 = vperm.slane %v81, 0
  %v182 = vmul.f32 %v175, %v180
  %v183 = vmul.f32 %v176, %v180
  %v184 = vmul.f32 %v177, %v180
  %v185 = vmul.f32 %v178, %v180
  %v187 = vperm.slane %v82, 0
  %v189 = vadd.f32 %v182, %v187
  %v190 = vadd.f32 %v183, %v187
  %v191 = vadd.f32 %v184, %v187
  %v192 = vadd.f32 %v185, %v187
  %193 = vst.msk [vmem:[%s5] sm:$0xff] %vm83, %v189
  %194 = vst.msk [vmem:[%s5 + $0x8] sm:$0xff] %vm83, %v190
  %195 = vst.msk [vmem:[%s5 + $0x10] sm:$0xff] %vm83, %v191
  %196 = vst.msk [vmem:[%s5 + $0x18] sm:$0xff] %vm83, %v192
  // Predicated region
  $region22: #{_lambda_.11} parent=0 // pred_check
    _
  $region23: #{_lambda_.11} parent=0 // pred_check_branch
    %198 = sbr.rel (0) target = $region25
  $region24: #{_lambda_.11} parent=0 // pred_region
    _
  $region25: #{_lambda_.11} parent=0 // pred_fallthru
    _
  // Predicated region
  $region26: #{_lambda_.11} parent=0 // pred_check
    _
  $region27: #{_lambda_.11} parent=0 // pred_check_branch
    %200 = sbr.rel (0) target = $region29
  $region28: #{_lambda_.11} parent=0 // pred_region
    _
  $region29: #{_lambda_.11} parent=0 // pred_fallthru
    _

// kernel: _lambda_.12
$region0: #{_lambda_.12}
  #allocation0 [shape = 'u32[]', space=smem, size = 0x4, offset = 0x4, fixed_abs, tag = 'smem constant byte address 0x4 - core index']
  #allocation1 [shape = 'u32[72,128]{1,0:T(1,128)}', space=vmem, size = 0x9000, scoped, tag = 'internal scratch']
  %s0 = inlined_call_operand.vmem [shape: f32[32,32], index: 0, kind: input, shape index: {}]
  %s1 = inlined_call_operand.vmem [shape: f32[1,32], index: 1, kind: input, shape index: {}]
  %s2 = inlined_call_operand.vmem [shape: f32[1,32], index: 2, kind: input, shape index: {}]
  %s3 = inlined_call_operand.vmem [shape: bf16[32,96], index: 3, kind: input, shape index: {}]
  %s4 = inlined_call_operand.vmem [shape: f32[1,96], index: 4, kind: input, shape index: {}]
  %s5 = inlined_call_operand.vmem [shape: f32[32,96], index: 5, kind: output, shape index: {}]
  %s6 = sld [smem:[#allocation0]]
  $region30: #{_lambda_.12} parent=0
    _
  %s8 = ssub.s32 1, %s6
  %s9 = scalar_select 0, %s8, %s6
  // Predicated region
  $region2: #{_lambda_.12} parent=0 // pred_check
    _
  $region3: #{_lambda_.12} parent=0 // pred_check_branch
    %11 = sbr.rel (0) target = $region5
  $region4: #{_lambda_.12} parent=0 // pred_region
    _
  $region5: #{_lambda_.12} parent=0 // pred_fallthru
    _
  // Predicated region
  $region6: #{_lambda_.12} parent=0 // pred_check
    _
  $region7: #{_lambda_.12} parent=0 // pred_check_branch
    %13 = sbr.rel (0) target = $region9
  $region8: #{_lambda_.12} parent=0 // pred_region
    _
  $region9: #{_lambda_.12} parent=0 // pred_fallthru
    _
  // Predicated region
  $region10: #{_lambda_.12} parent=0 // pred_check
    _
  $region11: #{_lambda_.12} parent=0 // pred_check_branch
    %15 = sbr.rel (0) target = $region13
  $region12: #{_lambda_.12} parent=0 // pred_region
    _
  $region13: #{_lambda_.12} parent=0 // pred_fallthru
    _
  // Predicated region
  $region14: #{_lambda_.12} parent=0 // pred_check
    _
  $region15: #{_lambda_.12} parent=0 // pred_check_branch
    %17 = sbr.rel (0) target = $region17
  $region16: #{_lambda_.12} parent=0 // pred_region
    _
  $region17: #{_lambda_.12} parent=0 // pred_fallthru
    _
  // Predicated region
  $region18: #{_lambda_.12} parent=0 // pred_check
    _
  $region19: #{_lambda_.12} parent=0 // pred_check_branch
    %19 = sbr.rel (0) target = $region21
  $region20: #{_lambda_.12} parent=0 // pred_region
    _
  $region21: #{_lambda_.12} parent=0 // pred_fallthru
    _
  %v21 = vld [vmem:[%s0] sm:$0xff]
  %v22 = vld [vmem:[%s0 + $0x8] sm:$0xff]
  %v23 = vld [vmem:[%s0 + $0x10] sm:$0xff]
  %v24 = vld [vmem:[%s0 + $0x18] sm:$0xff]
  %v25 = vld [vmem:[%s1] sm:$0x1]
  %v26 = vld [vmem:[%s2] sm:$0x1]
  %vm27 = vcmask 261120
  %v28 = vsel %vm27, %v21, 0.0
  %29 = vadd.xlane.f32.xlu0 %v28
  %v30 = vpop.xlane.xlu0 %29
  %v31 = vsel %vm27, %v22, 0.0
  %32 = vadd.xlane.f32.xlu0 %v31
  %v33 = vpop.xlane.xlu0 %32
  %v34 = vsel %vm27, %v23, 0.0
  %35 = vadd.xlane.f32.xlu0 %v34
  %v36 = vpop.xlane.xlu0 %35
  %v37 = vsel %vm27, %v24, 0.0
  %38 = vadd.xlane.f32.xlu0 %v37
  %v39 = vpop.xlane.xlu0 %38
  %v40 = vrcp.pop 32.0
  %v41 = vmul.f32 32.0, %v40
  %v42 = vsub.f32 1.0, %v41
  %v43 = vmul.f32 %v40, %v42
  %v44 = vadd.f32 %v40, %v43
  %vm45 = vweird.f32 %v40
  %v46 = vsel %vm45, %v40, %v44
  %v47 = vmul.f32 %v30, %v46
  %v48 = vmul.f32 %v33, %v46
  %v49 = vmul.f32 %v36, %v46
  %v50 = vmul.f32 %v39, %v46
  %v51 = vsub.f32 %v21, %v47
  %v52 = vsub.f32 %v22, %v48
  %v53 = vsub.f32 %v23, %v49
  %v54 = vsub.f32 %v24, %v50
  %v55 = vmul.f32 %v51, %v51
  %v56 = vmul.f32 %v52, %v52
  %v57 = vmul.f32 %v53, %v53
  %v58 = vmul.f32 %v54, %v54
  %v59 = vsel %vm27, %v55, 0.0
  %60 = vadd.xlane.f32.xlu0 %v59
  %v61 = vpop.xlane.xlu0 %60
  %v62 = vsel %vm27, %v56, 0.0
  %63 = vadd.xlane.f32.xlu0 %v62
  %v64 = vpop.xlane.xlu0 %63
  %v65 = vsel %vm27, %v57, 0.0
  %66 = vadd.xlane.f32.xlu0 %v65
  %v67 = vpop.xlane.xlu0 %66
  %v68 = vsel %vm27, %v58, 0.0
  %69 = vadd.xlane.f32.xlu0 %v68
  %v70 = vpop.xlane.xlu0 %69
  %v71 = vmul.f32 %v61, %v46
  %v72 = vmul.f32 %v64, %v46
  %v73 = vmul.f32 %v67, %v46
  %v74 = vmul.f32 %v70, %v46
  %v75 = vadd.f32 %v71, 1e-05
  %v76 = vadd.f32 %v72, 1e-05
  %v77 = vadd.f32 %v73, 1e-05
  %v78 = vadd.f32 %v74, 1e-05
  %v79 = vrsqrt.pop %v75
  %v80 = vmul.f32 %v79, %v75
  %v81 = vmul.f32 %v80, %v79
  %v82 = vmul.f32 0.5, %v81
  %v83 = vsub.f32 1.5, %v82
  %v84 = vmul.f32 %v79, %v83
  %vm85 = vweird.f32 %v75
  %vm86 = vweird.f32 %v79
  %vm87 = vmor %vm85, %vm86
  %v88 = vsel %vm87, %v79, %v84
  %v89 = vrsqrt.pop %v76
  %v90 = vmul.f32 %v89, %v76
  %v91 = vmul.f32 %v90, %v89
  %v92 = vmul.f32 0.5, %v91
  %v93 = vsub.f32 1.5, %v92
  %v94 = vmul.f32 %v89, %v93
  %vm95 = vweird.f32 %v76
  %vm96 = vweird.f32 %v89
  %vm97 = vmor %vm95, %vm96
  %v98 = vsel %vm97, %v89, %v94
  %v99 = vrsqrt.pop %v77
  %v100 = vmul.f32 %v99, %v77
  %v101 = vmul.f32 %v100, %v99
  %v102 = vmul.f32 0.5, %v101
  %v103 = vsub.f32 1.5, %v102
  %v104 = vmul.f32 %v99, %v103
  %vm105 = vweird.f32 %v77
  %vm106 = vweird.f32 %v99
  %vm107 = vmor %vm105, %vm106
  %v108 = vsel %vm107, %v99, %v104
  %v109 = vrsqrt.pop %v78
  %v110 = vmul.f32 %v109, %v78
  %v111 = vmul.f32 %v110, %v109
  %v112 = vmul.f32 0.5, %v111
  %v113 = vsub.f32 1.5, %v112
  %v114 = vmul.f32 %v109, %v113
  %vm115 = vweird.f32 %v78
  %vm116 = vweird.f32 %v109
  %vm117 = vmor %vm115, %vm116
  %v118 = vsel %vm117, %v109, %v114
  %v119 = vmul.f32 %v51, %v88
  %v120 = vmul.f32 %v52, %v98
  %v121 = vmul.f32 %v53, %v108
  %v122 = vmul.f32 %v54, %v118
  %v124 = vperm.slane %v25, 0
  %v126 = vmul.f32 %v119, %v124
  %v127 = vmul.f32 %v120, %v124
  %v128 = vmul.f32 %v121, %v124
  %v129 = vmul.f32 %v122, %v124
  %v131 = vperm.slane %v26, 0
  %v133 = vadd.f32 %v126, %v131
  %v134 = vadd.f32 %v127, %v131
  %v135 = vadd.f32 %v128, %v131
  %v136 = vadd.f32 %v129, %v131
  %v137 = vpack.c.bf16 %v134, %v133
  %v138 = vpack.c.bf16 %v136, %v135
  %v139 = vld [vmem:[%s3] sm:$0xf]
  %v140 = vld [vmem:[%s3 + $0x4] sm:$0xf]
  %v141 = vld [vmem:[%s3 + $0x8] sm:$0xf]
  %v142 = vld [vmem:[%s3 + $0xc] sm:$0xf]
  %v143 = vld [vmem:[%s4] sm:$0x1]
  %v145 = vperm.slane %v143, 0
  %v151 = vunpack.c.l.b16 %v139
  %v152 = vunpack.c.l.b16 %v140
  %v153 = vunpack.c.l.b16 %v141
  %v154 = vunpack.c.l.b16 %v142
  %v155 = vpack.c.b16 %v152, %v151
  %v156 = vpack.c.b16 %v154, %v153
  %v160 = vsel %vm27, %v137, 0
  %v163 = vsel %vm27, %v138, 0
  %165 = vmatpush.bf16.msra.mxu0 0
  %166 = vmatpush.bf16.msra.mxu0 0
  %167 = vmatpush.bf16.msra.mxu0 0
  %168 = vmatpush.bf16.msra.mxu0 0
  %169 = vmatpush.bf16.msra.mxu0 0
  %170 = vmatpush.bf16.msra.mxu0 0
  %171 = vmatpush.bf16.msra.mxu0 %v156
  %172 = vmatpush.bf16.msra.mxu0 %v155
  %173 = vmatmul.bf16.gmra.mxu0 %v160
  %v174 = vpop.f32.mrf.mxu0
  %v175 = vadd.f32 %v145, %v174
  %v176 = vpop.f32.mrf.mxu0
  %v177 = vadd.f32 %v145, %v176
  %178 = vmatmul.bf16.gmra.mxu0 %v163
  %v179 = vpop.f32.mrf.mxu0
  %v180 = vadd.f32 %v145, %v179
  %v181 = vpop.f32.mrf.mxu0
  %v182 = vadd.f32 %v145, %v181
  %183 = vdwg.mxu0
  %vm184 = vcmask 785408
  %185 = vst.msk [vmem:[%s5] sm:$0xff] %vm184, %v175
  %186 = vst.msk [vmem:[%s5 + $0x8] sm:$0xff] %vm184, %v177
  %187 = vst.msk [vmem:[%s5 + $0x10] sm:$0xff] %vm184, %v180
  %188 = vst.msk [vmem:[%s5 + $0x18] sm:$0xff] %vm184, %v182
  // Predicated region
  $region22: #{_lambda_.12} parent=0 // pred_check
    _
  $region23: #{_lambda_.12} parent=0 // pred_check_branch
    %190 = sbr.rel (0) target = $region25
  $region24: #{_lambda_.12} parent=0 // pred_region
    _
  $region25: #{_lambda_.12} parent=0 // pred_fallthru
    _
  // Predicated region
  $region26: #{_lambda_.12} parent=0 // pred_check
    _
  $region27: #{_lambda_.12} parent=0 // pred_check_branch
    %192 = sbr.rel (0) target = $region29
  $region28: #{_lambda_.12} parent=0 // pred_region
    _
  $region29: #{_lambda_.12} parent=0 // pred_fallthru
    _

// kernel: _lambda_.14
$region0: #{_lambda_.14}
  #allocation0 [shape = 'u32[]', space=smem, size = 0x4, offset = 0x4, fixed_abs, tag = 'smem constant byte address 0x4 - core index']
  #allocation1 [shape = 'u32[72,128]{1,0:T(1,128)}', space=vmem, size = 0x9000, scoped, tag = 'internal scratch']
  %s0 = inlined_call_operand.vmem [shape: f32[32,32], index: 0, kind: input, shape index: {}]
  %s1 = inlined_call_operand.vmem [shape: bf16[32,32], index: 1, kind: input, shape index: {}]
  %s2 = inlined_call_operand.vmem [shape: f32[1,32], index: 2, kind: input, shape index: {}]
  %s3 = inlined_call_operand.vmem [shape: f32[32,32], index: 3, kind: input, shape index: {}]
  %s4 = inlined_call_operand.vmem [shape: f32[32,32], index: 4, kind: output, shape index: {}]
  %s5 = sld [smem:[#allocation0]]
  $region26: #{_lambda_.14} parent=0
    _
  %s7 = ssub.s32 1, %s5
  %s8 = scalar_select 0, %s7, %s5
  // Predicated region
  $region2: #{_lambda_.14} parent=0 // pred_check
    _
  $region3: #{_lambda_.14} parent=0 // pred_check_branch
    %10 = sbr.rel (0) target = $region5
  $region4: #{_lambda_.14} parent=0 // pred_region
    _
  $region5: #{_lambda_.14} parent=0 // pred_fallthru
    _
  // Predicated region
  $region6: #{_lambda_.14} parent=0 // pred_check
    _
  $region7: #{_lambda_.14} parent=0 // pred_check_branch
    %12 = sbr.rel (0) target = $region9
  $region8: #{_lambda_.14} parent=0 // pred_region
    _
  $region9: #{_lambda_.14} parent=0 // pred_fallthru
    _
  // Predicated region
  $region10: #{_lambda_.14} parent=0 // pred_check
    _
  $region11: #{_lambda_.14} parent=0 // pred_check_branch
    %14 = sbr.rel (0) target = $region13
  $region12: #{_lambda_.14} parent=0 // pred_region
    _
  $region13: #{_lambda_.14} parent=0 // pred_fallthru
    _
  // Predicated region
  $region14: #{_lambda_.14} parent=0 // pred_check
    _
  $region15: #{_lambda_.14} parent=0 // pred_check_branch
    %16 = sbr.rel (0) target = $region17
  $region16: #{_lambda_.14} parent=0 // pred_region
    _
  $region17: #{_lambda_.14} parent=0 // pred_fallthru
    _
  %v18 = vld [vmem:[%s0] sm:$0xff]
  %v19 = vld [vmem:[%s0 + $0x8] sm:$0xff]
  %v20 = vld [vmem:[%s0 + $0x10] sm:$0xff]
  %v21 = vld [vmem:[%s0 + $0x18] sm:$0xff]
  %v22 = vpack.c.bf16 %v19, %v18
  %v23 = vpack.c.bf16 %v21, %v20
  %v24 = vld [vmem:[%s1] sm:$0xf]
  %v25 = vld [vmem:[%s1 + $0x4] sm:$0xf]
  %v26 = vld [vmem:[%s1 + $0x8] sm:$0xf]
  %v27 = vld [vmem:[%s1 + $0xc] sm:$0xf]
  %v28 = vld [vmem:[%s2] sm:$0x1]
  %v30 = vperm.slane %v28, 0
  %v36 = vunpack.c.l.b16 %v24
  %v37 = vunpack.c.l.b16 %v25
  %v38 = vunpack.c.l.b16 %v26
  %v39 = vunpack.c.l.b16 %v27
  %v40 = vpack.c.b16 %v37, %v36
  %v41 = vpack.c.b16 %v39, %v38
  %vm44 = vcmask 261120
  %v46 = vsel %vm44, %v22, 0
  %v49 = vsel %vm44, %v23, 0
  %51 = vmatpush.bf16.msra.mxu0 0
  %52 = vmatpush.bf16.msra.mxu0 0
  %53 = vmatpush.bf16.msra.mxu0 0
  %54 = vmatpush.bf16.msra.mxu0 0
  %55 = vmatpush.bf16.msra.mxu0 0
  %56 = vmatpush.bf16.msra.mxu0 0
  %57 = vmatpush.bf16.msra.mxu0 %v41
  %58 = vmatpush.bf16.msra.mxu0 %v40
  %59 = vmatmul.bf16.gmra.mxu0 %v46
  %v60 = vpop.f32.mrf.mxu0
  %v61 = vadd.f32 %v30, %v60
  %v62 = vpop.f32.mrf.mxu0
  %v63 = vadd.f32 %v30, %v62
  %64 = vmatmul.bf16.gmra.mxu0 %v49
  %v65 = vpop.f32.mrf.mxu0
  %v66 = vadd.f32 %v30, %v65
  %v67 = vpop.f32.mrf.mxu0
  %v68 = vadd.f32 %v30, %v67
  %69 = vdwg.mxu0
  %v70 = vld [vmem:[%s3] sm:$0xff]
  %v71 = vld [vmem:[%s3 + $0x8] sm:$0xff]
  %v72 = vld [vmem:[%s3 + $0x10] sm:$0xff]
  %v73 = vld [vmem:[%s3 + $0x18] sm:$0xff]
  %v74 = vadd.f32 %v70, %v61
  %v75 = vadd.f32 %v71, %v63
  %v76 = vadd.f32 %v72, %v66
  %v77 = vadd.f32 %v73, %v68
  %78 = vst.msk [vmem:[%s4] sm:$0xff] %vm44, %v74
  %79 = vst.msk [vmem:[%s4 + $0x8] sm:$0xff] %vm44, %v75
  %80 = vst.msk [vmem:[%s4 + $0x10] sm:$0xff] %vm44, %v76
  %81 = vst.msk [vmem:[%s4 + $0x18] sm:$0xff] %vm44, %v77
  // Predicated region
  $region18: #{_lambda_.14} parent=0 // pred_check
    _
  $region19: #{_lambda_.14} parent=0 // pred_check_branch
    %83 = sbr.rel (0) target = $region21
  $region20: #{_lambda_.14} parent=0 // pred_region
    _
  $region21: #{_lambda_.14} parent=0 // pred_fallthru
    _
  // Predicated region
  $region22: #{_lambda_.14} parent=0 // pred_check
    _
  $region23: #{_lambda_.14} parent=0 // pred_check_branch
    %85 = sbr.rel (0) target = $region25
  $region24: #{_lambda_.14} parent=0 // pred_region
    _
  $region25: #{_lambda_.14} parent=0 // pred_fallthru
    _

// kernel: _lambda_.13
$region0: #{_lambda_.13}
  #allocation0 [shape = 'u32[]', space=smem, size = 0x4, offset = 0x4, fixed_abs, tag = 'smem constant byte address 0x4 - core index']
  #allocation1 [shape = 'u32[72,128]{1,0:T(1,128)}', space=vmem, size = 0x9000, scoped, tag = 'internal scratch']
  %s0 = inlined_call_operand.vmem [shape: f32[2,16,96], index: 0, kind: input, shape index: {}]
  %s1 = inlined_call_operand.vmem [shape: f32[16,8], index: 1, kind: input, shape index: {}]
  %s2 = inlined_call_operand.vmem [shape: f32[16,8], index: 2, kind: input, shape index: {}]
  %s3 = inlined_call_operand.vmem [shape: f32[2,16,32], index: 3, kind: output, shape index: {}]
  %s4 = sld [smem:[#allocation0]]
  $region45: #{_lambda_.13} parent=0
    _
  %s6 = ssub.s32 1, %s4
  %s7 = scalar_select 0, %s6, %s4
  loop: start=0, step=1, limit=4
  $region2: #{_lambda_.13} parent=0 // loop_pre_header
    _
  $region3: #{_lambda_.13} parent=0 // loop_header
    %s9 = sphi 0, %s13
    %p10 = scmp.ge.s32.totalorder %s9, 4
    %s19 = sphi 0, %s21
    %s22 = sphi 0, %s19
    %s23 = sphi 0, %s22
    %s39 = sphi 0, %s23
    %s43 = sphi 0, %s43
    %s45 = sphi 0, %s43
    %s46 = sphi 0, %s45
    %s60 = sphi 0, %s46
    %s64 = sphi 0, %s64
    %s66 = sphi 0, %s64
    %s67 = sphi 0, %s66
    %s81 = sphi 0, %s67
    %s87 = sphi 0, %s89
    %s90 = sphi 0, %s87
    %s91 = sphi 0, %s90
    %s107 = sphi 0, %s91
  $region4: #{_lambda_.13} parent=0 // loop_header_branch
    %12 = sbr.rel (%p10) target = $region8
  $region5: #{_lambda_.13} parent=0 // loop_body
    %s14 = ssub.s32 %s9, 1
    %s15 = ssub.s32 %s9, 2
    %s16 = sadd.s32 %s9, 1
    %s17 = ssub.s32 %s9, %s16
    %p18 = scmp.eq.s32.totalorder %s17, 0
    %s20 = sadd.s32 %s19, 1
    %s21 = scalar_select %p18, %s19, %s20
    %p24 = pneg %p18
    %p25 = scmp.eq.s32.totalorder %s9, 1
    %p26 = por %p24, %p25
    %p27 = scmp.ne.s32.totalorder %s19, %s22
    %p28 = scmp.eq.s32.totalorder %s9, 0
    %p29 = por %p27, %p28
    %p30 = scmp.ne.s32.totalorder %s19, %s22
    %p31 = scmp.eq.s32.totalorder %s14, 1
    %p32 = por %p30, %p31
    %p33 = scmp.ne.s32.totalorder %s22, %s23
    %p34 = scmp.eq.s32.totalorder %s14, 0
    %p35 = por %p33, %p34
    %p36 = scmp.ne.s32.totalorder %s22, %s23
    %p37 = scmp.eq.s32.totalorder %s15, 1
    %p38 = por %p36, %p37
    %p40 = scmp.ne.s32.totalorder %s23, %s39
    %p41 = scmp.eq.s32.totalorder %s15, 0
    %p42 = por %p40, %p41
    %s44 = sadd.s32 %s43, 1
    %p47 = scmp.eq.s32.totalorder %s9, 1
    %p48 = scmp.ne.s32.totalorder %s43, %s45
    %p49 = scmp.eq.s32.totalorder %s9, 0
    %p50 = por %p48, %p49
    %p51 = scmp.ne.s32.totalorder %s43, %s45
    %p52 = scmp.eq.s32.totalorder %s14, 1
    %p53 = por %p51, %p52
    %p54 = scmp.ne.s32.totalorder %s45, %s46
    %p55 = scmp.eq.s32.totalorder %s14, 0
    %p56 = por %p54, %p55
    %p57 = scmp.ne.s32.totalorder %s45, %s46
    %p58 = scmp.eq.s32.totalorder %s15, 1
    %p59 = por %p57, %p58
    %p61 = scmp.ne.s32.totalorder %s46, %s60
    %p62 = scmp.eq.s32.totalorder %s15, 0
    %p63 = por %p61, %p62
    %s65 = sadd.s32 %s64, 1
    %p68 = scmp.eq.s32.totalorder %s9, 1
    %p69 = scmp.ne.s32.totalorder %s64, %s66
    %p70 = scmp.eq.s32.totalorder %s9, 0
    %p71 = por %p69, %p70
    %p72 = scmp.ne.s32.totalorder %s64, %s66
    %p73 = scmp.eq.s32.totalorder %s14, 1
    %p74 = por %p72, %p73
    %p75 = scmp.ne.s32.totalorder %s66, %s67
    %p76 = scmp.eq.s32.totalorder %s14, 0
    %p77 = por %p75, %p76
    %p78 = scmp.ne.s32.totalorder %s66, %s67
    %p79 = scmp.eq.s32.totalorder %s15, 1
    %p80 = por %p78, %p79
    %p82 = scmp.ne.s32.totalorder %s67, %s81
    %p83 = scmp.eq.s32.totalorder %s15, 0
    %p84 = por %p82, %p83
    %s85 = ssub.s32 %s9, %s16
    %p86 = scmp.eq.s32.totalorder %s85, 0
    %s88 = sadd.s32 %s87, 1
    %s89 = scalar_select %p86, %s87, %s88
    %p92 = pneg %p86
    %p93 = scmp.eq.s32.totalorder %s9, 1
    %p94 = por %p92, %p93
    %p95 = scmp.ne.s32.totalorder %s87, %s90
    %p96 = scmp.eq.s32.totalorder %s9, 0
    %p97 = por %p95, %p96
    %p98 = scmp.ne.s32.totalorder %s87, %s90
    %p99 = scmp.eq.s32.totalorder %s14, 1
    %p100 = por %p98, %p99
    %p101 = scmp.ne.s32.totalorder %s90, %s91
    %p102 = scmp.eq.s32.totalorder %s14, 0
    %p103 = por %p101, %p102
    %p104 = scmp.ne.s32.totalorder %s90, %s91
    %p105 = scmp.eq.s32.totalorder %s15, 1
    %p106 = por %p104, %p105
    %p108 = scmp.ne.s32.totalorder %s91, %s107
    %p109 = scmp.eq.s32.totalorder %s15, 0
    %p110 = por %p108, %p109
    %p111 = scmp.le.s32.totalorder 1, %s9
    %p112 = scmp.lt.s32.totalorder %s9, 3
    %p113 = pnand %p111, %p112
    %p114 = pneg %p113
    // Predicated region
    $region9: #{_lambda_.13} parent=5 // pred_check
      _
    $region10: #{_lambda_.13} parent=5 // pred_check_branch
      %116 = sbr.rel (%p113) target = $region12
    $region11: #{_lambda_.13} parent=5 // pred_region
      %s117 = ssub.s32 %s9, 1
      // Predicated region
      $region13: #{_lambda_.13} parent=11 // pred_check
        %p118 = pneg %p56
      $region14: #{_lambda_.13} parent=11 // pred_check_branch
        %120 = sbr.rel (%p118) target = $region16
      $region15: #{_lambda_.13} parent=11 // pred_region
        _
      $region16: #{_lambda_.13} parent=11 // pred_fallthru
        _
      // Predicated region
      $region17: #{_lambda_.13} parent=11 // pred_check
        %p121 = pneg %p77
      $region18: #{_lambda_.13} parent=11 // pred_check_branch
        %123 = sbr.rel (%p121) target = $region20
      $region19: #{_lambda_.13} parent=11 // pred_region
        _
      $region20: #{_lambda_.13} parent=11 // pred_fallthru
        _
    $region12: #{_lambda_.13} parent=5 // pred_fallthru
      _
    %p124 = scmp.lt.s32.totalorder %s9, 2
    // Predicated region
    $region21: #{_lambda_.13} parent=5 // pred_check
      %p125 = pneg %p124
    $region22: #{_lambda_.13} parent=5 // pred_check_branch
      %127 = sbr.rel (%p125) target = $region24
    $region23: #{_lambda_.13} parent=5 // pred_region
      // Predicated region
      $region25: #{_lambda_.13} parent=23 // pred_check
        %p128 = pneg %p29
      $region26: #{_lambda_.13} parent=23 // pred_check_branch
        %130 = sbr.rel (%p128) target = $region28
      $region27: #{_lambda_.13} parent=23 // pred_region
        %p131 = scmp.lt.s32.totalorder %s9, 1
        %s132 = scalar_select %p131, %s9, 1
        %s133 = smul.addr %s132, 2
        %s134 = smul.addr %s133, 8
        %s135 = scalar_lea.vmem %s0, %s134
      $region28: #{_lambda_.13} parent=23 // pred_fallthru
        _
    $region24: #{_lambda_.13} parent=5 // pred_fallthru
      _
    %p136 = scmp.le.s32.totalorder 1, %s9
    %p137 = scmp.lt.s32.totalorder %s9, 3
    %p138 = pnand %p136, %p137
    %p139 = pneg %p138
    // Predicated region
    $region29: #{_lambda_.13} parent=5 // pred_check
      _
    $region30: #{_lambda_.13} parent=5 // pred_check_branch
      %141 = sbr.rel (%p138) target = $region32
    $region31: #{_lambda_.13} parent=5 // pred_region
      %s142 = ssub.s32 %s9, 1
      %p143 = scmp.lt.s32.totalorder %s14, 1
      %s144 = scalar_select %p143, %s14, 1
      %s145 = smul.addr %s144, 2
      %s146 = smul.addr %s145, 8
      %s147 = scalar_lea.vmem %s0, %s146
      %p148 = pneg %p35
      %p149 = pneg %p32
      %p150 = pneg %p56
      %p151 = pneg %p53
      %p152 = pneg %p77
      %p153 = pneg %p74
      %p154 = pneg %p103
      %p155 = pneg %p100
      %p156 = scmp.lt.s32.totalorder %s14, 1
      %s157 = scalar_select %p156, %s14, 1
      %s158 = smul.addr %s157, 2
      %s159 = smul.addr %s158, 8
      %s160 = scalar_lea.vmem %s3, %s159
      %p161 = scmp.lt.s32.totalorder %s14, 1
      %s162 = scalar_select %p161, %s14, 1
      %s163 = smul.addr %s162, 2
      %s164 = smul.addr %s163, 8
      %s165 = scalar_lea.vmem %s0, %s164
      %p166 = scmp.lt.s32.totalorder %s14, 1
      %s167 = scalar_select %p166, %s14, 1
      %s168 = smul.addr %s167, 2
      %s169 = smul.addr %s168, 8
      %s170 = scalar_lea.vmem %s3, %s169
      %v172 = vld [vmem:[%s165] sm:$0xff]
      %v173 = vld [vmem:[%s165 + $0x8] sm:$0xff]
      %v174 = vld [vmem:[%s1] sm:$0xff]
      %v175 = vld [vmem:[%s1 + $0x8] sm:$0xff]
      %v176 = vld [vmem:[%s2] sm:$0xff]
      %v177 = vld [vmem:[%s2 + $0x8] sm:$0xff]
      %v178 = vsub.f32 0.0, %v172
      %v179 = vsub.f32 0.0, %v173
      %182 = vrot.lane.b32.xlu0 %v178, 124
      %v183 = vpop.permute.xlu0 %182
      %184 = vrot.lane.b32.xlu0 %v179, 124
      %v185 = vpop.permute.xlu0 %184
      %190 = vrot.lane.b32.xlu0 %v172, 4
      %v191 = vpop.permute.xlu0 %190
      %192 = vrot.lane.b32.xlu0 %v173, 4
      %v193 = vpop.permute.xlu0 %192
      %vm196 = vcmask 31744
      %v197 = vsel %vm196, %v183, %v191
      %v198 = vsel %vm196, %v185, %v193
      %v199 = vmul.f32 %v172, %v174
      %v200 = vmul.f32 %v173, %v175
      %v201 = vmul.f32 %v197, %v176
      %v202 = vmul.f32 %v198, %v177
      %v203 = vadd.f32 %v199, %v201
      %v204 = vadd.f32 %v200, %v202
      %v205 = vmul.f32 %v203, 0.35355338
      %v206 = vmul.f32 %v204, 0.35355338
      %207 = vrot.lane.b32.xlu0 %v178, 92
      %v208 = vpop.permute.xlu0 %207
      %209 = vrot.lane.b32.xlu0 %v179, 92
      %v210 = vpop.permute.xlu0 %209
      %213 = vrot.lane.b32.xlu0 %v172, 100
      %v214 = vpop.permute.xlu0 %213
      %215 = vrot.lane.b32.xlu0 %v173, 100
      %v216 = vpop.permute.xlu0 %215
      %v219 = vsel %vm196, %v208, %v214
      %v220 = vsel %vm196, %v210, %v216
      %223 = vrot.lane.b32.xlu0 %v174, 32
      %v224 = vpop.permute.xlu0 %223
      %225 = vrot.lane.b32.xlu0 %v175, 32
      %v226 = vpop.permute.xlu0 %225
      %v229 = vmul.f32 %v172, %v224
      %v230 = vmul.f32 %v173, %v226
      %v231 = vmul.f32 %v219, %v176
      %v232 = vmul.f32 %v220, %v177
      %235 = vrot.lane.b32.xlu0 %v231, 32
      %v236 = vpop.permute.xlu0 %235
      %237 = vrot.lane.b32.xlu0 %v232, 32
      %v238 = vpop.permute.xlu0 %237
      %v241 = vadd.f32 %v229, %v236
      %v242 = vadd.f32 %v230, %v238
      %v243 = vpack.c.bf16 %v206, %v205
      %v244 = vpack.c.bf16 %v242, %v241
      %246 = vrot.lane.b32.xlu0 %v244, 96
      %v247 = vpop.permute.xlu0 %246
      %vm248 = vcmask 64512
      %v250 = vsel %vm248, %v243, 0
      %v253 = vsel %vm248, %v247, 0
      %255 = vmatpush.bf16.xpose.msra.mxu0 0
      %256 = vmatpush.bf16.xpose.msra.mxu0 0
      %257 = vmatpush.bf16.xpose.msra.mxu0 0
      %258 = vmatpush.bf16.xpose.msra.mxu0 0
      %259 = vmatpush.bf16.xpose.msra.mxu0 0
      %260 = vmatpush.bf16.xpose.msra.mxu0 0
      %261 = vmatpush.bf16.xpose.msra.mxu0 0
      %262 = vmatpush.bf16.xpose.msra.mxu0 %v253
      %263 = vmatmul.bf16.gmra.mxu0 %v250
      %v264 = vpop.f32.mrf.mxu0
      %v265 = vadd.f32 0.0, %v264
      %v266 = vpop.f32.mrf.mxu0
      %v267 = vadd.f32 0.0, %v266
      %268 = vdwg.mxu0
      %vm269 = vcmask 130048
      %v270 = vsel %vm269, %v265, -inf
      %271 = vmax.xlane.f32.xlu0 %v270
      %v272 = vpop.xlane.xlu0 %271
      %v273 = vsel %vm269, %v267, -inf
      %274 = vmax.xlane.f32.xlu0 %v273
      %v275 = vpop.xlane.xlu0 %274
      %v276 = vsub.f32 %v265, %v272
      %v277 = vsub.f32 %v267, %v275
      %v278 = vmul.f32 %v276, 1.442695
      %v279 = vpow.pop %v278
      %v280 = vmul.f32 %v277, 1.442695
      %v281 = vpow.pop %v280
      %v282 = vsel %vm269, %v279, 0.0
      %283 = vadd.xlane.f32.xlu0 %v282
      %v284 = vpop.xlane.xlu0 %283
      %v285 = vsel %vm269, %v281, 0.0
      %286 = vadd.xlane.f32.xlu0 %v285
      %v287 = vpop.xlane.xlu0 %286
      %v288 = vrcp.pop %v284
      %v289 = vrcp.pop %v287
      %v290 = vmul.f32 %v279, %v288
      %v291 = vmul.f32 %v281, %v289
      %v292 = vpack.c.bf16 %v291, %v290
      %v293 = vpack.c.bf16 %v173, %v172
      %295 = vrot.lane.b32.xlu0 %v293, 64
      %v296 = vpop.permute.xlu0 %295
      %v299 = vsel %vm269, %v292, 0
      %301 = vmatpush.bf16.msra.mxu0 0
      %302 = vmatpush.bf16.msra.mxu0 0
      %303 = vmatpush.bf16.msra.mxu0 0
      %304 = vmatpush.bf16.msra.mxu0 0
      %305 = vmatpush.bf16.msra.mxu0 0
      %306 = vmatpush.bf16.msra.mxu0 0
      %307 = vmatpush.bf16.msra.mxu0 0
      %308 = vmatpush.bf16.msra.mxu0 %v296
      %309 = vmatmul.bf16.gmra.mxu0 %v299
      %v310 = vpop.f32.mrf.mxu0
      %v311 = vadd.f32 0.0, %v310
      %v312 = vpop.f32.mrf.mxu0
      %v313 = vadd.f32 0.0, %v312
      %314 = vdwg.mxu0
      %315 = vrot.lane.b32.xlu0 %v178, 116
      %v316 = vpop.permute.xlu0 %315
      %317 = vrot.lane.b32.xlu0 %v179, 116
      %v318 = vpop.permute.xlu0 %317
      %321 = vrot.lane.b32.xlu0 %v172, 124
      %v322 = vpop.permute.xlu0 %321
      %323 = vrot.lane.b32.xlu0 %v173, 124
      %v324 = vpop.permute.xlu0 %323
      %v327 = vsel %vm196, %v316, %v322
      %v328 = vsel %vm196, %v318, %v324
      %329 = vrot.lane.b32.xlu0 %v174, 8
      %v330 = vpop.permute.xlu0 %329
      %331 = vrot.lane.b32.xlu0 %v175, 8
      %v332 = vpop.permute.xlu0 %331
      %v335 = vmul.f32 %v172, %v330
      %v336 = vmul.f32 %v173, %v332
      %v337 = vmul.f32 %v327, %v176
      %v338 = vmul.f32 %v328, %v177
      %341 = vrot.lane.b32.xlu0 %v337, 8
      %v342 = vpop.permute.xlu0 %341
      %343 = vrot.lane.b32.xlu0 %v338, 8
      %v344 = vpop.permute.xlu0 %343
      %v347 = vadd.f32 %v335, %v342
      %v348 = vadd.f32 %v336, %v344
      %v349 = vmul.f32 %v347, 0.35355338
      %v350 = vmul.f32 %v348, 0.35355338
      %351 = vrot.lane.b32.xlu0 %v178, 84
      %v352 = vpop.permute.xlu0 %351
      %353 = vrot.lane.b32.xlu0 %v179, 84
      %v354 = vpop.permute.xlu0 %353
      %357 = vrot.lane.b32.xlu0 %v172, 92
      %v358 = vpop.permute.xlu0 %357
      %359 = vrot.lane.b32.xlu0 %v173, 92
      %v360 = vpop.permute.xlu0 %359
      %v363 = vsel %vm196, %v352, %v358
      %v364 = vsel %vm196, %v354, %v360
      %365 = vrot.lane.b32.xlu0 %v174, 40
      %v366 = vpop.permute.xlu0 %365
      %367 = vrot.lane.b32.xlu0 %v175, 40
      %v368 = vpop.permute.xlu0 %367
      %v371 = vmul.f32 %v172, %v366
      %v372 = vmul.f32 %v173, %v368
      %v373 = vmul.f32 %v363, %v176
      %v374 = vmul.f32 %v364, %v177
      %377 = vrot.lane.b32.xlu0 %v373, 40
      %v378 = vpop.permute.xlu0 %377
      %379 = vrot.lane.b32.xlu0 %v374, 40
      %v380 = vpop.permute.xlu0 %379
      %v383 = vadd.f32 %v371, %v378
      %v384 = vadd.f32 %v372, %v380
      %v385 = vpack.c.bf16 %v350, %v349
      %v386 = vpack.c.bf16 %v384, %v383
      %388 = vrot.lane.b32.xlu0 %v385, 120
      %v389 = vpop.permute.xlu0 %388
      %391 = vrot.lane.b32.xlu0 %v386, 88
      %v392 = vpop.permute.xlu0 %391
      %v394 = vsel %vm248, %v389, 0
      %v397 = vsel %vm248, %v392, 0
      %399 = vmatpush.bf16.xpose.msra.mxu0 0
      %400 = vmatpush.bf16.xpose.msra.mxu0 0
      %401 = vmatpush.bf16.xpose.msra.mxu0 0
      %402 = vmatpush.bf16.xpose.msra.mxu0 0
      %403 = vmatpush.bf16.xpose.msra.mxu0 0
      %404 = vmatpush.bf16.xpose.msra.mxu0 0
      %405 = vmatpush.bf16.xpose.msra.mxu0 0
      %406 = vmatpush.bf16.xpose.msra.mxu0 %v397
      %407 = vmatmul.bf16.gmra.mxu0 %v394
      %v408 = vpop.f32.mrf.mxu0
      %v409 = vadd.f32 0.0, %v408
      %v410 = vpop.f32.mrf.mxu0
      %v411 = vadd.f32 0.0, %v410
      %412 = vdwg.mxu0
      %v413 = vsel %vm269, %v409, -inf
      %414 = vmax.xlane.f32.xlu0 %v413
      %v415 = vpop.xlane.xlu0 %414
      %v416 = vsel %vm269, %v411, -inf
      %417 = vmax.xlane.f32.xlu0 %v416
      %v418 = vpop.xlane.xlu0 %417
      %v419 = vsub.f32 %v409, %v415
      %v420 = vsub.f32 %v411, %v418
      %v421 = vmul.f32 %v419, 1.442695
      %v422 = vpow.pop %v421
      %v423 = vmul.f32 %v420, 1.442695
      %v424 = vpow.pop %v423
      %v425 = vsel %vm269, %v422, 0.0
      %426 = vadd.xlane.f32.xlu0 %v425
      %v427 = vpop.xlane.xlu0 %426
      %v428 = vsel %vm269, %v424, 0.0
      %429 = vadd.xlane.f32.xlu0 %v428
      %v430 = vpop.xlane.xlu0 %429
      %v431 = vrcp.pop %v427
      %v432 = vrcp.pop %v430
      %v433 = vmul.f32 %v422, %v431
      %v434 = vmul.f32 %v424, %v432
      %v435 = vpack.c.bf16 %v434, %v433
      %436 = vrot.lane.b32.xlu0 %v293, 56
      %v437 = vpop.permute.xlu0 %436
      %v440 = vsel %vm269, %v435, 0
      %442 = vmatpush.bf16.msra.mxu0 0
      %443 = vmatpush.bf16.msra.mxu0 0
      %444 = vmatpush.bf16.msra.mxu0 0
      %445 = vmatpush.bf16.msra.mxu0 0
      %446 = vmatpush.bf16.msra.mxu0 0
      %447 = vmatpush.bf16.msra.mxu0 0
      %448 = vmatpush.bf16.msra.mxu0 0
      %449 = vmatpush.bf16.msra.mxu0 %v437
      %450 = vmatmul.bf16.gmra.mxu0 %v440
      %v451 = vpop.f32.mrf.mxu0
      %v452 = vadd.f32 0.0, %v451
      %v453 = vpop.f32.mrf.mxu0
      %v454 = vadd.f32 0.0, %v453
      %455 = vdwg.mxu0
      %456 = vrot.lane.b32.xlu0 %v178, 108
      %v457 = vpop.permute.xlu0 %456
      %458 = vrot.lane.b32.xlu0 %v179, 108
      %v459 = vpop.permute.xlu0 %458
      %462 = vrot.lane.b32.xlu0 %v172, 116
      %v463 = vpop.permute.xlu0 %462
      %464 = vrot.lane.b32.xlu0 %v173, 116
      %v465 = vpop.permute.xlu0 %464
      %v468 = vsel %vm196, %v457, %v463
      %v469 = vsel %vm196, %v459, %v465
      %470 = vrot.lane.b32.xlu0 %v174, 16
      %v471 = vpop.permute.xlu0 %470
      %472 = vrot.lane.b32.xlu0 %v175, 16
      %v473 = vpop.permute.xlu0 %472
      %v476 = vmul.f32 %v172, %v471
      %v477 = vmul.f32 %v173, %v473
      %v478 = vmul.f32 %v468, %v176
      %v479 = vmul.f32 %v469, %v177
      %482 = vrot.lane.b32.xlu0 %v478, 16
      %v483 = vpop.permute.xlu0 %482
      %484 = vrot.lane.b32.xlu0 %v479, 16
      %v485 = vpop.permute.xlu0 %484
      %v488 = vadd.f32 %v476, %v483
      %v489 = vadd.f32 %v477, %v485
      %v490 = vmul.f32 %v488, 0.35355338
      %v491 = vmul.f32 %v489, 0.35355338
      %492 = vrot.lane.b32.xlu0 %v178, 76
      %v493 = vpop.permute.xlu0 %492
      %494 = vrot.lane.b32.xlu0 %v179, 76
      %v495 = vpop.permute.xlu0 %494
      %498 = vrot.lane.b32.xlu0 %v172, 84
      %v499 = vpop.permute.xlu0 %498
      %500 = vrot.lane.b32.xlu0 %v173, 84
      %v501 = vpop.permute.xlu0 %500
      %v504 = vsel %vm196, %v493, %v499
      %v505 = vsel %vm196, %v495, %v501
      %506 = vrot.lane.b32.xlu0 %v174, 48
      %v507 = vpop.permute.xlu0 %506
      %508 = vrot.lane.b32.xlu0 %v175, 48
      %v509 = vpop.permute.xlu0 %508
      %v512 = vmul.f32 %v172, %v507
      %v513 = vmul.f32 %v173, %v509
      %v514 = vmul.f32 %v504, %v176
      %v515 = vmul.f32 %v505, %v177
      %518 = vrot.lane.b32.xlu0 %v514, 48
      %v519 = vpop.permute.xlu0 %518
      %520 = vrot.lane.b32.xlu0 %v515, 48
      %v521 = vpop.permute.xlu0 %520
      %v524 = vadd.f32 %v512, %v519
      %v525 = vadd.f32 %v513, %v521
      %v526 = vpack.c.bf16 %v491, %v490
      %v527 = vpack.c.bf16 %v525, %v524
      %529 = vrot.lane.b32.xlu0 %v526, 112
      %v530 = vpop.permute.xlu0 %529
      %532 = vrot.lane.b32.xlu0 %v527, 80
      %v533 = vpop.permute.xlu0 %532
      %v535 = vsel %vm248, %v530, 0
      %v538 = vsel %vm248, %v533, 0
      %540 = vmatpush.bf16.xpose.msra.mxu0 0
      %541 = vmatpush.bf16.xpose.msra.mxu0 0
      %542 = vmatpush.bf16.xpose.msra.mxu0 0
      %543 = vmatpush.bf16.xpose.msra.mxu0 0
      %544 = vmatpush.bf16.xpose.msra.mxu0 0
      %545 = vmatpush.bf16.xpose.msra.mxu0 0
      %546 = vmatpush.bf16.xpose.msra.mxu0 0
      %547 = vmatpush.bf16.xpose.msra.mxu0 %v538
      %548 = vmatmul.bf16.gmra.mxu0 %v535
      %v549 = vpop.f32.mrf.mxu0
      %v550 = vadd.f32 0.0, %v549
      %v551 = vpop.f32.mrf.mxu0
      %v552 = vadd.f32 0.0, %v551
      %553 = vdwg.mxu0
      %v554 = vsel %vm269, %v550, -inf
      %555 = vmax.xlane.f32.xlu0 %v554
      %v556 = vpop.xlane.xlu0 %555
      %v557 = vsel %vm269, %v552, -inf
      %558 = vmax.xlane.f32.xlu0 %v557
      %v559 = vpop.xlane.xlu0 %558
      %v560 = vsub.f32 %v550, %v556
      %v561 = vsub.f32 %v552, %v559
      %v562 = vmul.f32 %v560, 1.442695
      %v563 = vpow.pop %v562
      %v564 = vmul.f32 %v561, 1.442695
      %v565 = vpow.pop %v564
      %v566 = vsel %vm269, %v563, 0.0
      %567 = vadd.xlane.f32.xlu0 %v566
      %v568 = vpop.xlane.xlu0 %567
      %v569 = vsel %vm269, %v565, 0.0
      %570 = vadd.xlane.f32.xlu0 %v569
      %v571 = vpop.xlane.xlu0 %570
      %v572 = vrcp.pop %v568
      %v573 = vrcp.pop %v571
      %v574 = vmul.f32 %v563, %v572
      %v575 = vmul.f32 %v565, %v573
      %v576 = vpack.c.bf16 %v575, %v574
      %577 = vrot.lane.b32.xlu0 %v293, 48
      %v578 = vpop.permute.xlu0 %577
      %v581 = vsel %vm269, %v576, 0
      %583 = vmatpush.bf16.msra.mxu0 0
      %584 = vmatpush.bf16.msra.mxu0 0
      %585 = vmatpush.bf16.msra.mxu0 0
      %586 = vmatpush.bf16.msra.mxu0 0
      %587 = vmatpush.bf16.msra.mxu0 0
      %588 = vmatpush.bf16.msra.mxu0 0
      %589 = vmatpush.bf16.msra.mxu0 0
      %590 = vmatpush.bf16.msra.mxu0 %v578
      %591 = vmatmul.bf16.gmra.mxu0 %v581
      %v592 = vpop.f32.mrf.mxu0
      %v593 = vadd.f32 0.0, %v592
      %v594 = vpop.f32.mrf.mxu0
      %v595 = vadd.f32 0.0, %v594
      %596 = vdwg.mxu0
      %597 = vrot.lane.b32.xlu0 %v178, 100
      %v598 = vpop.permute.xlu0 %597
      %599 = vrot.lane.b32.xlu0 %v179, 100
      %v600 = vpop.permute.xlu0 %599
      %603 = vrot.lane.b32.xlu0 %v172, 108
      %v604 = vpop.permute.xlu0 %603
      %605 = vrot.lane.b32.xlu0 %v173, 108
      %v606 = vpop.permute.xlu0 %605
      %v609 = vsel %vm196, %v598, %v604
      %v610 = vsel %vm196, %v600, %v606
      %611 = vrot.lane.b32.xlu0 %v174, 24
      %v612 = vpop.permute.xlu0 %611
      %613 = vrot.lane.b32.xlu0 %v175, 24
      %v614 = vpop.permute.xlu0 %613
      %v617 = vmul.f32 %v172, %v612
      %v618 = vmul.f32 %v173, %v614
      %v619 = vmul.f32 %v609, %v176
      %v620 = vmul.f32 %v610, %v177
      %623 = vrot.lane.b32.xlu0 %v619, 24
      %v624 = vpop.permute.xlu0 %623
      %625 = vrot.lane.b32.xlu0 %v620, 24
      %v626 = vpop.permute.xlu0 %625
      %v629 = vadd.f32 %v617, %v624
      %v630 = vadd.f32 %v618, %v626
      %v631 = vmul.f32 %v629, 0.35355338
      %v632 = vmul.f32 %v630, 0.35355338
      %633 = vrot.lane.b32.xlu0 %v178, 68
      %v634 = vpop.permute.xlu0 %633
      %635 = vrot.lane.b32.xlu0 %v179, 68
      %v636 = vpop.permute.xlu0 %635
      %639 = vrot.lane.b32.xlu0 %v172, 76
      %v640 = vpop.permute.xlu0 %639
      %641 = vrot.lane.b32.xlu0 %v173, 76
      %v642 = vpop.permute.xlu0 %641
      %v645 = vsel %vm196, %v634, %v640
      %v646 = vsel %vm196, %v636, %v642
      %647 = vrot.lane.b32.xlu0 %v174, 56
      %v648 = vpop.permute.xlu0 %647
      %649 = vrot.lane.b32.xlu0 %v175, 56
      %v650 = vpop.permute.xlu0 %649
      %v653 = vmul.f32 %v172, %v648
      %v654 = vmul.f32 %v173, %v650
      %v655 = vmul.f32 %v645, %v176
      %v656 = vmul.f32 %v646, %v177
      %659 = vrot.lane.b32.xlu0 %v655, 56
      %v660 = vpop.permute.xlu0 %659
      %661 = vrot.lane.b32.xlu0 %v656, 56
      %v662 = vpop.permute.xlu0 %661
      %v665 = vadd.f32 %v653, %v660
      %v666 = vadd.f32 %v654, %v662
      %v667 = vpack.c.bf16 %v632, %v631
      %v668 = vpack.c.bf16 %v666, %v665
      %670 = vrot.lane.b32.xlu0 %v667, 104
      %v671 = vpop.permute.xlu0 %670
      %673 = vrot.lane.b32.xlu0 %v668, 72
      %v674 = vpop.permute.xlu0 %673
      %v676 = vsel %vm248, %v671, 0
      %v679 = vsel %vm248, %v674, 0
      %681 = vmatpush.bf16.xpose.msra.mxu0 0
      %682 = vmatpush.bf16.xpose.msra.mxu0 0
      %683 = vmatpush.bf16.xpose.msra.mxu0 0
      %684 = vmatpush.bf16.xpose.msra.mxu0 0
      %685 = vmatpush.bf16.xpose.msra.mxu0 0
      %686 = vmatpush.bf16.xpose.msra.mxu0 0
      %687 = vmatpush.bf16.xpose.msra.mxu0 0
      %688 = vmatpush.bf16.xpose.msra.mxu0 %v679
      %689 = vmatmul.bf16.gmra.mxu0 %v676
      %v690 = vpop.f32.mrf.mxu0
      %v691 = vadd.f32 0.0, %v690
      %v692 = vpop.f32.mrf.mxu0
      %v693 = vadd.f32 0.0, %v692
      %694 = vdwg.mxu0
      %v695 = vsel %vm269, %v691, -inf
      %696 = vmax.xlane.f32.xlu0 %v695
      %v697 = vpop.xlane.xlu0 %696
      %v698 = vsel %vm269, %v693, -inf
      %699 = vmax.xlane.f32.xlu0 %v698
      %v700 = vpop.xlane.xlu0 %699
      %v701 = vsub.f32 %v691, %v697
      %v702 = vsub.f32 %v693, %v700
      %v703 = vmul.f32 %v701, 1.442695
      %v704 = vpow.pop %v703
      %v705 = vmul.f32 %v702, 1.442695
      %v706 = vpow.pop %v705
      %v707 = vsel %vm269, %v704, 0.0
      %708 = vadd.xlane.f32.xlu0 %v707
      %v709 = vpop.xlane.xlu0 %708
      %v710 = vsel %vm269, %v706, 0.0
      %711 = vadd.xlane.f32.xlu0 %v710
      %v712 = vpop.xlane.xlu0 %711
      %v713 = vrcp.pop %v709
      %v714 = vrcp.pop %v712
      %v715 = vmul.f32 %v704, %v713
      %v716 = vmul.f32 %v706, %v714
      %v717 = vpack.c.bf16 %v716, %v715
      %718 = vrot.lane.b32.xlu0 %v293, 40
      %v719 = vpop.permute.xlu0 %718
      %v722 = vsel %vm269, %v717, 0
      %724 = vmatpush.bf16.msra.mxu0 0
      %725 = vmatpush.bf16.msra.mxu0 0
      %726 = vmatpush.bf16.msra.mxu0 0
      %727 = vmatpush.bf16.msra.mxu0 0
      %728 = vmatpush.bf16.msra.mxu0 0
      %729 = vmatpush.bf16.msra.mxu0 0
      %730 = vmatpush.bf16.msra.mxu0 0
      %731 = vmatpush.bf16.msra.mxu0 %v719
      %732 = vmatmul.bf16.gmra.mxu0 %v722
      %v733 = vpop.f32.mrf.mxu0
      %v734 = vadd.f32 0.0, %v733
      %v735 = vpop.f32.mrf.mxu0
      %v736 = vadd.f32 0.0, %v735
      %737 = vdwg.mxu0
      %740 = vrot.lane.b32.xlu0 %v452, 8
      %v741 = vpop.permute.xlu0 %740
      %742 = vrot.lane.b32.xlu0 %v454, 8
      %v743 = vpop.permute.xlu0 %742
      %748 = vrot.lane.b32.xlu0 %v593, 16
      %v749 = vpop.permute.xlu0 %748
      %750 = vrot.lane.b32.xlu0 %v595, 16
      %v751 = vpop.permute.xlu0 %750
      %756 = vrot.lane.b32.xlu0 %v734, 24
      %v757 = vpop.permute.xlu0 %756
      %758 = vrot.lane.b32.xlu0 %v736, 24
      %v759 = vpop.permute.xlu0 %758
      %v762 = vsel %vm248, %v311, %v741
      %v763 = vsel %vm248, %v313, %v743
      %v764 = vsel %vm269, %v762, %v749
      %v765 = vsel %vm269, %v763, %v751
      %vm766 = vcmask 195584
      %v767 = vsel %vm766, %v764, %v757
      %v768 = vsel %vm766, %v765, %v759
      %vm769 = vcmask 261120
      %770 = vst.msk [vmem:[%s170] sm:$0xff] %vm769, %v767
      %771 = vst.msk [vmem:[%s170 + $0x8] sm:$0xff] %vm769, %v768
      %p772 = scmp.lt.s32.totalorder %s14, 1
      %s773 = scalar_select %p772, %s14, 1
      %s774 = smul.addr %s773, 2
      %s775 = smul.addr %s774, 8
      %s776 = scalar_lea.vmem %s3, %s775
      // Predicated region
      $region33: #{_lambda_.13} parent=31 // pred_check
        %p777 = pneg %p100
      $region34: #{_lambda_.13} parent=31 // pred_check_branch
        %779 = sbr.rel (%p777) target = $region36
      $region35: #{_lambda_.13} parent=31 // pred_region
        _
      $region36: #{_lambda_.13} parent=31 // pred_fallthru
        _
    $region32: #{_lambda_.13} parent=5 // pred_fallthru
      _
    %p780 = scmp.le.s32.totalorder 2, %s9
    // Predicated region
    $region37: #{_lambda_.13} parent=5 // pred_check
      %p781 = pneg %p780
    $region38: #{_lambda_.13} parent=5 // pred_check_branch
      %783 = sbr.rel (%p781) target = $region40
    $region39: #{_lambda_.13} parent=5 // pred_region
      %s784 = ssub.s32 %s9, 2
      // Predicated region
      $region41: #{_lambda_.13} parent=39 // pred_check
        %p785 = pneg %p106
      $region42: #{_lambda_.13} parent=39 // pred_check_branch
        %787 = sbr.rel (%p785) target = $region44
      $region43: #{_lambda_.13} parent=39 // pred_region
        %p788 = scmp.lt.s32.totalorder %s15, 1
        %s789 = scalar_select %p788, %s15, 1
        %s790 = smul.addr %s789, 2
        %s791 = smul.addr %s790, 8
        %s792 = scalar_lea.vmem %s3, %s791
      $region44: #{_lambda_.13} parent=39 // pred_fallthru
        _
    $region40: #{_lambda_.13} parent=5 // pred_fallthru
      _
  $region6: #{_lambda_.13} parent=0 // loop_footer
    %s13 = sadd.s32 1, %s9
  $region7: #{_lambda_.13} parent=0 // loop_footer_branch
    %8 = sbr.rel target = $region3
  $region8: #{_lambda_.13} parent=0 // loop_exit
    _

// kernel: _lambda_.15
$region0: #{_lambda_.15}
  #allocation0 [shape = 'u32[]', space=smem, size = 0x4, offset = 0x4, fixed_abs, tag = 'smem constant byte address 0x4 - core index']
  #allocation1 [shape = 'u32[72,128]{1,0:T(1,128)}', space=vmem, size = 0x9000, scoped, tag = 'internal scratch']
  %s0 = inlined_call_operand.vmem [shape: f32[32,32], index: 0, kind: input, shape index: {}]
  %s1 = inlined_call_operand.vmem [shape: f32[1,32], index: 1, kind: input, shape index: {}]
  %s2 = inlined_call_operand.vmem [shape: f32[1,32], index: 2, kind: input, shape index: {}]
  %s3 = inlined_call_operand.vmem [shape: bf16[32,128], index: 3, kind: input, shape index: {}]
  %s4 = inlined_call_operand.vmem [shape: f32[1,128], index: 4, kind: input, shape index: {}]
  %s5 = inlined_call_operand.vmem [shape: bf16[128,32], index: 5, kind: input, shape index: {}]
  %s6 = inlined_call_operand.vmem [shape: f32[1,32], index: 6, kind: input, shape index: {}]
  %s7 = inlined_call_operand.vmem [shape: f32[32,32], index: 7, kind: output, shape index: {}]
  %s8 = sld [smem:[#allocation0]]
  $region38: #{_lambda_.15} parent=0
    _
  %s10 = ssub.s32 1, %s8
  %s11 = scalar_select 0, %s10, %s8
  // Predicated region
  $region2: #{_lambda_.15} parent=0 // pred_check
    _
  $region3: #{_lambda_.15} parent=0 // pred_check_branch
    %13 = sbr.rel (0) target = $region5
  $region4: #{_lambda_.15} parent=0 // pred_region
    _
  $region5: #{_lambda_.15} parent=0 // pred_fallthru
    _
  // Predicated region
  $region6: #{_lambda_.15} parent=0 // pred_check
    _
  $region7: #{_lambda_.15} parent=0 // pred_check_branch
    %15 = sbr.rel (0) target = $region9
  $region8: #{_lambda_.15} parent=0 // pred_region
    _
  $region9: #{_lambda_.15} parent=0 // pred_fallthru
    _
  // Predicated region
  $region10: #{_lambda_.15} parent=0 // pred_check
    _
  $region11: #{_lambda_.15} parent=0 // pred_check_branch
    %17 = sbr.rel (0) target = $region13
  $region12: #{_lambda_.15} parent=0 // pred_region
    _
  $region13: #{_lambda_.15} parent=0 // pred_fallthru
    _
  // Predicated region
  $region14: #{_lambda_.15} parent=0 // pred_check
    _
  $region15: #{_lambda_.15} parent=0 // pred_check_branch
    %19 = sbr.rel (0) target = $region17
  $region16: #{_lambda_.15} parent=0 // pred_region
    _
  $region17: #{_lambda_.15} parent=0 // pred_fallthru
    _
  // Predicated region
  $region18: #{_lambda_.15} parent=0 // pred_check
    _
  $region19: #{_lambda_.15} parent=0 // pred_check_branch
    %21 = sbr.rel (0) target = $region21
  $region20: #{_lambda_.15} parent=0 // pred_region
    _
  $region21: #{_lambda_.15} parent=0 // pred_fallthru
    _
  // Predicated region
  $region22: #{_lambda_.15} parent=0 // pred_check
    _
  $region23: #{_lambda_.15} parent=0 // pred_check_branch
    %23 = sbr.rel (0) target = $region25
  $region24: #{_lambda_.15} parent=0 // pred_region
    _
  $region25: #{_lambda_.15} parent=0 // pred_fallthru
    _
  // Predicated region
  $region26: #{_lambda_.15} parent=0 // pred_check
    _
  $region27: #{_lambda_.15} parent=0 // pred_check_branch
    %25 = sbr.rel (0) target = $region29
  $region28: #{_lambda_.15} parent=0 // pred_region
    _
  $region29: #{_lambda_.15} parent=0 // pred_fallthru
    _
  %v27 = vld [vmem:[%s0] sm:$0xff]
  %v28 = vld [vmem:[%s0 + $0x8] sm:$0xff]
  %v29 = vld [vmem:[%s0 + $0x10] sm:$0xff]
  %v30 = vld [vmem:[%s0 + $0x18] sm:$0xff]
  %v31 = vld [vmem:[%s1] sm:$0x1]
  %v32 = vld [vmem:[%s2] sm:$0x1]
  %vm33 = vcmask 261120
  %v34 = vsel %vm33, %v27, 0.0
  %35 = vadd.xlane.f32.xlu0 %v34
  %v36 = vpop.xlane.xlu0 %35
  %v37 = vsel %vm33, %v28, 0.0
  %38 = vadd.xlane.f32.xlu0 %v37
  %v39 = vpop.xlane.xlu0 %38
  %v40 = vsel %vm33, %v29, 0.0
  %41 = vadd.xlane.f32.xlu0 %v40
  %v42 = vpop.xlane.xlu0 %41
  %v43 = vsel %vm33, %v30, 0.0
  %44 = vadd.xlane.f32.xlu0 %v43
  %v45 = vpop.xlane.xlu0 %44
  %v46 = vrcp.pop 32.0
  %v47 = vmul.f32 32.0, %v46
  %v48 = vsub.f32 1.0, %v47
  %v49 = vmul.f32 %v46, %v48
  %v50 = vadd.f32 %v46, %v49
  %vm51 = vweird.f32 %v46
  %v52 = vsel %vm51, %v46, %v50
  %v53 = vmul.f32 %v36, %v52
  %v54 = vmul.f32 %v39, %v52
  %v55 = vmul.f32 %v42, %v52
  %v56 = vmul.f32 %v45, %v52
  %v57 = vsub.f32 %v27, %v53
  %v58 = vsub.f32 %v28, %v54
  %v59 = vsub.f32 %v29, %v55
  %v60 = vsub.f32 %v30, %v56
  %v61 = vmul.f32 %v57, %v57
  %v62 = vmul.f32 %v58, %v58
  %v63 = vmul.f32 %v59, %v59
  %v64 = vmul.f32 %v60, %v60
  %v65 = vsel %vm33, %v61, 0.0
  %66 = vadd.xlane.f32.xlu0 %v65
  %v67 = vpop.xlane.xlu0 %66
  %v68 = vsel %vm33, %v62, 0.0
  %69 = vadd.xlane.f32.xlu0 %v68
  %v70 = vpop.xlane.xlu0 %69
  %v71 = vsel %vm33, %v63, 0.0
  %72 = vadd.xlane.f32.xlu0 %v71
  %v73 = vpop.xlane.xlu0 %72
  %v74 = vsel %vm33, %v64, 0.0
  %75 = vadd.xlane.f32.xlu0 %v74
  %v76 = vpop.xlane.xlu0 %75
  %v77 = vmul.f32 %v67, %v52
  %v78 = vmul.f32 %v70, %v52
  %v79 = vmul.f32 %v73, %v52
  %v80 = vmul.f32 %v76, %v52
  %v81 = vadd.f32 %v77, 1e-05
  %v82 = vadd.f32 %v78, 1e-05
  %v83 = vadd.f32 %v79, 1e-05
  %v84 = vadd.f32 %v80, 1e-05
  %v85 = vrsqrt.pop %v81
  %v86 = vmul.f32 %v85, %v81
  %v87 = vmul.f32 %v86, %v85
  %v88 = vmul.f32 0.5, %v87
  %v89 = vsub.f32 1.5, %v88
  %v90 = vmul.f32 %v85, %v89
  %vm91 = vweird.f32 %v81
  %vm92 = vweird.f32 %v85
  %vm93 = vmor %vm91, %vm92
  %v94 = vsel %vm93, %v85, %v90
  %v95 = vrsqrt.pop %v82
  %v96 = vmul.f32 %v95, %v82
  %v97 = vmul.f32 %v96, %v95
  %v98 = vmul.f32 0.5, %v97
  %v99 = vsub.f32 1.5, %v98
  %v100 = vmul.f32 %v95, %v99
  %vm101 = vweird.f32 %v82
  %vm102 = vweird.f32 %v95
  %vm103 = vmor %vm101, %vm102
  %v104 = vsel %vm103, %v95, %v100
  %v105 = vrsqrt.pop %v83
  %v106 = vmul.f32 %v105, %v83
  %v107 = vmul.f32 %v106, %v105
  %v108 = vmul.f32 0.5, %v107
  %v109 = vsub.f32 1.5, %v108
  %v110 = vmul.f32 %v105, %v109
  %vm111 = vweird.f32 %v83
  %vm112 = vweird.f32 %v105
  %vm113 = vmor %vm111, %vm112
  %v114 = vsel %vm113, %v105, %v110
  %v115 = vrsqrt.pop %v84
  %v116 = vmul.f32 %v115, %v84
  %v117 = vmul.f32 %v116, %v115
  %v118 = vmul.f32 0.5, %v117
  %v119 = vsub.f32 1.5, %v118
  %v120 = vmul.f32 %v115, %v119
  %vm121 = vweird.f32 %v84
  %vm122 = vweird.f32 %v115
  %vm123 = vmor %vm121, %vm122
  %v124 = vsel %vm123, %v115, %v120
  %v125 = vmul.f32 %v57, %v94
  %v126 = vmul.f32 %v58, %v104
  %v127 = vmul.f32 %v59, %v114
  %v128 = vmul.f32 %v60, %v124
  %v130 = vperm.slane %v31, 0
  %v132 = vmul.f32 %v125, %v130
  %v133 = vmul.f32 %v126, %v130
  %v134 = vmul.f32 %v127, %v130
  %v135 = vmul.f32 %v128, %v130
  %v137 = vperm.slane %v32, 0
  %v139 = vadd.f32 %v132, %v137
  %v140 = vadd.f32 %v133, %v137
  %v141 = vadd.f32 %v134, %v137
  %v142 = vadd.f32 %v135, %v137
  %v143 = vpack.c.bf16 %v140, %v139
  %v144 = vpack.c.bf16 %v142, %v141
  %v145 = vld [vmem:[%s3] sm:$0xf]
  %v146 = vld [vmem:[%s3 + $0x4] sm:$0xf]
  %v147 = vld [vmem:[%s3 + $0x8] sm:$0xf]
  %v148 = vld [vmem:[%s3 + $0xc] sm:$0xf]
  %v149 = vld [vmem:[%s4] sm:$0x1]
  %v151 = vperm.slane %v149, 0
  %v157 = vunpack.c.l.b16 %v145
  %v158 = vunpack.c.l.b16 %v146
  %v159 = vunpack.c.l.b16 %v147
  %v160 = vunpack.c.l.b16 %v148
  %v161 = vpack.c.b16 %v158, %v157
  %v162 = vpack.c.b16 %v160, %v159
  %v166 = vsel %vm33, %v143, 0
  %v169 = vsel %vm33, %v144, 0
  %171 = vmatpush.bf16.msra.mxu0 0
  %172 = vmatpush.bf16.msra.mxu0 0
  %173 = vmatpush.bf16.msra.mxu0 0
  %174 = vmatpush.bf16.msra.mxu0 0
  %175 = vmatpush.bf16.msra.mxu0 0
  %176 = vmatpush.bf16.msra.mxu0 0
  %177 = vmatpush.bf16.msra.mxu0 %v162
  %178 = vmatpush.bf16.msra.mxu0 %v161
  %179 = vmatmul.bf16.gmra.mxu0 %v166
  %v180 = vpop.f32.mrf.mxu0
  %v181 = vadd.f32 %v151, %v180
  %v182 = vpop.f32.mrf.mxu0
  %v183 = vadd.f32 %v151, %v182
  %184 = vmatmul.bf16.gmra.mxu0 %v169
  %v185 = vpop.f32.mrf.mxu0
  %v186 = vadd.f32 %v151, %v185
  %v187 = vpop.f32.mrf.mxu0
  %v188 = vadd.f32 %v151, %v187
  %189 = vdwg.mxu0
  %v190 = vmul.f32 %v181, %v181
  %v191 = vmul.f32 %v183, %v183
  %v192 = vmul.f32 %v186, %v186
  %v193 = vmul.f32 %v188, %v188
  %v194 = vmul.f32 %v181, %v190
  %v195 = vmul.f32 %v183, %v191
  %v196 = vmul.f32 %v186, %v192
  %v197 = vmul.f32 %v188, %v193
  %v198 = vmul.f32 %v194, 0.044715
  %v199 = vmul.f32 %v195, 0.044715
  %v200 = vmul.f32 %v196, 0.044715
  %v201 = vmul.f32 %v197, 0.044715
  %v202 = vadd.f32 %v181, %v198
  %v203 = vadd.f32 %v183, %v199
  %v204 = vadd.f32 %v186, %v200
  %v205 = vadd.f32 %v188, %v201
  %v206 = vmul.f32 %v202, 0.7978846
  %v207 = vmul.f32 %v203, 0.7978846
  %v208 = vmul.f32 %v204, 0.7978846
  %v209 = vmul.f32 %v205, 0.7978846
  %v210 = vtanh.pop %v206
  %v211 = vtanh.pop %v207
  %v212 = vtanh.pop %v208
  %v213 = vtanh.pop %v209
  %v214 = vadd.f32 %v210, 1.0
  %v215 = vadd.f32 %v211, 1.0
  %v216 = vadd.f32 %v212, 1.0
  %v217 = vadd.f32 %v213, 1.0
  %v218 = vmul.f32 %v214, 0.5
  %v219 = vmul.f32 %v215, 0.5
  %v220 = vmul.f32 %v216, 0.5
  %v221 = vmul.f32 %v217, 0.5
  %v222 = vmul.f32 %v181, %v218
  %v223 = vmul.f32 %v183, %v219
  %v224 = vmul.f32 %v186, %v220
  %v225 = vmul.f32 %v188, %v221
  %v226 = vpack.c.bf16 %v223, %v222
  %v227 = vpack.c.bf16 %v225, %v224
  %v228 = vld [vmem:[%s5] sm:$0xf]
  %v229 = vld [vmem:[%s5 + $0x4] sm:$0xf]
  %v230 = vld [vmem:[%s5 + $0x8] sm:$0xf]
  %v231 = vld [vmem:[%s5 + $0xc] sm:$0xf]
  %v232 = vld [vmem:[%s5 + $0x10] sm:$0xf]
  %v233 = vld [vmem:[%s5 + $0x14] sm:$0xf]
  %v234 = vld [vmem:[%s5 + $0x18] sm:$0xf]
  %v235 = vld [vmem:[%s5 + $0x1c] sm:$0xf]
  %v236 = vld [vmem:[%s5 + $0x20] sm:$0xf]
  %v237 = vld [vmem:[%s5 + $0x24] sm:$0xf]
  %v238 = vld [vmem:[%s5 + $0x28] sm:$0xf]
  %v239 = vld [vmem:[%s5 + $0x2c] sm:$0xf]
  %v240 = vld [vmem:[%s5 + $0x30] sm:$0xf]
  %v241 = vld [vmem:[%s5 + $0x34] sm:$0xf]
  %v242 = vld [vmem:[%s5 + $0x38] sm:$0xf]
  %v243 = vld [vmem:[%s5 + $0x3c] sm:$0xf]
  %v244 = vld [vmem:[%s6] sm:$0x1]
  %v246 = vperm.slane %v244, 0
  %v264 = vunpack.c.l.b16 %v228
  %v265 = vunpack.c.l.b16 %v229
  %v266 = vunpack.c.l.b16 %v230
  %v267 = vunpack.c.l.b16 %v231
  %v268 = vunpack.c.l.b16 %v232
  %v269 = vunpack.c.l.b16 %v233
  %v270 = vunpack.c.l.b16 %v234
  %v271 = vunpack.c.l.b16 %v235
  %v272 = vunpack.c.l.b16 %v236
  %v273 = vunpack.c.l.b16 %v237
  %v274 = vunpack.c.l.b16 %v238
  %v275 = vunpack.c.l.b16 %v239
  %v276 = vunpack.c.l.b16 %v240
  %v277 = vunpack.c.l.b16 %v241
  %v278 = vunpack.c.l.b16 %v242
  %v279 = vunpack.c.l.b16 %v243
  %v280 = vpack.c.b16 %v265, %v264
  %v281 = vpack.c.b16 %v267, %v266
  %v282 = vpack.c.b16 %v269, %v268
  %v283 = vpack.c.b16 %v271, %v270
  %v284 = vpack.c.b16 %v273, %v272
  %v285 = vpack.c.b16 %v275, %v274
  %v286 = vpack.c.b16 %v277, %v276
  %v287 = vpack.c.b16 %v279, %v278
  %296 = vmatpush.bf16.msra.mxu0 %v287
  %297 = vmatpush.bf16.msra.mxu0 %v286
  %298 = vmatpush.bf16.msra.mxu0 %v285
  %299 = vmatpush.bf16.msra.mxu0 %v284
  %300 = vmatpush.bf16.msra.mxu0 %v283
  %301 = vmatpush.bf16.msra.mxu0 %v282
  %302 = vmatpush.bf16.msra.mxu0 %v281
  %303 = vmatpush.bf16.msra.mxu0 %v280
  %304 = vmatmul.bf16.gmra.mxu0 %v226
  %v305 = vpop.f32.mrf.mxu0
  %v306 = vadd.f32 %v246, %v305
  %v307 = vpop.f32.mrf.mxu0
  %v308 = vadd.f32 %v246, %v307
  %309 = vmatmul.bf16.gmra.mxu0 %v227
  %v310 = vpop.f32.mrf.mxu0
  %v311 = vadd.f32 %v246, %v310
  %v312 = vpop.f32.mrf.mxu0
  %v313 = vadd.f32 %v246, %v312
  %314 = vdwg.mxu0
  %v315 = vadd.f32 %v27, %v306
  %v316 = vadd.f32 %v28, %v308
  %v317 = vadd.f32 %v29, %v311
  %v318 = vadd.f32 %v30, %v313
  %319 = vst.msk [vmem:[%s7] sm:$0xff] %vm33, %v315
  %320 = vst.msk [vmem:[%s7 + $0x8] sm:$0xff] %vm33, %v316
  %321 = vst.msk [vmem:[%s7 + $0x10] sm:$0xff] %vm33, %v317
  %322 = vst.msk [vmem:[%s7 + $0x18] sm:$0xff] %vm33, %v318
  // Predicated region
  $region30: #{_lambda_.15} parent=0 // pred_check
    _
  $region31: #{_lambda_.15} parent=0 // pred_check_branch
    %324 = sbr.rel (0) target = $region33
  $region32: #{_lambda_.15} parent=0 // pred_region
    _
  $region33: #{_lambda_.15} parent=0 // pred_fallthru
    _
  // Predicated region
  $region34: #{_lambda_.15} parent=0 // pred_check
    _
  $region35: #{_lambda_.15} parent=0 // pred_check_branch
    %326 = sbr.rel (0) target = $region37
  $region36: #{_lambda_.15} parent=0 // pred_region
    _
  $region37: #{_lambda_.15} parent=0 // pred_fallthru
    _

// kernel: _lambda_.20
$region0: #{_lambda_.20}
  #allocation0 [shape = 'u32[]', space=smem, size = 0x4, offset = 0x4, fixed_abs, tag = 'smem constant byte address 0x4 - core index']
  #allocation1 [shape = 'u32[72,128]{1,0:T(1,128)}', space=vmem, size = 0x9000, scoped, tag = 'internal scratch']
  %s0 = inlined_call_operand.vmem [shape: f32[32,32], index: 0, kind: input, shape index: {}]
  %s1 = inlined_call_operand.vmem [shape: f32[1,32], index: 1, kind: input, shape index: {}]
  %s2 = inlined_call_operand.vmem [shape: f32[1,32], index: 2, kind: input, shape index: {}]
  %s3 = inlined_call_operand.vmem [shape: bf16[32,12], index: 3, kind: input, shape index: {}]
  %s4 = inlined_call_operand.vmem [shape: f32[1,12], index: 4, kind: input, shape index: {}]
  %s5 = inlined_call_operand.vmem [shape: f32[32,12], index: 5, kind: output, shape index: {}]
  %s6 = sld [smem:[#allocation0]]
  $region30: #{_lambda_.20} parent=0
    _
  %s8 = ssub.s32 1, %s6
  %s9 = scalar_select 0, %s8, %s6
  // Predicated region
  $region2: #{_lambda_.20} parent=0 // pred_check
    _
  $region3: #{_lambda_.20} parent=0 // pred_check_branch
    %11 = sbr.rel (0) target = $region5
  $region4: #{_lambda_.20} parent=0 // pred_region
    _
  $region5: #{_lambda_.20} parent=0 // pred_fallthru
    _
  // Predicated region
  $region6: #{_lambda_.20} parent=0 // pred_check
    _
  $region7: #{_lambda_.20} parent=0 // pred_check_branch
    %13 = sbr.rel (0) target = $region9
  $region8: #{_lambda_.20} parent=0 // pred_region
    _
  $region9: #{_lambda_.20} parent=0 // pred_fallthru
    _
  // Predicated region
  $region10: #{_lambda_.20} parent=0 // pred_check
    _
  $region11: #{_lambda_.20} parent=0 // pred_check_branch
    %15 = sbr.rel (0) target = $region13
  $region12: #{_lambda_.20} parent=0 // pred_region
    _
  $region13: #{_lambda_.20} parent=0 // pred_fallthru
    _
  // Predicated region
  $region14: #{_lambda_.20} parent=0 // pred_check
    _
  $region15: #{_lambda_.20} parent=0 // pred_check_branch
    %17 = sbr.rel (0) target = $region17
  $region16: #{_lambda_.20} parent=0 // pred_region
    _
  $region17: #{_lambda_.20} parent=0 // pred_fallthru
    _
  // Predicated region
  $region18: #{_lambda_.20} parent=0 // pred_check
    _
  $region19: #{_lambda_.20} parent=0 // pred_check_branch
    %19 = sbr.rel (0) target = $region21
  $region20: #{_lambda_.20} parent=0 // pred_region
    _
  $region21: #{_lambda_.20} parent=0 // pred_fallthru
    _
  %v21 = vld [vmem:[%s0] sm:$0xff]
  %v22 = vld [vmem:[%s0 + $0x8] sm:$0xff]
  %v23 = vld [vmem:[%s0 + $0x10] sm:$0xff]
  %v24 = vld [vmem:[%s0 + $0x18] sm:$0xff]
  %v25 = vld [vmem:[%s1] sm:$0x1]
  %v26 = vld [vmem:[%s2] sm:$0x1]
  %vm27 = vcmask 261120
  %v28 = vsel %vm27, %v21, 0.0
  %29 = vadd.xlane.f32.xlu0 %v28
  %v30 = vpop.xlane.xlu0 %29
  %v31 = vsel %vm27, %v22, 0.0
  %32 = vadd.xlane.f32.xlu0 %v31
  %v33 = vpop.xlane.xlu0 %32
  %v34 = vsel %vm27, %v23, 0.0
  %35 = vadd.xlane.f32.xlu0 %v34
  %v36 = vpop.xlane.xlu0 %35
  %v37 = vsel %vm27, %v24, 0.0
  %38 = vadd.xlane.f32.xlu0 %v37
  %v39 = vpop.xlane.xlu0 %38
  %v40 = vrcp.pop 32.0
  %v41 = vmul.f32 32.0, %v40
  %v42 = vsub.f32 1.0, %v41
  %v43 = vmul.f32 %v40, %v42
  %v44 = vadd.f32 %v40, %v43
  %vm45 = vweird.f32 %v40
  %v46 = vsel %vm45, %v40, %v44
  %v47 = vmul.f32 %v30, %v46
  %v48 = vmul.f32 %v33, %v46
  %v49 = vmul.f32 %v36, %v46
  %v50 = vmul.f32 %v39, %v46
  %v51 = vsub.f32 %v21, %v47
  %v52 = vsub.f32 %v22, %v48
  %v53 = vsub.f32 %v23, %v49
  %v54 = vsub.f32 %v24, %v50
  %v55 = vmul.f32 %v51, %v51
  %v56 = vmul.f32 %v52, %v52
  %v57 = vmul.f32 %v53, %v53
  %v58 = vmul.f32 %v54, %v54
  %v59 = vsel %vm27, %v55, 0.0
  %60 = vadd.xlane.f32.xlu0 %v59
  %v61 = vpop.xlane.xlu0 %60
  %v62 = vsel %vm27, %v56, 0.0
  %63 = vadd.xlane.f32.xlu0 %v62
  %v64 = vpop.xlane.xlu0 %63
  %v65 = vsel %vm27, %v57, 0.0
  %66 = vadd.xlane.f32.xlu0 %v65
  %v67 = vpop.xlane.xlu0 %66
  %v68 = vsel %vm27, %v58, 0.0
  %69 = vadd.xlane.f32.xlu0 %v68
  %v70 = vpop.xlane.xlu0 %69
  %v71 = vmul.f32 %v61, %v46
  %v72 = vmul.f32 %v64, %v46
  %v73 = vmul.f32 %v67, %v46
  %v74 = vmul.f32 %v70, %v46
  %v75 = vadd.f32 %v71, 1e-05
  %v76 = vadd.f32 %v72, 1e-05
  %v77 = vadd.f32 %v73, 1e-05
  %v78 = vadd.f32 %v74, 1e-05
  %v79 = vrsqrt.pop %v75
  %v80 = vmul.f32 %v79, %v75
  %v81 = vmul.f32 %v80, %v79
  %v82 = vmul.f32 0.5, %v81
  %v83 = vsub.f32 1.5, %v82
  %v84 = vmul.f32 %v79, %v83
  %vm85 = vweird.f32 %v75
  %vm86 = vweird.f32 %v79
  %vm87 = vmor %vm85, %vm86
  %v88 = vsel %vm87, %v79, %v84
  %v89 = vrsqrt.pop %v76
  %v90 = vmul.f32 %v89, %v76
  %v91 = vmul.f32 %v90, %v89
  %v92 = vmul.f32 0.5, %v91
  %v93 = vsub.f32 1.5, %v92
  %v94 = vmul.f32 %v89, %v93
  %vm95 = vweird.f32 %v76
  %vm96 = vweird.f32 %v89
  %vm97 = vmor %vm95, %vm96
  %v98 = vsel %vm97, %v89, %v94
  %v99 = vrsqrt.pop %v77
  %v100 = vmul.f32 %v99, %v77
  %v101 = vmul.f32 %v100, %v99
  %v102 = vmul.f32 0.5, %v101
  %v103 = vsub.f32 1.5, %v102
  %v104 = vmul.f32 %v99, %v103
  %vm105 = vweird.f32 %v77
  %vm106 = vweird.f32 %v99
  %vm107 = vmor %vm105, %vm106
  %v108 = vsel %vm107, %v99, %v104
  %v109 = vrsqrt.pop %v78
  %v110 = vmul.f32 %v109, %v78
  %v111 = vmul.f32 %v110, %v109
  %v112 = vmul.f32 0.5, %v111
  %v113 = vsub.f32 1.5, %v112
  %v114 = vmul.f32 %v109, %v113
  %vm115 = vweird.f32 %v78
  %vm116 = vweird.f32 %v109
  %vm117 = vmor %vm115, %vm116
  %v118 = vsel %vm117, %v109, %v114
  %v119 = vmul.f32 %v51, %v88
  %v120 = vmul.f32 %v52, %v98
  %v121 = vmul.f32 %v53, %v108
  %v122 = vmul.f32 %v54, %v118
  %v124 = vperm.slane %v25, 0
  %v126 = vmul.f32 %v119, %v124
  %v127 = vmul.f32 %v120, %v124
  %v128 = vmul.f32 %v121, %v124
  %v129 = vmul.f32 %v122, %v124
  %v131 = vperm.slane %v26, 0
  %v133 = vadd.f32 %v126, %v131
  %v134 = vadd.f32 %v127, %v131
  %v135 = vadd.f32 %v128, %v131
  %v136 = vadd.f32 %v129, %v131
  %v137 = vpack.c.bf16 %v134, %v133
  %v138 = vpack.c.bf16 %v136, %v135
  %v139 = vld [vmem:[%s3] sm:$0xf]
  %v140 = vld [vmem:[%s3 + $0x4] sm:$0xf]
  %v141 = vld [vmem:[%s3 + $0x8] sm:$0xf]
  %v142 = vld [vmem:[%s3 + $0xc] sm:$0xf]
  %v143 = vld [vmem:[%s4] sm:$0x1]
  %v145 = vperm.slane %v143, 0
  %v151 = vunpack.c.l.b16 %v139
  %v152 = vunpack.c.l.b16 %v140
  %v153 = vunpack.c.l.b16 %v141
  %v154 = vunpack.c.l.b16 %v142
  %v155 = vpack.c.b16 %v152, %v151
  %v156 = vpack.c.b16 %v154, %v153
  %v160 = vsel %vm27, %v137, 0
  %v163 = vsel %vm27, %v138, 0
  %165 = vmatpush.bf16.msra.mxu0 0
  %166 = vmatpush.bf16.msra.mxu0 0
  %167 = vmatpush.bf16.msra.mxu0 0
  %168 = vmatpush.bf16.msra.mxu0 0
  %169 = vmatpush.bf16.msra.mxu0 0
  %170 = vmatpush.bf16.msra.mxu0 0
  %171 = vmatpush.bf16.msra.mxu0 %v156
  %172 = vmatpush.bf16.msra.mxu0 %v155
  %173 = vmatmul.bf16.gmra.mxu0 %v160
  %v174 = vpop.f32.mrf.mxu0
  %v175 = vadd.f32 %v145, %v174
  %v176 = vpop.f32.mrf.mxu0
  %v177 = vadd.f32 %v145, %v176
  %178 = vmatmul.bf16.gmra.mxu0 %v163
  %v179 = vpop.f32.mrf.mxu0
  %v180 = vadd.f32 %v145, %v179
  %v181 = vpop.f32.mrf.mxu0
  %v182 = vadd.f32 %v145, %v181
  %183 = vdwg.mxu0
  %vm184 = vcmask 97280
  %185 = vst.msk [vmem:[%s5] sm:$0xff] %vm184, %v175
  %186 = vst.msk [vmem:[%s5 + $0x8] sm:$0xff] %vm184, %v177
  %187 = vst.msk [vmem:[%s5 + $0x10] sm:$0xff] %vm184, %v180
  %188 = vst.msk [vmem:[%s5 + $0x18] sm:$0xff] %vm184, %v182
  // Predicated region
  $region22: #{_lambda_.20} parent=0 // pred_check
    _
  $region23: #{_lambda_.20} parent=0 // pred_check_branch
    %190 = sbr.rel (0) target = $region25
  $region24: #{_lambda_.20} parent=0 // pred_region
    _
  $region25: #{_lambda_.20} parent=0 // pred_fallthru
    _
  // Predicated region
  $region26: #{_lambda_.20} parent=0 // pred_check
    _
  $region27: #{_lambda_.20} parent=0 // pred_check_branch
    %192 = sbr.rel (0) target = $region29
  $region28: #{_lambda_.20} parent=0 // pred_region
    _
  $region29: #{_lambda_.20} parent=0 // pred_fallthru
    _

// kernel: _lambda_.21
$region0: #{_lambda_.21}
  #allocation0 [shape = 'u32[]', space=smem, size = 0x4, offset = 0x4, fixed_abs, tag = 'smem constant byte address 0x4 - core index']
  #allocation1 [shape = 'u32[72,128]{1,0:T(1,128)}', space=vmem, size = 0x9000, scoped, tag = 'internal scratch']
  %s0 = inlined_call_operand.vmem [shape: f32[2,3,10,10], index: 0, kind: input, shape index: {}]
  %s1 = inlined_call_operand.vmem [shape: f32[81], index: 1, kind: input, shape index: {}]
  %s2 = inlined_call_operand.vmem [shape: f32[3], index: 2, kind: input, shape index: {}]
  %s3 = inlined_call_operand.hbm [shape: f32[2,3,8,8], index: 3, kind: output, shape index: {}]
  %s4 = sld [smem:[#allocation0]]
  $region53: #{_lambda_.21} parent=0
    _
  %s6 = ssub.s32 1, %s4
  %s7 = scalar_select 0, %s6, %s4
  $region1: #{_lambda_.21} parent=0
    #allocation2 [shape = 'u8[512]{0}', space=smem, size = 0x200, scoped, tag = 'input window, operand 1, single buffered']
    #allocation3 [shape = 's32[2]{0}', space=sflag, size = 0x8, scoped, tag = 'scoped memory for _lambda_.21']
    #allocation4 [shape = 's32[2]{0}', space=sflag, size = 0x8, scoped, tag = 'scoped memory for _lambda_.21']
    #allocation5 [shape = 'u8[512]{0}', space=smem, size = 0x200, scoped, tag = 'input window, operand 2, single buffered']
    #allocation6 [shape = 's32[1]{0}', space=sflag, size = 0x4, scoped, tag = 'scoped memory for _lambda_.21']
    #allocation7 [shape = 'u8[24576]{0}', space=vmem, size = 0x6000, scoped, tag = 'output window, operand 0']
    %8 = vsyncpa [#allocation4], 0
    %9 = vsyncpa [#allocation6], 0
    %10 = vsyncpa [#allocation3], 0
    %s11 = scalar_lea.sflag [#allocation3], 1
    %12 = vsyncpa %s11, 0
    loop: start=0, step=1, limit=4
    $region2: #{_lambda_.21} parent=1 // loop_pre_header
      _
    $region3: #{_lambda_.21} parent=1 // loop_header
      %s14 = sphi 0, %s18
      %p15 = scmp.ge.s32.totalorder %s14, 4
      %s24 = sphi 0, %s26
      %s27 = sphi 0, %s24
      %s28 = sphi 0, %s27
      %s44 = sphi 0, %s28
      %s48 = sphi 0, %s48
      %s50 = sphi 0, %s48
      %s51 = sphi 0, %s50
      %s65 = sphi 0, %s51
      %s69 = sphi 0, %s69
      %s71 = sphi 0, %s69
      %s72 = sphi 0, %s71
      %s86 = sphi 0, %s72
      %s92 = sphi 0, %s94
      %s95 = sphi 0, %s92
      %s96 = sphi 0, %s95
      %s112 = sphi 0, %s96
    $region4: #{_lambda_.21} parent=1 // loop_header_branch
      %17 = sbr.rel (%p15) target = $region8
    $region5: #{_lambda_.21} parent=1 // loop_body
      %s19 = ssub.s32 %s14, 1
      %s20 = ssub.s32 %s14, 2
      %s21 = sadd.s32 %s14, 1
      %s22 = ssub.s32 %s14, %s21
      %p23 = scmp.eq.s32.totalorder %s22, 0
      %s25 = sadd.s32 %s24, 1
      %s26 = scalar_select %p23, %s24, %s25
      %p29 = pneg %p23
      %p30 = scmp.eq.s32.totalorder %s14, 1
      %p31 = por %p29, %p30
      %p32 = scmp.ne.s32.totalorder %s24, %s27
      %p33 = scmp.eq.s32.totalorder %s14, 0
      %p34 = por %p32, %p33
      %p35 = scmp.ne.s32.totalorder %s24, %s27
      %p36 = scmp.eq.s32.totalorder %s19, 1
      %p37 = por %p35, %p36
      %p38 = scmp.ne.s32.totalorder %s27, %s28
      %p39 = scmp.eq.s32.totalorder %s19, 0
      %p40 = por %p38, %p39
      %p41 = scmp.ne.s32.totalorder %s27, %s28
      %p42 = scmp.eq.s32.totalorder %s20, 1
      %p43 = por %p41, %p42
      %p45 = scmp.ne.s32.totalorder %s28, %s44
      %p46 = scmp.eq.s32.totalorder %s20, 0
      %p47 = por %p45, %p46
      %s49 = sadd.s32 %s48, 1
      %p52 = scmp.eq.s32.totalorder %s14, 1
      %p53 = scmp.ne.s32.totalorder %s48, %s50
      %p54 = scmp.eq.s32.totalorder %s14, 0
      %p55 = por %p53, %p54
      %p56 = scmp.ne.s32.totalorder %s48, %s50
      %p57 = scmp.eq.s32.totalorder %s19, 1
      %p58 = por %p56, %p57
      %p59 = scmp.ne.s32.totalorder %s50, %s51
      %p60 = scmp.eq.s32.totalorder %s19, 0
      %p61 = por %p59, %p60
      %p62 = scmp.ne.s32.totalorder %s50, %s51
      %p63 = scmp.eq.s32.totalorder %s20, 1
      %p64 = por %p62, %p63
      %p66 = scmp.ne.s32.totalorder %s51, %s65
      %p67 = scmp.eq.s32.totalorder %s20, 0
      %p68 = por %p66, %p67
      %s70 = sadd.s32 %s69, 1
      %p73 = scmp.eq.s32.totalorder %s14, 1
      %p74 = scmp.ne.s32.totalorder %s69, %s71
      %p75 = scmp.eq.s32.totalorder %s14, 0
      %p76 = por %p74, %p75
      %p77 = scmp.ne.s32.totalorder %s69, %s71
      %p78 = scmp.eq.s32.totalorder %s19, 1
      %p79 = por %p77, %p78
      %p80 = scmp.ne.s32.totalorder %s71, %s72
      %p81 = scmp.eq.s32.totalorder %s19, 0
      %p82 = por %p80, %p81
      %p83 = scmp.ne.s32.totalorder %s71, %s72
      %p84 = scmp.eq.s32.totalorder %s20, 1
      %p85 = por %p83, %p84
      %p87 = scmp.ne.s32.totalorder %s72, %s86
      %p88 = scmp.eq.s32.totalorder %s20, 0
      %p89 = por %p87, %p88
      %s90 = ssub.s32 %s14, %s21
      %p91 = scmp.eq.s32.totalorder %s90, 0
      %s93 = sadd.s32 %s92, 1
      %s94 = scalar_select %p91, %s92, %s93
      %p97 = pneg %p91
      %p98 = scmp.eq.s32.totalorder %s14, 1
      %p99 = por %p97, %p98
      %p100 = scmp.ne.s32.totalorder %s92, %s95
      %p101 = scmp.eq.s32.totalorder %s14, 0
      %p102 = por %p100, %p101
      %p103 = scmp.ne.s32.totalorder %s92, %s95
      %p104 = scmp.eq.s32.totalorder %s19, 1
      %p105 = por %p103, %p104
      %p106 = scmp.ne.s32.totalorder %s95, %s96
      %p107 = scmp.eq.s32.totalorder %s19, 0
      %p108 = por %p106, %p107
      %p109 = scmp.ne.s32.totalorder %s95, %s96
      %p110 = scmp.eq.s32.totalorder %s20, 1
      %p111 = por %p109, %p110
      %p113 = scmp.ne.s32.totalorder %s96, %s112
      %p114 = scmp.eq.s32.totalorder %s20, 0
      %p115 = por %p113, %p114
      %p116 = scmp.le.s32.totalorder 1, %s14
      %p117 = scmp.lt.s32.totalorder %s14, 3
      %p118 = pnand %p116, %p117
      %p119 = pneg %p118
      // Predicated region
      $region9: #{_lambda_.21} parent=5 // pred_check
        _
      $region10: #{_lambda_.21} parent=5 // pred_check_branch
        %121 = sbr.rel (%p118) target = $region12
      $region11: #{_lambda_.21} parent=5 // pred_region
        %s122 = ssub.s32 %s14, 1
        // Predicated region
        $region13: #{_lambda_.21} parent=11 // pred_check
          %p123 = pneg %p61
        $region14: #{_lambda_.21} parent=11 // pred_check_branch
          %125 = sbr.rel (%p123) target = $region16
        $region15: #{_lambda_.21} parent=11 // pred_region
          %127 = vsyncadd [#allocation4], 0
          %s129 = sshll.u32 %s1, 4
          %s130 = int_to_ptr.vmem [resolvable:$true] %s129
          %132 = dma.vmem_to_smem %s130, 16, [#allocation2], [#allocation4]
        $region16: #{_lambda_.21} parent=11 // pred_fallthru
          _
        // Predicated region
        $region17: #{_lambda_.21} parent=11 // pred_check
          %p133 = pneg %p82
        $region18: #{_lambda_.21} parent=11 // pred_check_branch
          %135 = sbr.rel (%p133) target = $region20
        $region19: #{_lambda_.21} parent=11 // pred_region
          %137 = vsyncadd [#allocation6], 0
          %s139 = sshll.u32 %s2, 4
          %s140 = int_to_ptr.vmem [resolvable:$true] %s139
          %142 = dma.vmem_to_smem %s140, 16, [#allocation5], [#allocation6]
        $region20: #{_lambda_.21} parent=11 // pred_fallthru
          _
      $region12: #{_lambda_.21} parent=5 // pred_fallthru
        _
      %p143 = scmp.lt.s32.totalorder %s14, 2
      // Predicated region
      $region21: #{_lambda_.21} parent=5 // pred_check
        %p144 = pneg %p143
      $region22: #{_lambda_.21} parent=5 // pred_check_branch
        %146 = sbr.rel (%p144) target = $region24
      $region23: #{_lambda_.21} parent=5 // pred_region
        // Predicated region
        $region25: #{_lambda_.21} parent=23 // pred_check
          %p147 = pneg %p34
        $region26: #{_lambda_.21} parent=23 // pred_check_branch
          %149 = sbr.rel (%p147) target = $region28
        $region27: #{_lambda_.21} parent=23 // pred_region
          %p150 = scmp.lt.s32.totalorder %s14, 1
          %s151 = scalar_select %p150, %s14, 1
          %s152 = smul.addr %s151, 6
          %s153 = smul.addr %s152, 8
          %s154 = scalar_lea.vmem %s0, %s153
        $region28: #{_lambda_.21} parent=23 // pred_fallthru
          _
      $region24: #{_lambda_.21} parent=5 // pred_fallthru
        _
      %p155 = scmp.le.s32.totalorder 1, %s14
      %p156 = scmp.lt.s32.totalorder %s14, 3
      %p157 = pnand %p155, %p156
      %p158 = pneg %p157
      // Predicated region
      $region29: #{_lambda_.21} parent=5 // pred_check
        _
      $region30: #{_lambda_.21} parent=5 // pred_check_branch
        %160 = sbr.rel (%p157) target = $region32
      $region31: #{_lambda_.21} parent=5 // pred_region
        %s161 = ssub.s32 %s14, 1
        // Predicated region
        $region33: #{_lambda_.21} parent=31 // pred_check
          %p162 = pneg %p61
        $region34: #{_lambda_.21} parent=31 // pred_check_branch
          %164 = sbr.rel (%p162) target = $region36
        $region35: #{_lambda_.21} parent=31 // pred_region
          %166 = dma.done [#allocation4], 16
        $region36: #{_lambda_.21} parent=31 // pred_fallthru
          _
        // Predicated region
        $region37: #{_lambda_.21} parent=31 // pred_check
          %p167 = pneg %p82
        $region38: #{_lambda_.21} parent=31 // pred_check_branch
          %169 = sbr.rel (%p167) target = $region40
        $region39: #{_lambda_.21} parent=31 // pred_region
          %171 = dma.done [#allocation6], 16
        $region40: #{_lambda_.21} parent=31 // pred_fallthru
          _
        %172 = sfence
        %p173 = scmp.lt.s32.totalorder %s19, 1
        %s174 = scalar_select %p173, %s19, 1
        %s175 = smul.addr %s174, 6
        %s176 = smul.addr %s175, 8
        %s177 = scalar_lea.vmem %s0, %s176
        %p178 = pneg %p40
        %p179 = pneg %p37
        %p180 = pneg %p61
        %p181 = pneg %p58
        %p182 = pneg %p82
        %p183 = pneg %p79
        %p184 = pneg %p108
        %p185 = pneg %p105
        %s186 = sand.u32 %s95, 1
        %s187 = scalar_lea.sflag [#allocation3], %s186
        %s188 = sand.u32 %s95, 1
        %s189 = smul.addr %s188, 24
        %s190 = scalar_lea.vmem [#allocation7], %s189
        %p191 = scmp.lt.s32.totalorder %s19, 1
        %s192 = scalar_select %p191, %s19, 1
        %s193 = smul.addr %s192, 6
        %s194 = smul.addr %s193, 8
        %s195 = scalar_lea.vmem %s0, %s194
        %v196 = vld [vmem:[%s195] sm:$0xff]
        %v197 = vld [vmem:[%s195 + $0x8] sm:$0x3]
        %v198 = vld [vmem:[%s195 + $0x10] sm:$0xff]
        %v199 = vld [vmem:[%s195 + $0x18] sm:$0x3]
        %v200 = vld [vmem:[%s195 + $0x20] sm:$0xff]
        %v201 = vld [vmem:[%s195 + $0x28] sm:$0x3]
        %s202 = sld [smem:[#allocation5]]
        %v203 = vstv %s202
        %s204 = sld [smem:[#allocation2]]
        %v205 = vstv %s204
        %v206 = vmul.f32 %v196, %v205
        %v207 = vadd.f32 %v203, %v206
        %s208 = sld [smem:[#allocation2 + $0x1]]
        %v209 = vstv %s208
        %v210 = vmul.f32 %v196, %v209
        %212 = vrot.lane.b32.xlu0 %v210, 127
        %v213 = vpop.permute.xlu0 %212
        %v215 = vadd.f32 %v207, %v213
        %s216 = sld [smem:[#allocation2 + $0x2]]
        %v217 = vstv %s216
        %v218 = vmul.f32 %v196, %v217
        %220 = vrot.lane.b32.xlu0 %v218, 126
        %v221 = vpop.permute.xlu0 %220
        %v223 = vadd.f32 %v215, %v221
        %s224 = sld [smem:[#allocation2 + $0x3]]
        %v225 = vstv %s224
        %v226 = vmul.f32 %v196, %v225
        %v227 = vmul.f32 %v197, %v225
        %vm230 = vcmask 1046528
        %v231 = vrot.slane %v226, 1
        %v232 = vrot.slane %v227, 1
        %v233 = vsel %vm230, %v231, %v232
        %v235 = vadd.f32 %v223, %v233
        %s236 = sld [smem:[#allocation2 + $0x4]]
        %v237 = vstv %s236
        %v238 = vmul.f32 %v196, %v237
        %v239 = vmul.f32 %v197, %v237
        %v242 = vrot.slane %v238, 1
        %v243 = vrot.slane %v239, 1
        %v244 = vsel %vm230, %v242, %v243
        %245 = vrot.lane.b32.xlu0 %v244, 127
        %v246 = vpop.permute.xlu0 %245
        %v248 = vadd.f32 %v235, %v246
        %s249 = sld [smem:[#allocation2 + $0x5]]
        %v250 = vstv %s249
        %v251 = vmul.f32 %v196, %v250
        %v252 = vmul.f32 %v197, %v250
        %v255 = vrot.slane %v251, 1
        %v256 = vrot.slane %v252, 1
        %v257 = vsel %vm230, %v255, %v256
        %258 = vrot.lane.b32.xlu0 %v257, 126
        %v259 = vpop.permute.xlu0 %258
        %v261 = vadd.f32 %v248, %v259
        %s262 = sld [smem:[#allocation2 + $0x6]]
        %v263 = vstv %s262
        %v264 = vmul.f32 %v196, %v263
        %v265 = vmul.f32 %v197, %v263
        %vm268 = vcmask 1045504
        %v269 = vrot.slane %v264, 2
        %v270 = vrot.slane %v265, 2
        %v271 = vsel %vm268, %v269, %v270
        %v273 = vadd.f32 %v261, %v271
        %s274 = sld [smem:[#allocation2 + $0x7]]
        %v275 = vstv %s274
        %v276 = vmul.f32 %v196, %v275
        %v277 = vmul.f32 %v197, %v275
        %v280 = vrot.slane %v276, 2
        %v281 = vrot.slane %v277, 2
        %v282 = vsel %vm268, %v280, %v281
        %283 = vrot.lane.b32.xlu0 %v282, 127
        %v284 = vpop.permute.xlu0 %283
        %v286 = vadd.f32 %v273, %v284
        %s287 = sld [smem:[#allocation2 + $0x8]]
        %v288 = vstv %s287
        %v289 = vmul.f32 %v196, %v288
        %v290 = vmul.f32 %v197, %v288
        %v293 = vrot.slane %v289, 2
        %v294 = vrot.slane %v290, 2
        %v295 = vsel %vm268, %v293, %v294
        %296 = vrot.lane.b32.xlu0 %v295, 126
        %v297 = vpop.permute.xlu0 %296
        %v299 = vadd.f32 %v286, %v297
        %s300 = sld [smem:[#allocation2 + $0x9]]
        %v301 = vstv %s300
        %v302 = vmul.f32 %v198, %v301
        %v303 = vadd.f32 %v299, %v302
        %s304 = sld [smem:[#allocation2 + $0xa]]
        %v305 = vstv %s304
        %v306 = vmul.f32 %v198, %v305
        %308 = vrot.lane.b32.xlu0 %v306, 127
        %v309 = vpop.permute.xlu0 %308
        %v311 = vadd.f32 %v303, %v309
        %s312 = sld [smem:[#allocation2 + $0xb]]
        %v313 = vstv %s312
        %v314 = vmul.f32 %v198, %v313
        %316 = vrot.lane.b32.xlu0 %v314, 126
        %v317 = vpop.permute.xlu0 %316
        %v319 = vadd.f32 %v311, %v317
        %s320 = sld [smem:[#allocation2 + $0xc]]
        %v321 = vstv %s320
        %v322 = vmul.f32 %v198, %v321
        %v323 = vmul.f32 %v199, %v321
        %v326 = vrot.slane %v322, 1
        %v327 = vrot.slane %v323, 1
        %v328 = vsel %vm230, %v326, %v327
        %v330 = vadd.f32 %v319, %v328
        %s331 = sld [smem:[#allocation2 + $0xd]]
        %v332 = vstv %s331
        %v333 = vmul.f32 %v198, %v332
        %v334 = vmul.f32 %v199, %v332
        %v337 = vrot.slane %v333, 1
        %v338 = vrot.slane %v334, 1
        %v339 = vsel %vm230, %v337, %v338
        %340 = vrot.lane.b32.xlu0 %v339, 127
        %v341 = vpop.permute.xlu0 %340
        %v343 = vadd.f32 %v330, %v341
        %s344 = sld [smem:[#allocation2 + $0xe]]
        %v345 = vstv %s344
        %v346 = vmul.f32 %v198, %v345
        %v347 = vmul.f32 %v199, %v345
        %v350 = vrot.slane %v346, 1
        %v351 = vrot.slane %v347, 1
        %v352 = vsel %vm230, %v350, %v351
        %353 = vrot.lane.b32.xlu0 %v352, 126
        %v354 = vpop.permute.xlu0 %353
        %v356 = vadd.f32 %v343, %v354
        %s357 = sld [smem:[#allocation2 + $0xf]]
        %v358 = vstv %s357
        %v359 = vmul.f32 %v198, %v358
        %v360 = vmul.f32 %v199, %v358
        %v363 = vrot.slane %v359, 2
        %v364 = vrot.slane %v360, 2
        %v365 = vsel %vm268, %v363, %v364
        %v367 = vadd.f32 %v356, %v365
        %s368 = sld [smem:[#allocation2 + $0x10]]
        %v369 = vstv %s368
        %v370 = vmul.f32 %v198, %v369
        %v371 = vmul.f32 %v199, %v369
        %v374 = vrot.slane %v370, 2
        %v375 = vrot.slane %v371, 2
        %v376 = vsel %vm268, %v374, %v375
        %377 = vrot.lane.b32.xlu0 %v376, 127
        %v378 = vpop.permute.xlu0 %377
        %v380 = vadd.f32 %v367, %v378
        %s381 = sld [smem:[#allocation2 + $0x11]]
        %v382 = vstv %s381
        %v383 = vmul.f32 %v198, %v382
        %v384 = vmul.f32 %v199, %v382
        %v387 = vrot.slane %v383, 2
        %v388 = vrot.slane %v384, 2
        %v389 = vsel %vm268, %v387, %v388
        %390 = vrot.lane.b32.xlu0 %v389, 126
        %v391 = vpop.permute.xlu0 %390
        %v393 = vadd.f32 %v380, %v391
        %s394 = sld [smem:[#allocation2 + $0x12]]
        %v395 = vstv %s394
        %v396 = vmul.f32 %v200, %v395
        %v397 = vadd.f32 %v393, %v396
        %s398 = sld [smem:[#allocation2 + $0x13]]
        %v399 = vstv %s398
        %v400 = vmul.f32 %v200, %v399
        %402 = vrot.lane.b32.xlu0 %v400, 127
        %v403 = vpop.permute.xlu0 %402
        %v405 = vadd.f32 %v397, %v403
        %s406 = sld [smem:[#allocation2 + $0x14]]
        %v407 = vstv %s406
        %v408 = vmul.f32 %v200, %v407
        %410 = vrot.lane.b32.xlu0 %v408, 126
        %v411 = vpop.permute.xlu0 %410
        %v413 = vadd.f32 %v405, %v411
        %s414 = sld [smem:[#allocation2 + $0x15]]
        %v415 = vstv %s414
        %v416 = vmul.f32 %v200, %v415
        %v417 = vmul.f32 %v201, %v415
        %v420 = vrot.slane %v416, 1
        %v421 = vrot.slane %v417, 1
        %v422 = vsel %vm230, %v420, %v421
        %v424 = vadd.f32 %v413, %v422
        %s425 = sld [smem:[#allocation2 + $0x16]]
        %v426 = vstv %s425
        %v427 = vmul.f32 %v200, %v426
        %v428 = vmul.f32 %v201, %v426
        %v431 = vrot.slane %v427, 1
        %v432 = vrot.slane %v428, 1
        %v433 = vsel %vm230, %v431, %v432
        %434 = vrot.lane.b32.xlu0 %v433, 127
        %v435 = vpop.permute.xlu0 %434
        %v437 = vadd.f32 %v424, %v435
        %s438 = sld [smem:[#allocation2 + $0x17]]
        %v439 = vstv %s438
        %v440 = vmul.f32 %v200, %v439
        %v441 = vmul.f32 %v201, %v439
        %v444 = vrot.slane %v440, 1
        %v445 = vrot.slane %v441, 1
        %v446 = vsel %vm230, %v444, %v445
        %447 = vrot.lane.b32.xlu0 %v446, 126
        %v448 = vpop.permute.xlu0 %447
        %v450 = vadd.f32 %v437, %v448
        %s451 = sld [smem:[#allocation2 + $0x18]]
        %v452 = vstv %s451
        %v453 = vmul.f32 %v200, %v452
        %v454 = vmul.f32 %v201, %v452
        %v457 = vrot.slane %v453, 2
        %v458 = vrot.slane %v454, 2
        %v459 = vsel %vm268, %v457, %v458
        %v461 = vadd.f32 %v450, %v459
        %s462 = sld [smem:[#allocation2 + $0x19]]
        %v463 = vstv %s462
        %v464 = vmul.f32 %v200, %v463
        %v465 = vmul.f32 %v201, %v463
        %v468 = vrot.slane %v464, 2
        %v469 = vrot.slane %v465, 2
        %v470 = vsel %vm268, %v468, %v469
        %471 = vrot.lane.b32.xlu0 %v470, 127
        %v472 = vpop.permute.xlu0 %471
        %v474 = vadd.f32 %v461, %v472
        %s475 = sld [smem:[#allocation2 + $0x1a]]
        %v476 = vstv %s475
        %v477 = vmul.f32 %v200, %v476
        %v478 = vmul.f32 %v201, %v476
        %v481 = vrot.slane %v477, 2
        %v482 = vrot.slane %v478, 2
        %v483 = vsel %vm268, %v481, %v482
        %484 = vrot.lane.b32.xlu0 %v483, 126
        %v485 = vpop.permute.xlu0 %484
        %v487 = vadd.f32 %v474, %v485
        %s488 = sld [smem:[#allocation5 + $0x1]]
        %v489 = vstv %s488
        %s490 = sld [smem:[#allocation2 + $0x1b]]
        %v491 = vstv %s490
        %v492 = vmul.f32 %v196, %v491
        %v493 = vadd.f32 %v489, %v492
        %s494 = sld [smem:[#allocation2 + $0x1c]]
        %v495 = vstv %s494
        %v496 = vmul.f32 %v196, %v495
        %498 = vrot.lane.b32.xlu0 %v496, 127
        %v499 = vpop.permute.xlu0 %498
        %v501 = vadd.f32 %v493, %v499
        %s502 = sld [smem:[#allocation2 + $0x1d]]
        %v503 = vstv %s502
        %v504 = vmul.f32 %v196, %v503
        %506 = vrot.lane.b32.xlu0 %v504, 126
        %v507 = vpop.permute.xlu0 %506
        %v509 = vadd.f32 %v501, %v507
        %s510 = sld [smem:[#allocation2 + $0x1e]]
        %v511 = vstv %s510
        %v512 = vmul.f32 %v196, %v511
        %v513 = vmul.f32 %v197, %v511
        %v516 = vrot.slane %v512, 1
        %v517 = vrot.slane %v513, 1
        %v518 = vsel %vm230, %v516, %v517
        %v520 = vadd.f32 %v509, %v518
        %s521 = sld [smem:[#allocation2 + $0x1f]]
        %v522 = vstv %s521
        %v523 = vmul.f32 %v196, %v522
        %v524 = vmul.f32 %v197, %v522
        %v527 = vrot.slane %v523, 1
        %v528 = vrot.slane %v524, 1
        %v529 = vsel %vm230, %v527, %v528
        %530 = vrot.lane.b32.xlu0 %v529, 127
        %v531 = vpop.permute.xlu0 %530
        %v533 = vadd.f32 %v520, %v531
        %s534 = sld [smem:[#allocation2 + $0x20]]
        %v535 = vstv %s534
        %v536 = vmul.f32 %v196, %v535
        %v537 = vmul.f32 %v197, %v535
        %v540 = vrot.slane %v536, 1
        %v541 = vrot.slane %v537, 1
        %v542 = vsel %vm230, %v540, %v541
        %543 = vrot.lane.b32.xlu0 %v542, 126
        %v544 = vpop.permute.xlu0 %543
        %v546 = vadd.f32 %v533, %v544
        %s547 = sld [smem:[#allocation2 + $0x21]]
        %v548 = vstv %s547
        %v549 = vmul.f32 %v196, %v548
        %v550 = vmul.f32 %v197, %v548
        %v553 = vrot.slane %v549, 2
        %v554 = vrot.slane %v550, 2
        %v555 = vsel %vm268, %v553, %v554
        %v557 = vadd.f32 %v546, %v555
        %s558 = sld [smem:[#allocation2 + $0x22]]
        %v559 = vstv %s558
        %v560 = vmul.f32 %v196, %v559
        %v561 = vmul.f32 %v197, %v559
        %v564 = vrot.slane %v560, 2
        %v565 = vrot.slane %v561, 2
        %v566 = vsel %vm268, %v564, %v565
        %567 = vrot.lane.b32.xlu0 %v566, 127
        %v568 = vpop.permute.xlu0 %567
        %v570 = vadd.f32 %v557, %v568
        %s571 = sld [smem:[#allocation2 + $0x23]]
        %v572 = vstv %s571
        %v573 = vmul.f32 %v196, %v572
        %v574 = vmul.f32 %v197, %v572
        %v577 = vrot.slane %v573, 2
        %v578 = vrot.slane %v574, 2
        %v579 = vsel %vm268, %v577, %v578
        %580 = vrot.lane.b32.xlu0 %v579, 126
        %v581 = vpop.permute.xlu0 %580
        %v583 = vadd.f32 %v570, %v581
        %s584 = sld [smem:[#allocation2 + $0x24]]
        %v585 = vstv %s584
        %v586 = vmul.f32 %v198, %v585
        %v587 = vadd.f32 %v583, %v586
        %s588 = sld [smem:[#allocation2 + $0x25]]
        %v589 = vstv %s588
        %v590 = vmul.f32 %v198, %v589
        %592 = vrot.lane.b32.xlu0 %v590, 127
        %v593 = vpop.permute.xlu0 %592
        %v595 = vadd.f32 %v587, %v593
        %s596 = sld [smem:[#allocation2 + $0x26]]
        %v597 = vstv %s596
        %v598 = vmul.f32 %v198, %v597
        %600 = vrot.lane.b32.xlu0 %v598, 126
        %v601 = vpop.permute.xlu0 %600
        %v603 = vadd.f32 %v595, %v601
        %s604 = sld [smem:[#allocation2 + $0x27]]
        %v605 = vstv %s604
        %v606 = vmul.f32 %v198, %v605
        %v607 = vmul.f32 %v199, %v605
        %v610 = vrot.slane %v606, 1
        %v611 = vrot.slane %v607, 1
        %v612 = vsel %vm230, %v610, %v611
        %v614 = vadd.f32 %v603, %v612
        %s615 = sld [smem:[#allocation2 + $0x28]]
        %v616 = vstv %s615
        %v617 = vmul.f32 %v198, %v616
        %v618 = vmul.f32 %v199, %v616
        %v621 = vrot.slane %v617, 1
        %v622 = vrot.slane %v618, 1
        %v623 = vsel %vm230, %v621, %v622
        %624 = vrot.lane.b32.xlu0 %v623, 127
        %v625 = vpop.permute.xlu0 %624
        %v627 = vadd.f32 %v614, %v625
        %s628 = sld [smem:[#allocation2 + $0x29]]
        %v629 = vstv %s628
        %v630 = vmul.f32 %v198, %v629
        %v631 = vmul.f32 %v199, %v629
        %v634 = vrot.slane %v630, 1
        %v635 = vrot.slane %v631, 1
        %v636 = vsel %vm230, %v634, %v635
        %637 = vrot.lane.b32.xlu0 %v636, 126
        %v638 = vpop.permute.xlu0 %637
        %v640 = vadd.f32 %v627, %v638
        %s641 = sld [smem:[#allocation2 + $0x2a]]
        %v642 = vstv %s641
        %v643 = vmul.f32 %v198, %v642
        %v644 = vmul.f32 %v199, %v642
        %v647 = vrot.slane %v643, 2
        %v648 = vrot.slane %v644, 2
        %v649 = vsel %vm268, %v647, %v648
        %v651 = vadd.f32 %v640, %v649
        %s652 = sld [smem:[#allocation2 + $0x2b]]
        %v653 = vstv %s652
        %v654 = vmul.f32 %v198, %v653
        %v655 = vmul.f32 %v199, %v653
        %v658 = vrot.slane %v654, 2
        %v659 = vrot.slane %v655, 2
        %v660 = vsel %vm268, %v658, %v659
        %661 = vrot.lane.b32.xlu0 %v660, 127
        %v662 = vpop.permute.xlu0 %661
        %v664 = vadd.f32 %v651, %v662
        %s665 = sld [smem:[#allocation2 + $0x2c]]
        %v666 = vstv %s665
        %v667 = vmul.f32 %v198, %v666
        %v668 = vmul.f32 %v199, %v666
        %v671 = vrot.slane %v667, 2
        %v672 = vrot.slane %v668, 2
        %v673 = vsel %vm268, %v671, %v672
        %674 = vrot.lane.b32.xlu0 %v673, 126
        %v675 = vpop.permute.xlu0 %674
        %v677 = vadd.f32 %v664, %v675
        %s678 = sld [smem:[#allocation2 + $0x2d]]
        %v679 = vstv %s678
        %v680 = vmul.f32 %v200, %v679
        %v681 = vadd.f32 %v677, %v680
        %s682 = sld [smem:[#allocation2 + $0x2e]]
        %v683 = vstv %s682
        %v684 = vmul.f32 %v200, %v683
        %686 = vrot.lane.b32.xlu0 %v684, 127
        %v687 = vpop.permute.xlu0 %686
        %v689 = vadd.f32 %v681, %v687
        %s690 = sld [smem:[#allocation2 + $0x2f]]
        %v691 = vstv %s690
        %v692 = vmul.f32 %v200, %v691
        %694 = vrot.lane.b32.xlu0 %v692, 126
        %v695 = vpop.permute.xlu0 %694
        %v697 = vadd.f32 %v689, %v695
        %s698 = sld [smem:[#allocation2 + $0x30]]
        %v699 = vstv %s698
        %v700 = vmul.f32 %v200, %v699
        %v701 = vmul.f32 %v201, %v699
        %v704 = vrot.slane %v700, 1
        %v705 = vrot.slane %v701, 1
        %v706 = vsel %vm230, %v704, %v705
        %v708 = vadd.f32 %v697, %v706
        %s709 = sld [smem:[#allocation2 + $0x31]]
        %v710 = vstv %s709
        %v711 = vmul.f32 %v200, %v710
        %v712 = vmul.f32 %v201, %v710
        %v715 = vrot.slane %v711, 1
        %v716 = vrot.slane %v712, 1
        %v717 = vsel %vm230, %v715, %v716
        %718 = vrot.lane.b32.xlu0 %v717, 127
        %v719 = vpop.permute.xlu0 %718
        %v721 = vadd.f32 %v708, %v719
        %s722 = sld [smem:[#allocation2 + $0x32]]
        %v723 = vstv %s722
        %v724 = vmul.f32 %v200, %v723
        %v725 = vmul.f32 %v201, %v723
        %v728 = vrot.slane %v724, 1
        %v729 = vrot.slane %v725, 1
        %v730 = vsel %vm230, %v728, %v729
        %731 = vrot.lane.b32.xlu0 %v730, 126
        %v732 = vpop.permute.xlu0 %731
        %v734 = vadd.f32 %v721, %v732
        %s735 = sld [smem:[#allocation2 + $0x33]]
        %v736 = vstv %s735
        %v737 = vmul.f32 %v200, %v736
        %v738 = vmul.f32 %v201, %v736
        %v741 = vrot.slane %v737, 2
        %v742 = vrot.slane %v738, 2
        %v743 = vsel %vm268, %v741, %v742
        %v745 = vadd.f32 %v734, %v743
        %s746 = sld [smem:[#allocation2 + $0x34]]
        %v747 = vstv %s746
        %v748 = vmul.f32 %v200, %v747
        %v749 = vmul.f32 %v201, %v747
        %v752 = vrot.slane %v748, 2
        %v753 = vrot.slane %v749, 2
        %v754 = vsel %vm268, %v752, %v753
        %755 = vrot.lane.b32.xlu0 %v754, 127
        %v756 = vpop.permute.xlu0 %755
        %v758 = vadd.f32 %v745, %v756
        %s759 = sld [smem:[#allocation2 + $0x35]]
        %v760 = vstv %s759
        %v761 = vmul.f32 %v200, %v760
        %v762 = vmul.f32 %v201, %v760
        %v765 = vrot.slane %v761, 2
        %v766 = vrot.slane %v762, 2
        %v767 = vsel %vm268, %v765, %v766
        %768 = vrot.lane.b32.xlu0 %v767, 126
        %v769 = vpop.permute.xlu0 %768
        %v771 = vadd.f32 %v758, %v769
        %s772 = sld [smem:[#allocation5 + $0x2]]
        %v773 = vstv %s772
        %s774 = sld [smem:[#allocation2 + $0x36]]
        %v775 = vstv %s774
        %v776 = vmul.f32 %v196, %v775
        %v777 = vadd.f32 %v773, %v776
        %s778 = sld [smem:[#allocation2 + $0x37]]
        %v779 = vstv %s778
        %v780 = vmul.f32 %v196, %v779
        %782 = vrot.lane.b32.xlu0 %v780, 127
        %v783 = vpop.permute.xlu0 %782
        %v785 = vadd.f32 %v777, %v783
        %s786 = sld [smem:[#allocation2 + $0x38]]
        %v787 = vstv %s786
        %v788 = vmul.f32 %v196, %v787
        %790 = vrot.lane.b32.xlu0 %v788, 126
        %v791 = vpop.permute.xlu0 %790
        %v793 = vadd.f32 %v785, %v791
        %s794 = sld [smem:[#allocation2 + $0x39]]
        %v795 = vstv %s794
        %v796 = vmul.f32 %v196, %v795
        %v797 = vmul.f32 %v197, %v795
        %v800 = vrot.slane %v796, 1
        %v801 = vrot.slane %v797, 1
        %v802 = vsel %vm230, %v800, %v801
        %v804 = vadd.f32 %v793, %v802
        %s805 = sld [smem:[#allocation2 + $0x3a]]
        %v806 = vstv %s805
        %v807 = vmul.f32 %v196, %v806
        %v808 = vmul.f32 %v197, %v806
        %v811 = vrot.slane %v807, 1
        %v812 = vrot.slane %v808, 1
        %v813 = vsel %vm230, %v811, %v812
        %814 = vrot.lane.b32.xlu0 %v813, 127
        %v815 = vpop.permute.xlu0 %814
        %v817 = vadd.f32 %v804, %v815
        %s818 = sld [smem:[#allocation2 + $0x3b]]
        %v819 = vstv %s818
        %v820 = vmul.f32 %v196, %v819
        %v821 = vmul.f32 %v197, %v819
        %v824 = vrot.slane %v820, 1
        %v825 = vrot.slane %v821, 1
        %v826 = vsel %vm230, %v824, %v825
        %827 = vrot.lane.b32.xlu0 %v826, 126
        %v828 = vpop.permute.xlu0 %827
        %v830 = vadd.f32 %v817, %v828
        %s831 = sld [smem:[#allocation2 + $0x3c]]
        %v832 = vstv %s831
        %v833 = vmul.f32 %v196, %v832
        %v834 = vmul.f32 %v197, %v832
        %v837 = vrot.slane %v833, 2
        %v838 = vrot.slane %v834, 2
        %v839 = vsel %vm268, %v837, %v838
        %v841 = vadd.f32 %v830, %v839
        %s842 = sld [smem:[#allocation2 + $0x3d]]
        %v843 = vstv %s842
        %v844 = vmul.f32 %v196, %v843
        %v845 = vmul.f32 %v197, %v843
        %v848 = vrot.slane %v844, 2
        %v849 = vrot.slane %v845, 2
        %v850 = vsel %vm268, %v848, %v849
        %851 = vrot.lane.b32.xlu0 %v850, 127
        %v852 = vpop.permute.xlu0 %851
        %v854 = vadd.f32 %v841, %v852
        %s855 = sld [smem:[#allocation2 + $0x3e]]
        %v856 = vstv %s855
        %v857 = vmul.f32 %v196, %v856
        %v858 = vmul.f32 %v197, %v856
        %v861 = vrot.slane %v857, 2
        %v862 = vrot.slane %v858, 2
        %v863 = vsel %vm268, %v861, %v862
        %864 = vrot.lane.b32.xlu0 %v863, 126
        %v865 = vpop.permute.xlu0 %864
        %v867 = vadd.f32 %v854, %v865
        %s868 = sld [smem:[#allocation2 + $0x3f]]
        %v869 = vstv %s868
        %v870 = vmul.f32 %v198, %v869
        %v871 = vadd.f32 %v867, %v870
        %s872 = sld [smem:[#allocation2 + $0x40]]
        %v873 = vstv %s872
        %v874 = vmul.f32 %v198, %v873
        %876 = vrot.lane.b32.xlu0 %v874, 127
        %v877 = vpop.permute.xlu0 %876
        %v879 = vadd.f32 %v871, %v877
        %s880 = sld [smem:[#allocation2 + $0x41]]
        %v881 = vstv %s880
        %v882 = vmul.f32 %v198, %v881
        %884 = vrot.lane.b32.xlu0 %v882, 126
        %v885 = vpop.permute.xlu0 %884
        %v887 = vadd.f32 %v879, %v885
        %s888 = sld [smem:[#allocation2 + $0x42]]
        %v889 = vstv %s888
        %v890 = vmul.f32 %v198, %v889
        %v891 = vmul.f32 %v199, %v889
        %v894 = vrot.slane %v890, 1
        %v895 = vrot.slane %v891, 1
        %v896 = vsel %vm230, %v894, %v895
        %v898 = vadd.f32 %v887, %v896
        %s899 = sld [smem:[#allocation2 + $0x43]]
        %v900 = vstv %s899
        %v901 = vmul.f32 %v198, %v900
        %v902 = vmul.f32 %v199, %v900
        %v905 = vrot.slane %v901, 1
        %v906 = vrot.slane %v902, 1
        %v907 = vsel %vm230, %v905, %v906
        %908 = vrot.lane.b32.xlu0 %v907, 127
        %v909 = vpop.permute.xlu0 %908
        %v911 = vadd.f32 %v898, %v909
        %s912 = sld [smem:[#allocation2 + $0x44]]
        %v913 = vstv %s912
        %v914 = vmul.f32 %v198, %v913
        %v915 = vmul.f32 %v199, %v913
        %v918 = vrot.slane %v914, 1
        %v919 = vrot.slane %v915, 1
        %v920 = vsel %vm230, %v918, %v919
        %921 = vrot.lane.b32.xlu0 %v920, 126
        %v922 = vpop.permute.xlu0 %921
        %v924 = vadd.f32 %v911, %v922
        %s925 = sld [smem:[#allocation2 + $0x45]]
        %v926 = vstv %s925
        %v927 = vmul.f32 %v198, %v926
        %v928 = vmul.f32 %v199, %v926
        %v931 = vrot.slane %v927, 2
        %v932 = vrot.slane %v928, 2
        %v933 = vsel %vm268, %v931, %v932
        %v935 = vadd.f32 %v924, %v933
        %s936 = sld [smem:[#allocation2 + $0x46]]
        %v937 = vstv %s936
        %v938 = vmul.f32 %v198, %v937
        %v939 = vmul.f32 %v199, %v937
        %v942 = vrot.slane %v938, 2
        %v943 = vrot.slane %v939, 2
        %v944 = vsel %vm268, %v942, %v943
        %945 = vrot.lane.b32.xlu0 %v944, 127
        %v946 = vpop.permute.xlu0 %945
        %v948 = vadd.f32 %v935, %v946
        %s949 = sld [smem:[#allocation2 + $0x47]]
        %v950 = vstv %s949
        %v951 = vmul.f32 %v198, %v950
        %v952 = vmul.f32 %v199, %v950
        %v955 = vrot.slane %v951, 2
        %v956 = vrot.slane %v952, 2
        %v957 = vsel %vm268, %v955, %v956
        %958 = vrot.lane.b32.xlu0 %v957, 126
        %v959 = vpop.permute.xlu0 %958
        %v961 = vadd.f32 %v948, %v959
        %s962 = sld [smem:[#allocation2 + $0x48]]
        %v963 = vstv %s962
        %v964 = vmul.f32 %v200, %v963
        %v965 = vadd.f32 %v961, %v964
        %s966 = sld [smem:[#allocation2 + $0x49]]
        %v967 = vstv %s966
        %v968 = vmul.f32 %v200, %v967
        %970 = vrot.lane.b32.xlu0 %v968, 127
        %v971 = vpop.permute.xlu0 %970
        %v973 = vadd.f32 %v965, %v971
        %s974 = sld [smem:[#allocation2 + $0x4a]]
        %v975 = vstv %s974
        %v976 = vmul.f32 %v200, %v975
        %978 = vrot.lane.b32.xlu0 %v976, 126
        %v979 = vpop.permute.xlu0 %978
        %v981 = vadd.f32 %v973, %v979
        %s982 = sld [smem:[#allocation2 + $0x4b]]
        %v983 = vstv %s982
        %v984 = vmul.f32 %v200, %v983
        %v985 = vmul.f32 %v201, %v983
        %v988 = vrot.slane %v984, 1
        %v989 = vrot.slane %v985, 1
        %v990 = vsel %vm230, %v988, %v989
        %v992 = vadd.f32 %v981, %v990
        %s993 = sld [smem:[#allocation2 + $0x4c]]
        %v994 = vstv %s993
        %v995 = vmul.f32 %v200, %v994
        %v996 = vmul.f32 %v201, %v994
        %v999 = vrot.slane %v995, 1
        %v1000 = vrot.slane %v996, 1
        %v1001 = vsel %vm230, %v999, %v1000
        %1002 = vrot.lane.b32.xlu0 %v1001, 127
        %v1003 = vpop.permute.xlu0 %1002
        %v1005 = vadd.f32 %v992, %v1003
        %s1006 = sld [smem:[#allocation2 + $0x4d]]
        %v1007 = vstv %s1006
        %v1008 = vmul.f32 %v200, %v1007
        %v1009 = vmul.f32 %v201, %v1007
        %v1012 = vrot.slane %v1008, 1
        %v1013 = vrot.slane %v1009, 1
        %v1014 = vsel %vm230, %v1012, %v1013
        %1015 = vrot.lane.b32.xlu0 %v1014, 126
        %v1016 = vpop.permute.xlu0 %1015
        %v1018 = vadd.f32 %v1005, %v1016
        %s1019 = sld [smem:[#allocation2 + $0x4e]]
        %v1020 = vstv %s1019
        %v1021 = vmul.f32 %v200, %v1020
        %v1022 = vmul.f32 %v201, %v1020
        %v1025 = vrot.slane %v1021, 2
        %v1026 = vrot.slane %v1022, 2
        %v1027 = vsel %vm268, %v1025, %v1026
        %v1029 = vadd.f32 %v1018, %v1027
        %s1030 = sld [smem:[#allocation2 + $0x4f]]
        %v1031 = vstv %s1030
        %v1032 = vmul.f32 %v200, %v1031
        %v1033 = vmul.f32 %v201, %v1031
        %v1036 = vrot.slane %v1032, 2
        %v1037 = vrot.slane %v1033, 2
        %v1038 = vsel %vm268, %v1036, %v1037
        %1039 = vrot.lane.b32.xlu0 %v1038, 127
        %v1040 = vpop.permute.xlu0 %1039
        %v1042 = vadd.f32 %v1029, %v1040
        %s1043 = sld [smem:[#allocation2 + $0x50]]
        %v1044 = vstv %s1043
        %v1045 = vmul.f32 %v200, %v1044
        %v1046 = vmul.f32 %v201, %v1044
        %v1049 = vrot.slane %v1045, 2
        %v1050 = vrot.slane %v1046, 2
        %v1051 = vsel %vm268, %v1049, %v1050
        %1052 = vrot.lane.b32.xlu0 %v1051, 126
        %v1053 = vpop.permute.xlu0 %1052
        %v1055 = vadd.f32 %v1042, %v1053
        %vm1056 = vcmask 64512
        %1057 = vst.msk [vmem:[%s190] sm:$0xff] %vm1056, %v487
        %1058 = vst.msk [vmem:[%s190 + $0x8] sm:$0xff] %vm1056, %v771
        %1059 = vst.msk [vmem:[%s190 + $0x10] sm:$0xff] %vm1056, %v1055
        %s1060 = sand.u32 %s95, 1
        %s1061 = scalar_lea.sflag [#allocation3], %s1060
        %s1062 = sand.u32 %s95, 1
        %s1063 = smul.addr %s1062, 24
        %s1064 = scalar_lea.vmem [#allocation7], %s1063
        // Predicated region
        $region41: #{_lambda_.21} parent=31 // pred_check
          %p1065 = pneg %p105
        $region42: #{_lambda_.21} parent=31 // pred_check_branch
          %1067 = sbr.rel (%p1065) target = $region44
        $region43: #{_lambda_.21} parent=31 // pred_region
          %1069 = vsyncadd %s1061, 0
          %s1070 = smul.addr %s19, 3
          %s1071 = smul.addr %s1070, 8
          %s1072 = scalar_lea.hbm %s3, %s1071
          %s1073 = sshll.u32 %s1064, 4
          %s1074 = int_to_ptr.vmem [resolvable:$true] %s1073
          %s1075 = sshll.u32 %s1072, 4
          %s1076 = int_to_ptr.hbm [resolvable:$true] %s1075
          %1081 = dma.vmem_to_hbm [thread:$0]  %s1074, 384, %s1076, %s1061, 128, 128, 8
        $region44: #{_lambda_.21} parent=31 // pred_fallthru
          _
      $region32: #{_lambda_.21} parent=5 // pred_fallthru
        _
      %p1082 = scmp.le.s32.totalorder 2, %s14
      // Predicated region
      $region45: #{_lambda_.21} parent=5 // pred_check
        %p1083 = pneg %p1082
      $region46: #{_lambda_.21} parent=5 // pred_check_branch
        %1085 = sbr.rel (%p1083) target = $region48
      $region47: #{_lambda_.21} parent=5 // pred_region
        %s1086 = ssub.s32 %s14, 2
        // Predicated region
        $region49: #{_lambda_.21} parent=47 // pred_check
          %p1087 = pneg %p111
        $region50: #{_lambda_.21} parent=47 // pred_check_branch
          %1089 = sbr.rel (%p1087) target = $region52
        $region51: #{_lambda_.21} parent=47 // pred_region
          %s1090 = sand.u32 %s96, 1
          %s1091 = scalar_lea.sflag [#allocation3], %s1090
          %s1092 = sand.u32 %s96, 1
          %s1093 = smul.addr %s1092, 24
          %s1094 = scalar_lea.vmem [#allocation7], %s1093
          %1096 = dma.done %s1091, 384
        $region52: #{_lambda_.21} parent=47 // pred_fallthru
          _
      $region48: #{_lambda_.21} parent=5 // pred_fallthru
        _
    $region6: #{_lambda_.21} parent=1 // loop_footer
      %s18 = sadd.s32 1, %s14
    $region7: #{_lambda_.21} parent=1 // loop_footer_branch
      %13 = sbr.rel target = $region3
    $region8: #{_lambda_.21} parent=1 // loop_exit
      _
    %1097 = vsyncpa [#allocation3], 1
    %s1098 = scalar_lea.sflag [#allocation3], 1
    %1099 = vsyncpa %s1098, 1
    %1100 = vsyncpa [#allocation4], 1
    %s1101 = scalar_lea.sflag [#allocation4], 1
    %1102 = vsyncpa %s1101, 1
    %1103 = vsyncpa [#allocation6], 1

</llo_original>
